<compile_context>
chip_gen: v5e
topology: v5e:2x2
jax: 0.10.0
libtpu: 0.0.40
codegen_flags: <defaults>
</compile_context>

<pallas_src>
import functools

import jax
import jax.numpy as jnp
from jax.experimental import pallas as pl
from jax.experimental.pallas import tpu as pltpu


def _round_up(v, m):
    return (v + m - 1) // m * m


def _vmem_limit(nbytes):
    # ~2x headroom over the estimated resident bytes, clamped to [4 MiB, 48 MiB]
    # (48 MiB leaves headroom under v7x's 64 MiB physical VMEM).
    return int(min(max(2 * nbytes, 4 * 1024 * 1024), 48 * 1024 * 1024))


# ---------------------------------------------------------------------------
# Kernels
# ---------------------------------------------------------------------------

def _fused_kernel(xcat_ref, wenc_ref, benc_ref, adj_ref, wcomb_ref, whh_ref,
                  bih_ref, bhh_ref, wout_ref, bout_ref, out_ref,
                  *, num_layers, hp):
    # Whole model in one kernel: encode + num_layers GatedGraphConv updates +
    # relu + output projection.  adj stays resident in VMEM across layers.
    x = (jnp.dot(xcat_ref[...], wenc_ref[...], preferred_element_type=jnp.float32)
         + benc_ref[...])                                   # block-diag encoders
    adj = adj_ref[...]                                      # bf16, exact edge counts
    whh = whh_ref[...]
    bih = bih_ref[...]
    bhh = bhh_ref[...]
    for l in range(num_layers):                             # static unroll
        # add-aggregation:  A @ x   (bf16 MXU, f32 accumulation)
        agg = jnp.dot(adj, x.astype(jnp.bfloat16),
                      preferred_element_type=jnp.float32)
        # GRUCell (torch gate order r, z, n); W_l already folded into w_comb.
        gi = jnp.dot(agg.astype(jnp.bfloat16), wcomb_ref[l],
                     preferred_element_type=jnp.float32) + bih
        gh = jnp.dot(x.astype(jnp.bfloat16), whh,
                     preferred_element_type=jnp.float32) + bhh
        r = jax.nn.sigmoid(gi[:, 0:hp] + gh[:, 0:hp])
        z = jax.nn.sigmoid(gi[:, hp:2 * hp] + gh[:, hp:2 * hp])
        cand = jnp.tanh(gi[:, 2 * hp:3 * hp] + r * gh[:, 2 * hp:3 * hp])
        x = (1.0 - z) * cand + z * x
    x = jnp.maximum(x, 0.0)                                 # relu
    # TODO(synk): F.dropout(p=0.4) is identity at inference; not applied here.
    out_ref[...] = (jnp.dot(x, wout_ref[...], preferred_element_type=jnp.float32)
                    + bout_ref[...])


def _encode_kernel(xcat_ref, wenc_ref, benc_ref, x0_ref):
    # x0 = [x_content | x_style] @ blockdiag(W_post, W_style, 0) + [b_post|b_style|0]
    x0_ref[...] = (
        jnp.dot(xcat_ref[...], wenc_ref[...], preferred_element_type=jnp.float32)
        + benc_ref[...]
    )


def _ggnn_layer_kernel(x_src_ref, adj_ref, x_dst_ref, wcomb_ref, whh_ref,
                       bih_ref, bhh_ref, x_out_ref, acc_ref, *, hp):
    k = pl.program_id(1)

    @pl.when(k == 0)
    def _():
        acc_ref[...] = jnp.zeros_like(acc_ref)

    # add-aggregation over source nodes: acc += A[dst_tile, src_tile] @ x[src_tile]
    # bf16 x bf16 MXU matmul with f32 accumulation (adjacency counts exact in bf16).
    acc_ref[...] += jnp.dot(adj_ref[...], x_src_ref[...].astype(jnp.bfloat16),
                            preferred_element_type=jnp.float32)

    @pl.when(k == pl.num_programs(1) - 1)
    def _():
        hprev = x_dst_ref[...]                               # previous layer state
        # W_l is folded into wcomb:  gi = (A @ x) @ (W_l @ W_ih) + b_ih
        gi = jnp.dot(acc_ref[...].astype(jnp.bfloat16), wcomb_ref[...],
                     preferred_element_type=jnp.float32) + bih_ref[...]
        gh = jnp.dot(hprev.astype(jnp.bfloat16), whh_ref[...],
                     preferred_element_type=jnp.float32) + bhh_ref[...]
        r = jax.nn.sigmoid(gi[:, 0:hp] + gh[:, 0:hp])
        z = jax.nn.sigmoid(gi[:, hp:2 * hp] + gh[:, hp:2 * hp])
        cand = jnp.tanh(gi[:, 2 * hp:3 * hp] + r * gh[:, 2 * hp:3 * hp])
        x_out_ref[...] = (1.0 - z) * cand + z * hprev


def _head_kernel(x_ref, wo_ref, bo_ref, out_ref):
    x = jnp.maximum(x_ref[...], 0.0)                         # relu
    # TODO(synk): F.dropout(p=0.4) is identity at inference; not applied here.
    out_ref[...] = (
        jnp.dot(x, wo_ref[...], preferred_element_type=jnp.float32) + bo_ref[...]
    )


# ---------------------------------------------------------------------------
# Wrapper
# ---------------------------------------------------------------------------

def fake_news_model_gated(x_content, x_style, edge_index, edge_type, params,
                          *, num_layers, hidden, force_tiled=False):
    del edge_type  # GatedGraphConv.forward never consumes edge_type.
    f32 = jnp.float32
    bf16 = jnp.bfloat16
    n = x_content.shape[0]
    fc = x_content.shape[1]
    fs = x_style.shape[1]
    fin = fc + fs
    fcat = params["w_post"].shape[1]
    num_classes = params["w_out"].shape[1]
    h = hidden

    hp = _round_up(hidden, 128)                 # lane-padded hidden width
    cp = _round_up(max(num_classes, 1), 128)    # lane-dense output slab width

    # ---- fused-vs-streaming decision (does everything fit VMEM?) -----------
    n_pad128 = _round_up(n, 128)
    fused_bytes = (
        2 * n_pad128 * n_pad128 * 2             # adj (bf16), double-buffer worst case
        + 2 * n_pad128 * fin * 4                # xcat
        + 2 * n_pad128 * cp * 4                 # logits out
        + 4 * (fin * hp + hp + hp * cp + cp + 2 * 3 * hp)   # f32 weights / biases
        + 2 * (num_layers + 1) * hp * 3 * hp    # bf16 gate weights
        + 4 * n_pad128 * (2 * hp + 2 * 3 * hp)  # live f32 intermediates
    )
    use_fused = (not force_tiled) and fused_bytes <= 40 * 1024 * 1024

    if use_fused:
        n_pad = n_pad128
        tile_dst = tile_src = n_pad
    elif n <= 1024:
        # small forced-tiled path: 128-wide lane-dense tiles, >= 2 tiles per axis
        # so the src accumulation and the parallel dst axis are both exercised.
        tile_dst = tile_src = 128
        n_pad = max(n_pad128, 2 * 128)
    else:
        # large-graph streaming path: big tiles keep VMEM busy (~14 MiB resident)
        # and cut the x re-stream traffic (proportional to d_tiles).
        tile_dst, tile_src = 1024, 2048
        n_pad = _round_up(n, tile_src)
    d_tiles = n_pad // tile_dst
    s_tiles = n_pad // tile_src

    # ---- pad node features / adjacency (adj built directly in bf16) --------
    xcat = jnp.concatenate([x_content, x_style], axis=1).astype(f32)
    xcat = jnp.pad(xcat, ((0, n_pad - n), (0, 0)))

    src_i, dst_i = edge_index[0], edge_index[1]
    # integer edge multiplicities (< 256) are exact in bf16
    adj = jnp.zeros((n_pad, n_pad), bf16).at[dst_i, src_i].add(jnp.ones((), bf16))

    # ---- fold the two encoders into one block-diagonal lane-padded weight ---
    w_enc = jnp.zeros((fin, hp), f32)
    w_enc = w_enc.at[:fc, :fcat].set(params["w_post"].astype(f32))
    w_enc = w_enc.at[fc:, fcat:2 * fcat].set(params["w_style"].astype(f32))
    b_enc = jnp.zeros((1, hp), f32)
    b_enc = b_enc.at[:, :fcat].set(params["b_post"].astype(f32))
    b_enc = b_enc.at[:, fcat:2 * fcat].set(params["b_style"].astype(f32))

    # ---- lane-pad GGNN / GRU / output weights, fold W_l into W_ih ----------
    wl_pad = jnp.zeros((num_layers, hp, hp), f32)
    wl_pad = wl_pad.at[:, :h, :h].set(params["ggnn_w"].astype(f32))

    def _pad_gates(w):          # (h, 3h) -> (hp, 3hp) with 128-aligned gate blocks
        out = jnp.zeros((hp, 3 * hp), f32)
        for g in range(3):
            out = out.at[:h, g * hp:g * hp + h].set(w[:, g * h:(g + 1) * h])
        return out

    def _pad_gate_bias(b):      # (1, 3h) -> (1, 3hp)
        out = jnp.zeros((1, 3 * hp), f32)
        for g in range(3):
            out = out.at[:, g * hp:g * hp + h].set(b[:, g * h:(g + 1) * h])
        return out

    wih = _pad_gates(params["gru_w_ih"].astype(f32))
    whh = _pad_gates(params["gru_w_hh"].astype(f32)).astype(bf16)
    bih = _pad_gate_bias(params["gru_b_ih"].astype(f32))
    bhh = _pad_gate_bias(params["gru_b_hh"].astype(f32))

    # (A@x) @ W_l @ W_ih == (A@x) @ (W_l @ W_ih): fold once in the wrapper.
    w_comb = jnp.einsum("lij,jk->lik", wl_pad, wih).astype(bf16)   # (L, hp, 3hp)

    w_out = jnp.zeros((hp, cp), f32).at[:h, :num_classes].set(params["w_out"].astype(f32))
    b_out = jnp.zeros((1, cp), f32).at[:, :num_classes].set(params["b_out"].astype(f32))

    # ======================= fused single-call path ==========================
    if use_fused:
        fused_call = pl.pallas_call(
            functools.partial(_fused_kernel, num_layers=num_layers, hp=hp),
            out_shape=jax.ShapeDtypeStruct((n_pad, cp), f32),
            grid_spec=pltpu.PrefetchScalarGridSpec(
                num_scalar_prefetch=0,
                grid=(1,),
                in_specs=[
                    pl.BlockSpec((n_pad, fin), lambda i: (0, 0)),            # xcat
                    pl.BlockSpec((fin, hp), lambda i: (0, 0)),               # w_enc
                    pl.BlockSpec((1, hp), lambda i: (0, 0)),                 # b_enc
                    pl.BlockSpec((n_pad, n_pad), lambda i: (0, 0)),          # adj (bf16)
                    pl.BlockSpec((num_layers, hp, 3 * hp), lambda i: (0, 0, 0)),  # w_comb
                    pl.BlockSpec((hp, 3 * hp), lambda i: (0, 0)),            # W_hh
                    pl.BlockSpec((1, 3 * hp), lambda i: (0, 0)),             # b_ih
                    pl.BlockSpec((1, 3 * hp), lambda i: (0, 0)),             # b_hh
                    pl.BlockSpec((hp, cp), lambda i: (0, 0)),                # w_out
                    pl.BlockSpec((1, cp), lambda i: (0, 0)),                 # b_out
                ],
                out_specs=pl.BlockSpec((n_pad, cp), lambda i: (0, 0))),
            compiler_params=pltpu.CompilerParams(
                dimension_semantics=("arbitrary",),
                vmem_limit_bytes=_vmem_limit(fused_bytes)),
        )
        logits = fused_call(xcat, w_enc, b_enc, adj, w_comb, whh, bih, bhh,
                            w_out, b_out)
        return logits[:n, :num_classes]

    # ======================= streaming (tiled) path ==========================
    # encoder call (row-tiled, megacore-parallel)
    enc_bytes = 2 * 4 * (tile_dst * fin + fin * hp + hp + tile_dst * hp)
    encode_call = pl.pallas_call(
        _encode_kernel,
        out_shape=jax.ShapeDtypeStruct((n_pad, hp), f32),
        grid_spec=pltpu.PrefetchScalarGridSpec(
            num_scalar_prefetch=0,
            grid=(d_tiles,),
            in_specs=[pl.BlockSpec((tile_dst, fin), lambda i: (i, 0)),
                      pl.BlockSpec((fin, hp), lambda i: (0, 0)),
                      pl.BlockSpec((1, hp), lambda i: (0, 0))],
            out_specs=pl.BlockSpec((tile_dst, hp), lambda i: (i, 0))),
        compiler_params=pltpu.CompilerParams(
            dimension_semantics=("parallel",),
            vmem_limit_bytes=_vmem_limit(enc_bytes)),
    )

    # per-layer GatedGraphConv call
    layer_bytes = (
        2 * tile_dst * tile_src * 2                 # adj tile (bf16) x double buffer
        + 2 * 4 * tile_src * hp                     # x_src tile x double buffer
        + 2 * 4 * tile_dst * hp                     # x_dst tile
        + 2 * 4 * tile_dst * hp                     # x_out tile
        + 2 * 2 * 2 * hp * 3 * hp                   # w_comb + W_hh (bf16)
        + 2 * 4 * 2 * 3 * hp                        # biases
        + 4 * tile_dst * hp                         # accumulator scratch
    )
    layer_cost = pl.CostEstimate(
        flops=(2 * n_pad * n_pad * hp               # A @ x
               + 2 * 2 * n_pad * hp * 3 * hp),      # gi / gh gate matmuls
        transcendentals=3 * n_pad * hp,
        bytes_accessed=(n_pad * n_pad * 2
                        + (d_tiles + 2) * n_pad * hp * 4
                        + 2 * 2 * hp * 3 * hp),
    )
    layer_call = pl.pallas_call(
        functools.partial(_ggnn_layer_kernel, hp=hp),
        out_shape=jax.ShapeDtypeStruct((n_pad, hp), f32),
        grid_spec=pltpu.PrefetchScalarGridSpec(
            num_scalar_prefetch=0,
            grid=(d_tiles, s_tiles),
            in_specs=[pl.BlockSpec((tile_src, hp), lambda i, k: (k, 0)),        # x (src view)
                      pl.BlockSpec((tile_dst, tile_src), lambda i, k: (i, k)),  # adj tile
                      pl.BlockSpec((tile_dst, hp), lambda i, k: (i, 0)),        # x (dst view)
                      pl.BlockSpec((hp, 3 * hp), lambda i, k: (0, 0)),          # W_l @ W_ih
                      pl.BlockSpec((hp, 3 * hp), lambda i, k: (0, 0)),          # W_hh
                      pl.BlockSpec((1, 3 * hp), lambda i, k: (0, 0)),           # b_ih
                      pl.BlockSpec((1, 3 * hp), lambda i, k: (0, 0))],          # b_hh
            out_specs=pl.BlockSpec((tile_dst, hp), lambda i, k: (i, 0)),
            scratch_shapes=[pltpu.VMEM((tile_dst, hp), f32)]),
        compiler_params=pltpu.CompilerParams(
            dimension_semantics=("parallel", "arbitrary"),
            vmem_limit_bytes=_vmem_limit(layer_bytes)),
        cost_estimate=layer_cost,
    )

    # head call (relu + lane-dense output projection)
    head_bytes = 2 * 4 * (tile_dst * hp + hp * cp + cp + tile_dst * cp)
    head_call = pl.pallas_call(
        _head_kernel,
        out_shape=jax.ShapeDtypeStruct((n_pad, cp), f32),
        grid_spec=pltpu.PrefetchScalarGridSpec(
            num_scalar_prefetch=0,
            grid=(d_tiles,),
            in_specs=[pl.BlockSpec((tile_dst, hp), lambda i: (i, 0)),
                      pl.BlockSpec((hp, cp), lambda i: (0, 0)),
                      pl.BlockSpec((1, cp), lambda i: (0, 0))],
            out_specs=pl.BlockSpec((tile_dst, cp), lambda i: (i, 0))),
        compiler_params=pltpu.CompilerParams(
            dimension_semantics=("parallel",),
            vmem_limit_bytes=_vmem_limit(head_bytes)),
    )

    # forward
    x = encode_call(xcat, w_enc, b_enc)
    for l in range(num_layers):
        x = layer_call(x, adj, x, w_comb[l], whh, bih, bhh)
    logits = head_call(x, w_out, b_out)
    return logits[:n, :num_classes]


# ---------------------------------------------------------------------------
# Pure-JAX reference (mirrors the PyTorch forward, eval mode, f32)
# ---------------------------------------------------------------------------

def _reference(x_content, x_style, edge_index, params, *, num_layers, hidden):
    n = x_content.shape[0]
    src, dst = edge_index[0], edge_index[1]
    adj = jnp.zeros((n, n), jnp.float32).at[dst, src].add(1.0)

    c = x_content @ params["w_post"] + params["b_post"]
    s = x_style @ params["w_style"] + params["b_style"]
    x = jnp.concatenate([c, s], axis=1)
    x = jnp.pad(x, ((0, 0), (0, hidden - x.shape[1])))
    H = hidden
    for l in range(num_layers):
        m = adj @ (x @ params["ggnn_w"][l])
        gi = m @ params["gru_w_ih"] + params["gru_b_ih"]
        gh = x @ params["gru_w_hh"] + params["gru_b_hh"]
        r = jax.nn.sigmoid(gi[:, :H] + gh[:, :H])
        z = jax.nn.sigmoid(gi[:, H:2 * H] + gh[:, H:2 * H])
        nn_ = jnp.tanh(gi[:, 2 * H:] + r * gh[:, 2 * H:])
        x = (1.0 - z) * nn_ + z * x
    x = jnp.maximum(x, 0.0)
    return x @ params["w_out"] + params["b_out"]


def _init_params(key, *, num_content_feature, num_style_feature,
                 num_feature_concat, hidden, num_layers, num_classes):
    ks = jax.random.split(key, 12)
    sc = 0.1
    return {
        "w_post": sc * jax.random.normal(ks[0], (num_content_feature, num_feature_concat), jnp.float32),
        "b_post": sc * jax.random.normal(ks[1], (1, num_feature_concat), jnp.float32),
        "w_style": sc * jax.random.normal(ks[2], (num_style_feature, num_feature_concat), jnp.float32),
        "b_style": sc * jax.random.normal(ks[3], (1, num_feature_concat), jnp.float32),
        "ggnn_w": sc * jax.random.normal(ks[4], (num_layers, hidden, hidden), jnp.float32),
        "gru_w_ih": sc * jax.random.normal(ks[5], (hidden, 3 * hidden), jnp.float32),
        "gru_w_hh": sc * jax.random.normal(ks[6], (hidden, 3 * hidden), jnp.float32),
        "gru_b_ih": sc * jax.random.normal(ks[7], (1, 3 * hidden), jnp.float32),
        "gru_b_hh": sc * jax.random.normal(ks[8], (1, 3 * hidden), jnp.float32),
        "w_out": sc * jax.random.normal(ks[9], (hidden, num_classes), jnp.float32),
        "b_out": sc * jax.random.normal(ks[10], (1, num_classes), jnp.float32),
    }


if __name__ == "__main__":
    NUM_LAYERS = 2
    HIDDEN = 32              # hidden_channels_2
    NUM_FEATURE_CONCAT = 8   # -> concat width 16 <= HIDDEN (GatedGraphConv requirement)
    NUM_CONTENT_FEATURE = 16
    NUM_STYLE_FEATURE = 16
    NUM_CLASSES = 2
    N_NODES = 8
    N_EDGES = 16

    key = jax.random.PRNGKey(0)
    k_c, k_s, k_e, k_t, k_p = jax.random.split(key, 5)

    x_content = jax.random.normal(k_c, (N_NODES, NUM_CONTENT_FEATURE), jnp.float32)
    x_style = jax.random.normal(k_s, (N_NODES, NUM_STYLE_FEATURE), jnp.float32)
    edge_index = jax.random.randint(k_e, (2, N_EDGES), 0, N_NODES, dtype=jnp.int32)
    edge_type = jax.random.randint(k_t, (N_EDGES,), 0, 3, dtype=jnp.int32)  # unused in forward

    params = _init_params(
        k_p,
        num_content_feature=NUM_CONTENT_FEATURE,
        num_style_feature=NUM_STYLE_FEATURE,
        num_feature_concat=NUM_FEATURE_CONCAT,
        hidden=HIDDEN,
        num_layers=NUM_LAYERS,
        num_classes=NUM_CLASSES,
    )

    # fused single-call path (the default for small/medium graphs)
    out_fused = fake_news_model_gated(
        x_content, x_style, edge_index, edge_type, params,
        num_layers=NUM_LAYERS, hidden=HIDDEN)
    out_fused = jax.block_until_ready(out_fused)

    # streaming (tiled) path, forced, to exercise the src-accumulation grid
    out_tiled = fake_news_model_gated(
        x_content, x_style, edge_index, edge_type, params,
        num_layers=NUM_LAYERS, hidden=HIDDEN, force_tiled=True)
    out_tiled = jax.block_until_ready(out_tiled)

    ref = _reference(x_content, x_style, edge_index, params,
                     num_layers=NUM_LAYERS, hidden=HIDDEN)

    assert out_fused.shape == (N_NODES, NUM_CLASSES)
    assert out_tiled.shape == (N_NODES, NUM_CLASSES)
    # bf16 MXU operands (with f32 accumulation) vs. an all-f32 reference:
    # tolerance loosened accordingly (see perf-review correctness note).
    tol = dict(atol=3e-2, rtol=3e-2)
    assert jnp.allclose(out_fused, ref, **tol), "fused path mismatch vs JAX reference"
    assert jnp.allclose(out_tiled, ref, **tol), "tiled path mismatch vs JAX reference"

    print("KERNEL_OK")
</pallas_src>

<mosaic_0001>
module attributes {stable_mosaic.version = 11 : i64} {
  func.func @_fused_kernel(%arg0: i32, %arg1: memref<128x32xf32, #tpu.memory_space<vmem>>, %arg2: memref<32x128xf32, #tpu.memory_space<vmem>>, %arg3: memref<1x128xf32, #tpu.memory_space<vmem>>, %arg4: memref<128x128xbf16, #tpu.memory_space<vmem>>, %arg5: memref<2x128x384xbf16, #tpu.memory_space<vmem>>, %arg6: memref<128x384xbf16, #tpu.memory_space<vmem>>, %arg7: memref<1x384xf32, #tpu.memory_space<vmem>>, %arg8: memref<1x384xf32, #tpu.memory_space<vmem>>, %arg9: memref<128x128xf32, #tpu.memory_space<vmem>>, %arg10: memref<1x128xf32, #tpu.memory_space<vmem>>, %arg11: memref<128x128xf32, #tpu.memory_space<vmem>>) attributes {dimension_semantics = [#tpu.dimension_semantics<arbitrary>], iteration_bounds = array<i64: 1>, scalar_prefetch = 0 : i64, scratch_operands = 0 : i64, tpu.core_type = #tpu.core_type<tc>, window_params = [{pipeline_mode = #tpu.pipeline_mode<synchronous>, transform_indices = @transform_0, window_bounds = array<i64: 128, 32>}, {pipeline_mode = #tpu.pipeline_mode<synchronous>, transform_indices = @transform_1, window_bounds = array<i64: 32, 128>}, {pipeline_mode = #tpu.pipeline_mode<synchronous>, transform_indices = @transform_2, window_bounds = array<i64: 1, 128>}, {pipeline_mode = #tpu.pipeline_mode<synchronous>, transform_indices = @transform_3, window_bounds = array<i64: 128, 128>}, {pipeline_mode = #tpu.pipeline_mode<synchronous>, transform_indices = @transform_4, window_bounds = array<i64: 2, 128, 384>}, {pipeline_mode = #tpu.pipeline_mode<synchronous>, transform_indices = @transform_5, window_bounds = array<i64: 128, 384>}, {pipeline_mode = #tpu.pipeline_mode<synchronous>, transform_indices = @transform_6, window_bounds = array<i64: 1, 384>}, {pipeline_mode = #tpu.pipeline_mode<synchronous>, transform_indices = @transform_7, window_bounds = array<i64: 1, 384>}, {pipeline_mode = #tpu.pipeline_mode<synchronous>, transform_indices = @transform_8, window_bounds = array<i64: 128, 128>}, {pipeline_mode = #tpu.pipeline_mode<synchronous>, transform_indices = @transform_9, window_bounds = array<i64: 1, 128>}, {pipeline_mode = #tpu.pipeline_mode<synchronous>, transform_indices = @transform_10, window_bounds = array<i64: 128, 128>}]} {
    %c0 = arith.constant 0 : index
    %c0_0 = arith.constant 0 : index
    %0 = vector.load %arg1[%c0, %c0_0] : memref<128x32xf32, #tpu.memory_space<vmem>>, vector<128x32xf32>
    %c0_1 = arith.constant 0 : index
    %c0_2 = arith.constant 0 : index
    %1 = vector.load %arg2[%c0_1, %c0_2] : memref<32x128xf32, #tpu.memory_space<vmem>>, vector<32x128xf32>
    %cst = arith.constant dense<0.000000e+00> : vector<128x128xf32>
    %2 = tpu.matmul %0, %1, %cst {dimension_numbers = #tpu.dot_dimension_numbers<[1], [0], [0], [1], [0, 0, 1, 1], [], []>} : vector<128x32xf32>, vector<32x128xf32>, vector<128x128xf32> -> vector<128x128xf32>
    %c0_3 = arith.constant 0 : index
    %c0_4 = arith.constant 0 : index
    %3 = vector.load %arg3[%c0_3, %c0_4] : memref<1x128xf32, #tpu.memory_space<vmem>>, vector<1x128xf32>
    %4 = vector.broadcast %3 : vector<1x128xf32> to vector<128x128xf32>
    %5 = arith.addf %2, %4 : vector<128x128xf32>
    %c0_5 = arith.constant 0 : index
    %c0_6 = arith.constant 0 : index
    %6 = vector.load %arg4[%c0_5, %c0_6] : memref<128x128xbf16, #tpu.memory_space<vmem>>, vector<128x128xbf16>
    %c0_7 = arith.constant 0 : index
    %c0_8 = arith.constant 0 : index
    %7 = vector.load %arg6[%c0_7, %c0_8] : memref<128x384xbf16, #tpu.memory_space<vmem>>, vector<128x384xbf16>
    %c0_9 = arith.constant 0 : index
    %c0_10 = arith.constant 0 : index
    %8 = vector.load %arg7[%c0_9, %c0_10] : memref<1x384xf32, #tpu.memory_space<vmem>>, vector<1x384xf32>
    %c0_11 = arith.constant 0 : index
    %c0_12 = arith.constant 0 : index
    %9 = vector.load %arg8[%c0_11, %c0_12] : memref<1x384xf32, #tpu.memory_space<vmem>>, vector<1x384xf32>
    %10 = arith.truncf %5 : vector<128x128xf32> to vector<128x128xbf16>
    %cst_13 = arith.constant dense<0.000000e+00> : vector<128x128xf32>
    %11 = tpu.matmul %6, %10, %cst_13 {dimension_numbers = #tpu.dot_dimension_numbers<[1], [0], [0], [1], [0, 0, 1, 1], [], []>} : vector<128x128xbf16>, vector<128x128xbf16>, vector<128x128xf32> -> vector<128x128xf32>
    %12 = arith.truncf %11 : vector<128x128xf32> to vector<128x128xbf16>
    %c0_14 = arith.constant 0 : index
    %c0_15 = arith.constant 0 : index
    %c0_16 = arith.constant 0 : index
    %13 = vector.load %arg5[%c0_14, %c0_15, %c0_16] : memref<2x128x384xbf16, #tpu.memory_space<vmem>>, vector<1x128x384xbf16>
    %14 = vector.shape_cast %13 : vector<1x128x384xbf16> to vector<128x384xbf16>
    %cst_17 = arith.constant dense<0.000000e+00> : vector<128x384xf32>
    %15 = tpu.matmul %12, %14, %cst_17 {dimension_numbers = #tpu.dot_dimension_numbers<[1], [0], [0], [1], [0, 0, 1, 1], [], []>} : vector<128x128xbf16>, vector<128x384xbf16>, vector<128x384xf32> -> vector<128x384xf32>
    %16 = vector.broadcast %8 : vector<1x384xf32> to vector<128x384xf32>
    %17 = arith.addf %15, %16 : vector<128x384xf32>
    %18 = arith.truncf %5 : vector<128x128xf32> to vector<128x128xbf16>
    %cst_18 = arith.constant dense<0.000000e+00> : vector<128x384xf32>
    %19 = tpu.matmul %18, %7, %cst_18 {dimension_numbers = #tpu.dot_dimension_numbers<[1], [0], [0], [1], [0, 0, 1, 1], [], []>} : vector<128x128xbf16>, vector<128x384xbf16>, vector<128x384xf32> -> vector<128x384xf32>
    %20 = vector.broadcast %9 : vector<1x384xf32> to vector<128x384xf32>
    %21 = arith.addf %19, %20 : vector<128x384xf32>
    %22 = vector.extract_strided_slice %17 {offsets = [0, 0], sizes = [128, 128], strides = [1, 1]} : vector<128x384xf32> to vector<128x128xf32>
    %23 = vector.extract_strided_slice %21 {offsets = [0, 0], sizes = [128, 128], strides = [1, 1]} : vector<128x384xf32> to vector<128x128xf32>
    %24 = arith.addf %22, %23 : vector<128x128xf32>
    %25 = arith.negf %24 : vector<128x128xf32>
    %26 = math.exp %25 : vector<128x128xf32>
    %cst_19 = arith.constant 1.000000e+00 : f32
    %27 = vector.broadcast %cst_19 : f32 to vector<128x128xf32>
    %28 = arith.addf %27, %26 : vector<128x128xf32>
    %29 = arith.divf %27, %28 : vector<128x128xf32>
    %30 = vector.extract_strided_slice %17 {offsets = [0, 128], sizes = [128, 128], strides = [1, 1]} : vector<128x384xf32> to vector<128x128xf32>
    %31 = vector.extract_strided_slice %21 {offsets = [0, 128], sizes = [128, 128], strides = [1, 1]} : vector<128x384xf32> to vector<128x128xf32>
    %32 = arith.addf %30, %31 : vector<128x128xf32>
    %33 = arith.negf %32 : vector<128x128xf32>
    %34 = math.exp %33 : vector<128x128xf32>
    %cst_20 = arith.constant 1.000000e+00 : f32
    %35 = vector.broadcast %cst_20 : f32 to vector<128x128xf32>
    %36 = arith.addf %35, %34 : vector<128x128xf32>
    %37 = arith.divf %35, %36 : vector<128x128xf32>
    %38 = vector.extract_strided_slice %17 {offsets = [0, 256], sizes = [128, 128], strides = [1, 1]} : vector<128x384xf32> to vector<128x128xf32>
    %39 = vector.extract_strided_slice %21 {offsets = [0, 256], sizes = [128, 128], strides = [1, 1]} : vector<128x384xf32> to vector<128x128xf32>
    %40 = arith.mulf %29, %39 : vector<128x128xf32>
    %41 = arith.addf %38, %40 : vector<128x128xf32>
    %42 = math.tanh %41 : vector<128x128xf32>
    %cst_21 = arith.constant 1.000000e+00 : f32
    %43 = vector.broadcast %cst_21 : f32 to vector<128x128xf32>
    %44 = arith.subf %43, %37 : vector<128x128xf32>
    %45 = arith.mulf %44, %42 : vector<128x128xf32>
    %46 = arith.mulf %37, %5 : vector<128x128xf32>
    %47 = arith.addf %45, %46 : vector<128x128xf32>
    %48 = arith.truncf %47 : vector<128x128xf32> to vector<128x128xbf16>
    %cst_22 = arith.constant dense<0.000000e+00> : vector<128x128xf32>
    %49 = tpu.matmul %6, %48, %cst_22 {dimension_numbers = #tpu.dot_dimension_numbers<[1], [0], [0], [1], [0, 0, 1, 1], [], []>} : vector<128x128xbf16>, vector<128x128xbf16>, vector<128x128xf32> -> vector<128x128xf32>
    %50 = arith.truncf %49 : vector<128x128xf32> to vector<128x128xbf16>
    %c1 = arith.constant 1 : index
    %c0_23 = arith.constant 0 : index
    %c0_24 = arith.constant 0 : index
    %51 = vector.load %arg5[%c1, %c0_23, %c0_24] : memref<2x128x384xbf16, #tpu.memory_space<vmem>>, vector<1x128x384xbf16>
    %52 = vector.shape_cast %51 : vector<1x128x384xbf16> to vector<128x384xbf16>
    %cst_25 = arith.constant dense<0.000000e+00> : vector<128x384xf32>
    %53 = tpu.matmul %50, %52, %cst_25 {dimension_numbers = #tpu.dot_dimension_numbers<[1], [0], [0], [1], [0, 0, 1, 1], [], []>} : vector<128x128xbf16>, vector<128x384xbf16>, vector<128x384xf32> -> vector<128x384xf32>
    %54 = vector.broadcast %8 : vector<1x384xf32> to vector<128x384xf32>
    %55 = arith.addf %53, %54 : vector<128x384xf32>
    %56 = arith.truncf %47 : vector<128x128xf32> to vector<128x128xbf16>
    %cst_26 = arith.constant dense<0.000000e+00> : vector<128x384xf32>
    %57 = tpu.matmul %56, %7, %cst_26 {dimension_numbers = #tpu.dot_dimension_numbers<[1], [0], [0], [1], [0, 0, 1, 1], [], []>} : vector<128x128xbf16>, vector<128x384xbf16>, vector<128x384xf32> -> vector<128x384xf32>
    %58 = vector.broadcast %9 : vector<1x384xf32> to vector<128x384xf32>
    %59 = arith.addf %57, %58 : vector<128x384xf32>
    %60 = vector.extract_strided_slice %55 {offsets = [0, 0], sizes = [128, 128], strides = [1, 1]} : vector<128x384xf32> to vector<128x128xf32>
    %61 = vector.extract_strided_slice %59 {offsets = [0, 0], sizes = [128, 128], strides = [1, 1]} : vector<128x384xf32> to vector<128x128xf32>
    %62 = arith.addf %60, %61 : vector<128x128xf32>
    %63 = arith.negf %62 : vector<128x128xf32>
    %64 = math.exp %63 : vector<128x128xf32>
    %cst_27 = arith.constant 1.000000e+00 : f32
    %65 = vector.broadcast %cst_27 : f32 to vector<128x128xf32>
    %66 = arith.addf %65, %64 : vector<128x128xf32>
    %67 = arith.divf %65, %66 : vector<128x128xf32>
    %68 = vector.extract_strided_slice %55 {offsets = [0, 128], sizes = [128, 128], strides = [1, 1]} : vector<128x384xf32> to vector<128x128xf32>
    %69 = vector.extract_strided_slice %59 {offsets = [0, 128], sizes = [128, 128], strides = [1, 1]} : vector<128x384xf32> to vector<128x128xf32>
    %70 = arith.addf %68, %69 : vector<128x128xf32>
    %71 = arith.negf %70 : vector<128x128xf32>
    %72 = math.exp %71 : vector<128x128xf32>
    %cst_28 = arith.constant 1.000000e+00 : f32
    %73 = vector.broadcast %cst_28 : f32 to vector<128x128xf32>
    %74 = arith.addf %73, %72 : vector<128x128xf32>
    %75 = arith.divf %73, %74 : vector<128x128xf32>
    %76 = vector.extract_strided_slice %55 {offsets = [0, 256], sizes = [128, 128], strides = [1, 1]} : vector<128x384xf32> to vector<128x128xf32>
    %77 = vector.extract_strided_slice %59 {offsets = [0, 256], sizes = [128, 128], strides = [1, 1]} : vector<128x384xf32> to vector<128x128xf32>
    %78 = arith.mulf %67, %77 : vector<128x128xf32>
    %79 = arith.addf %76, %78 : vector<128x128xf32>
    %80 = math.tanh %79 : vector<128x128xf32>
    %cst_29 = arith.constant 1.000000e+00 : f32
    %81 = vector.broadcast %cst_29 : f32 to vector<128x128xf32>
    %82 = arith.subf %81, %75 : vector<128x128xf32>
    %83 = arith.mulf %82, %80 : vector<128x128xf32>
    %84 = arith.mulf %75, %47 : vector<128x128xf32>
    %85 = arith.addf %83, %84 : vector<128x128xf32>
    %cst_30 = arith.constant 0.000000e+00 : f32
    %86 = vector.broadcast %cst_30 : f32 to vector<128x128xf32>
    %87 = arith.maximumf %85, %86 : vector<128x128xf32>
    %c0_31 = arith.constant 0 : index
    %c0_32 = arith.constant 0 : index
    %88 = vector.load %arg9[%c0_31, %c0_32] : memref<128x128xf32, #tpu.memory_space<vmem>>, vector<128x128xf32>
    %cst_33 = arith.constant dense<0.000000e+00> : vector<128x128xf32>
    %89 = tpu.matmul %87, %88, %cst_33 {dimension_numbers = #tpu.dot_dimension_numbers<[1], [0], [0], [1], [0, 0, 1, 1], [], []>} : vector<128x128xf32>, vector<128x128xf32>, vector<128x128xf32> -> vector<128x128xf32>
    %c0_34 = arith.constant 0 : index
    %c0_35 = arith.constant 0 : index
    %90 = vector.load %arg10[%c0_34, %c0_35] : memref<1x128xf32, #tpu.memory_space<vmem>>, vector<1x128xf32>
    %91 = vector.broadcast %90 : vector<1x128xf32> to vector<128x128xf32>
    %92 = arith.addf %89, %91 : vector<128x128xf32>
    %c0_36 = arith.constant 0 : index
    %c0_37 = arith.constant 0 : index
    %93 = vector.load %arg11[%c0_36, %c0_37] : memref<128x128xf32, #tpu.memory_space<vmem>>, vector<128x128xf32>
    tpu.vector_store %arg11[%c0_36, %c0_37], %92 {strides = array<i32>} : memref<128x128xf32, #tpu.memory_space<vmem>>, vector<128x128xf32>,
    return
  }
  func.func @transform_0(%arg0: i32) -> (i32, i32) {
    %c0_i32 = arith.constant 0 : i32
    %c0_i32_0 = arith.constant 0 : i32
    %c0_i32_1 = arith.constant 0 : i32
    return %c0_i32, %c0_i32_0 : i32, i32
  }
  func.func @transform_1(%arg0: i32) -> (i32, i32) {
    %c0_i32 = arith.constant 0 : i32
    %c0_i32_0 = arith.constant 0 : i32
    %c0_i32_1 = arith.constant 0 : i32
    return %c0_i32, %c0_i32_0 : i32, i32
  }
  func.func @transform_2(%arg0: i32) -> (i32, i32) {
    %c0_i32 = arith.constant 0 : i32
    %c0_i32_0 = arith.constant 0 : i32
    %c0_i32_1 = arith.constant 0 : i32
    return %c0_i32, %c0_i32_0 : i32, i32
  }
  func.func @transform_3(%arg0: i32) -> (i32, i32) {
    %c0_i32 = arith.constant 0 : i32
    %c0_i32_0 = arith.constant 0 : i32
    %c0_i32_1 = arith.constant 0 : i32
    return %c0_i32, %c0_i32_0 : i32, i32
  }
  func.func @transform_4(%arg0: i32) -> (i32, i32, i32) {
    %c0_i32 = arith.constant 0 : i32
    %c0_i32_0 = arith.constant 0 : i32
    %c0_i32_1 = arith.constant 0 : i32
    %c0_i32_2 = arith.constant 0 : i32
    return %c0_i32, %c0_i32_0, %c0_i32_1 : i32, i32, i32
  }
  func.func @transform_5(%arg0: i32) -> (i32, i32) {
    %c0_i32 = arith.constant 0 : i32
    %c0_i32_0 = arith.constant 0 : i32
    %c0_i32_1 = arith.constant 0 : i32
    return %c0_i32, %c0_i32_0 : i32, i32
  }
  func.func @transform_6(%arg0: i32) -> (i32, i32) {
    %c0_i32 = arith.constant 0 : i32
    %c0_i32_0 = arith.constant 0 : i32
    %c0_i32_1 = arith.constant 0 : i32
    return %c0_i32, %c0_i32_0 : i32, i32
  }
  func.func @transform_7(%arg0: i32) -> (i32, i32) {
    %c0_i32 = arith.constant 0 : i32
    %c0_i32_0 = arith.constant 0 : i32
    %c0_i32_1 = arith.constant 0 : i32
    return %c0_i32, %c0_i32_0 : i32, i32
  }
  func.func @transform_8(%arg0: i32) -> (i32, i32) {
    %c0_i32 = arith.constant 0 : i32
    %c0_i32_0 = arith.constant 0 : i32
    %c0_i32_1 = arith.constant 0 : i32
    return %c0_i32, %c0_i32_0 : i32, i32
  }
  func.func @transform_9(%arg0: i32) -> (i32, i32) {
    %c0_i32 = arith.constant 0 : i32
    %c0_i32_0 = arith.constant 0 : i32
    %c0_i32_1 = arith.constant 0 : i32
    return %c0_i32, %c0_i32_0 : i32, i32
  }
  func.func @transform_10(%arg0: i32) -> (i32, i32) {
    %c0_i32 = arith.constant 0 : i32
    %c0_i32_0 = arith.constant 0 : i32
    %c0_i32_1 = arith.constant 0 : i32
    return %c0_i32, %c0_i32_0 : i32, i32
  }
}

</mosaic_0001>

<llo_original>
// kernel: tpu_custom_call.1
$region0: #{tpu_custom_call.1}
  #allocation0 [shape = 'u32[]', space=smem, size = 0x4, offset = 0x4, fixed_abs, tag = 'smem constant byte address 0x4 - core index']
  #allocation1 [shape = 'u32[72,128]{1,0:T(1,128)}', space=vmem, size = 0x9000, scoped, tag = 'internal scratch']
  %s0 = inlined_call_operand.vmem [shape: f32[128,32], index: 0, kind: input, shape index: {}]
  %s1 = inlined_call_operand.vmem [shape: f32[32,128], index: 1, kind: input, shape index: {}]
  %s2 = inlined_call_operand.vmem [shape: f32[1,128], index: 2, kind: input, shape index: {}]
  %s3 = inlined_call_operand.hbm [shape: bf16[128,128], index: 3, kind: input, shape index: {}]
  %s4 = inlined_call_operand.hbm [shape: bf16[2,128,384], index: 4, kind: input, shape index: {}]
  %s5 = inlined_call_operand.hbm [shape: bf16[128,384], index: 5, kind: input, shape index: {}]
  %s6 = inlined_call_operand.vmem [shape: f32[1,384], index: 6, kind: input, shape index: {}]
  %s7 = inlined_call_operand.vmem [shape: f32[1,384], index: 7, kind: input, shape index: {}]
  %s8 = inlined_call_operand.vmem [shape: f32[128,128], index: 8, kind: input, shape index: {}]
  %s9 = inlined_call_operand.hbm [shape: f32[1,128], index: 9, kind: input, shape index: {}]
  %s10 = inlined_call_operand.hbm [shape: f32[128,128], index: 10, kind: output, shape index: {}]
  %s11 = sld [smem:[#allocation0]]
  $region66: #{tpu_custom_call.1} parent=0
    _
  %s13 = ssub.s32 1, %s11
  %s14 = scalar_select 0, %s13, %s11
  $region1: #{tpu_custom_call.1} parent=0
    #allocation2 [shape = 'u8[32768]{0}', space=vmem, size = 0x8000, scoped, tag = 'input window, operand 3, single buffered']
    #allocation3 [shape = 's32[1]{0}', space=sflag, size = 0x4, scoped, tag = 'scoped memory for tpu_custom_call.1']
    #allocation4 [shape = 's32[1]{0}', space=sflag, size = 0x4, scoped, tag = 'scoped memory for tpu_custom_call.1']
    #allocation5 [shape = 'u8[196608]{0}', space=vmem, size = 0x30000, scoped, tag = 'input window, operand 4, single buffered']
    #allocation6 [shape = 's32[1]{0}', space=sflag, size = 0x4, scoped, tag = 'scoped memory for tpu_custom_call.1']
    #allocation7 [shape = 'u8[98304]{0}', space=vmem, size = 0x18000, scoped, tag = 'input window, operand 5, single buffered']
    #allocation8 [shape = 'u8[512]{0}', space=vmem, size = 0x400, scoped, tag = 'input window, operand 9, single buffered']
    #allocation9 [shape = 's32[1]{0}', space=sflag, size = 0x4, scoped, tag = 'scoped memory for tpu_custom_call.1']
    #allocation10 [shape = 'u8[65536]{0}', space=vmem, size = 0x10000, scoped, tag = 'output window, operand 0, single buffered']
    %15 = vsyncpa [#allocation3], 0
    %16 = vsyncpa [#allocation6], 0
    %17 = vsyncpa [#allocation9], 0
    %18 = vsyncpa [#allocation4], 0
    // Predicated region
    $region2: #{tpu_custom_call.1} parent=1 // pred_check
      _
    $region3: #{tpu_custom_call.1} parent=1 // pred_check_branch
      %20 = sbr.rel (0) target = $region5
    $region4: #{tpu_custom_call.1} parent=1 // pred_region
      _
    $region5: #{tpu_custom_call.1} parent=1 // pred_fallthru
      _
    // Predicated region
    $region6: #{tpu_custom_call.1} parent=1 // pred_check
      _
    $region7: #{tpu_custom_call.1} parent=1 // pred_check_branch
      %22 = sbr.rel (0) target = $region9
    $region8: #{tpu_custom_call.1} parent=1 // pred_region
      _
    $region9: #{tpu_custom_call.1} parent=1 // pred_fallthru
      _
    // Predicated region
    $region10: #{tpu_custom_call.1} parent=1 // pred_check
      _
    $region11: #{tpu_custom_call.1} parent=1 // pred_check_branch
      %24 = sbr.rel (0) target = $region13
    $region12: #{tpu_custom_call.1} parent=1 // pred_region
      _
    $region13: #{tpu_custom_call.1} parent=1 // pred_fallthru
      _
    // Predicated region
    $region14: #{tpu_custom_call.1} parent=1 // pred_check
      _
    $region15: #{tpu_custom_call.1} parent=1 // pred_check_branch
      %26 = sbr.rel (0) target = $region17
    $region16: #{tpu_custom_call.1} parent=1 // pred_region
      %28 = vsyncadd [#allocation3], 0
      %s29 = sshll.u32 %s3, 4
      %s30 = int_to_ptr.hbm [resolvable:$true] %s29
      %s31 = sshll.u32 [#allocation2], 4
      %s32 = int_to_ptr.vmem [resolvable:$true] %s31
      %37 = dma.hbm_to_vmem [thread:$0]  %s30, 1024, %s32, [#allocation3], 64, 64, 4
    $region17: #{tpu_custom_call.1} parent=1 // pred_fallthru
      _
    // Predicated region
    $region18: #{tpu_custom_call.1} parent=1 // pred_check
      _
    $region19: #{tpu_custom_call.1} parent=1 // pred_check_branch
      %39 = sbr.rel (0) target = $region21
    $region20: #{tpu_custom_call.1} parent=1 // pred_region
      %41 = vsyncadd [#allocation6], 0
      %s42 = sshll.u32 %s4, 4
      %s43 = int_to_ptr.hbm [resolvable:$true] %s42
      %s44 = sshll.u32 [#allocation5], 4
      %s45 = int_to_ptr.vmem [resolvable:$true] %s44
      %50 = dma.hbm_to_vmem [thread:$0]  %s43, 6144, %s45, [#allocation6], 192, 192, 12
    $region21: #{tpu_custom_call.1} parent=1 // pred_fallthru
      _
    // Predicated region
    $region22: #{tpu_custom_call.1} parent=1 // pred_check
      _
    $region23: #{tpu_custom_call.1} parent=1 // pred_check_branch
      %52 = sbr.rel (0) target = $region25
    $region24: #{tpu_custom_call.1} parent=1 // pred_region
      %54 = vsyncadd [#allocation6], 0
      %s55 = sshll.u32 %s5, 4
      %s56 = int_to_ptr.hbm [resolvable:$true] %s55
      %s57 = sshll.u32 [#allocation7], 4
      %s58 = int_to_ptr.vmem [resolvable:$true] %s57
      %63 = dma.hbm_to_vmem [thread:$0]  %s56, 3072, %s58, [#allocation6], 192, 192, 12
    $region25: #{tpu_custom_call.1} parent=1 // pred_fallthru
      _
    // Predicated region
    $region26: #{tpu_custom_call.1} parent=1 // pred_check
      _
    $region27: #{tpu_custom_call.1} parent=1 // pred_check_branch
      %65 = sbr.rel (0) target = $region29
    $region28: #{tpu_custom_call.1} parent=1 // pred_region
      _
    $region29: #{tpu_custom_call.1} parent=1 // pred_fallthru
      _
    // Predicated region
    $region30: #{tpu_custom_call.1} parent=1 // pred_check
      _
    $region31: #{tpu_custom_call.1} parent=1 // pred_check_branch
      %67 = sbr.rel (0) target = $region33
    $region32: #{tpu_custom_call.1} parent=1 // pred_region
      _
    $region33: #{tpu_custom_call.1} parent=1 // pred_fallthru
      _
    // Predicated region
    $region34: #{tpu_custom_call.1} parent=1 // pred_check
      _
    $region35: #{tpu_custom_call.1} parent=1 // pred_check_branch
      %69 = sbr.rel (0) target = $region37
    $region36: #{tpu_custom_call.1} parent=1 // pred_region
      _
    $region37: #{tpu_custom_call.1} parent=1 // pred_fallthru
      _
    // Predicated region
    $region38: #{tpu_custom_call.1} parent=1 // pred_check
      _
    $region39: #{tpu_custom_call.1} parent=1 // pred_check_branch
      %71 = sbr.rel (0) target = $region41
    $region40: #{tpu_custom_call.1} parent=1 // pred_region
      %73 = vsyncadd [#allocation9], 0
      %s75 = sshll.u32 %s9, 4
      %s76 = int_to_ptr.hbm [resolvable:$true] %s75
      %s77 = sshll.u32 [#allocation8], 4
      %s78 = int_to_ptr.vmem [resolvable:$true] %s77
      %80 = dma.hbm_to_vmem [thread:$0]  %s76, 16, %s78, [#allocation9]
    $region41: #{tpu_custom_call.1} parent=1 // pred_fallthru
      _
    // Predicated region
    $region42: #{tpu_custom_call.1} parent=1 // pred_check
      _
    $region43: #{tpu_custom_call.1} parent=1 // pred_check_branch
      %82 = sbr.rel (0) target = $region45
    $region44: #{tpu_custom_call.1} parent=1 // pred_region
      %84 = dma.done [#allocation3], 1024
    $region45: #{tpu_custom_call.1} parent=1 // pred_fallthru
      _
    // Predicated region
    $region46: #{tpu_custom_call.1} parent=1 // pred_check
      _
    $region47: #{tpu_custom_call.1} parent=1 // pred_check_branch
      %86 = sbr.rel (0) target = $region49
    $region48: #{tpu_custom_call.1} parent=1 // pred_region
      %88 = dma.done [#allocation6], 6144
    $region49: #{tpu_custom_call.1} parent=1 // pred_fallthru
      _
    // Predicated region
    $region50: #{tpu_custom_call.1} parent=1 // pred_check
      _
    $region51: #{tpu_custom_call.1} parent=1 // pred_check_branch
      %90 = sbr.rel (0) target = $region53
    $region52: #{tpu_custom_call.1} parent=1 // pred_region
      %92 = dma.done [#allocation6], 3072
    $region53: #{tpu_custom_call.1} parent=1 // pred_fallthru
      _
    // Predicated region
    $region54: #{tpu_custom_call.1} parent=1 // pred_check
      _
    $region55: #{tpu_custom_call.1} parent=1 // pred_check_branch
      %94 = sbr.rel (0) target = $region57
    $region56: #{tpu_custom_call.1} parent=1 // pred_region
      %96 = dma.done [#allocation9], 16
    $region57: #{tpu_custom_call.1} parent=1 // pred_fallthru
      _
    %v97 = vld [vmem:[%s0] sm:$0xff]
    %v98 = vld [vmem:[%s0 + $0x8] sm:$0xff]
    %v99 = vld [vmem:[%s0 + $0x10] sm:$0xff]
    %v100 = vld [vmem:[%s0 + $0x18] sm:$0xff]
    %v101 = vld [vmem:[%s0 + $0x20] sm:$0xff]
    %v102 = vld [vmem:[%s0 + $0x28] sm:$0xff]
    %v103 = vld [vmem:[%s0 + $0x30] sm:$0xff]
    %v104 = vld [vmem:[%s0 + $0x38] sm:$0xff]
    %v105 = vld [vmem:[%s0 + $0x40] sm:$0xff]
    %v106 = vld [vmem:[%s0 + $0x48] sm:$0xff]
    %v107 = vld [vmem:[%s0 + $0x50] sm:$0xff]
    %v108 = vld [vmem:[%s0 + $0x58] sm:$0xff]
    %v109 = vld [vmem:[%s0 + $0x60] sm:$0xff]
    %v110 = vld [vmem:[%s0 + $0x68] sm:$0xff]
    %v111 = vld [vmem:[%s0 + $0x70] sm:$0xff]
    %v112 = vld [vmem:[%s0 + $0x78] sm:$0xff]
    %v113 = vld [vmem:[%s1] sm:$0xff]
    %v114 = vld [vmem:[%s1 + $0x8] sm:$0xff]
    %v115 = vld [vmem:[%s1 + $0x10] sm:$0xff]
    %v116 = vld [vmem:[%s1 + $0x18] sm:$0xff]
    %v117 = vld [vmem:[%s2] sm:$0x1]
    %v119 = vperm.slane %v117, 0
    %vm121 = vcmask 261120
    %v123 = vsel %vm121, %v97, 0
    %v126 = vsel %vm121, %v98, 0
    %v129 = vsel %vm121, %v99, 0
    %v132 = vsel %vm121, %v100, 0
    %v135 = vsel %vm121, %v101, 0
    %v138 = vsel %vm121, %v102, 0
    %v141 = vsel %vm121, %v103, 0
    %v144 = vsel %vm121, %v104, 0
    %v147 = vsel %vm121, %v105, 0
    %v150 = vsel %vm121, %v106, 0
    %v153 = vsel %vm121, %v107, 0
    %v156 = vsel %vm121, %v108, 0
    %v159 = vsel %vm121, %v109, 0
    %v162 = vsel %vm121, %v110, 0
    %v165 = vsel %vm121, %v111, 0
    %v168 = vsel %vm121, %v112, 0
    %170 = vmatpush.msra.mxu0 0.0
    %171 = vmatpush.msra.mxu0 0.0
    %172 = vmatpush.msra.mxu0 0.0
    %173 = vmatpush.msra.mxu0 0.0
    %174 = vmatpush.msra.mxu0 0.0
    %175 = vmatpush.msra.mxu0 0.0
    %176 = vmatpush.msra.mxu0 0.0
    %177 = vmatpush.msra.mxu0 0.0
    %178 = vmatpush.msra.mxu0 0.0
    %179 = vmatpush.msra.mxu0 0.0
    %180 = vmatpush.msra.mxu0 0.0
    %181 = vmatpush.msra.mxu0 0.0
    %182 = vmatpush.msra.mxu0 %v116
    %183 = vmatpush.msra.mxu0 %v115
    %184 = vmatpush.msra.mxu0 %v114
    %185 = vmatpush.msra.mxu0 %v113
    %186 = vmatmul.f32.gmra.mxu0 %v123
    %v187 = vpop.f32.mrf.mxu0
    %v188 = vadd.f32 %v119, %v187
    %189 = vmatmul.f32.gmra.mxu0 %v126
    %v190 = vpop.f32.mrf.mxu0
    %v191 = vadd.f32 %v119, %v190
    %192 = vmatmul.f32.gmra.mxu0 %v129
    %v193 = vpop.f32.mrf.mxu0
    %v194 = vadd.f32 %v119, %v193
    %195 = vmatmul.f32.gmra.mxu0 %v132
    %v196 = vpop.f32.mrf.mxu0
    %v197 = vadd.f32 %v119, %v196
    %198 = vmatmul.f32.gmra.mxu0 %v135
    %v199 = vpop.f32.mrf.mxu0
    %v200 = vadd.f32 %v119, %v199
    %201 = vmatmul.f32.gmra.mxu0 %v138
    %v202 = vpop.f32.mrf.mxu0
    %v203 = vadd.f32 %v119, %v202
    %204 = vmatmul.f32.gmra.mxu0 %v141
    %v205 = vpop.f32.mrf.mxu0
    %v206 = vadd.f32 %v119, %v205
    %207 = vmatmul.f32.gmra.mxu0 %v144
    %v208 = vpop.f32.mrf.mxu0
    %v209 = vadd.f32 %v119, %v208
    %210 = vmatmul.f32.gmra.mxu0 %v147
    %v211 = vpop.f32.mrf.mxu0
    %v212 = vadd.f32 %v119, %v211
    %213 = vmatmul.f32.gmra.mxu0 %v150
    %v214 = vpop.f32.mrf.mxu0
    %v215 = vadd.f32 %v119, %v214
    %216 = vmatmul.f32.gmra.mxu0 %v153
    %v217 = vpop.f32.mrf.mxu0
    %v218 = vadd.f32 %v119, %v217
    %219 = vmatmul.f32.gmra.mxu0 %v156
    %v220 = vpop.f32.mrf.mxu0
    %v221 = vadd.f32 %v119, %v220
    %222 = vmatmul.f32.gmra.mxu0 %v159
    %v223 = vpop.f32.mrf.mxu0
    %v224 = vadd.f32 %v119, %v223
    %225 = vmatmul.f32.gmra.mxu0 %v162
    %v226 = vpop.f32.mrf.mxu0
    %v227 = vadd.f32 %v119, %v226
    %228 = vmatmul.f32.gmra.mxu0 %v165
    %v229 = vpop.f32.mrf.mxu0
    %v230 = vadd.f32 %v119, %v229
    %231 = vmatmul.f32.gmra.mxu0 %v168
    %v232 = vpop.f32.mrf.mxu0
    %v233 = vadd.f32 %v119, %v232
    %234 = vdwg.mxu0
    %v235 = vld [vmem:[#allocation2] sm:$0xf]
    %v236 = vld [vmem:[#allocation2 + $0x4] sm:$0xf]
    %v237 = vld [vmem:[#allocation2 + $0x8] sm:$0xf]
    %v238 = vld [vmem:[#allocation2 + $0xc] sm:$0xf]
    %v239 = vld [vmem:[#allocation2 + $0x10] sm:$0xf]
    %v240 = vld [vmem:[#allocation2 + $0x14] sm:$0xf]
    %v241 = vld [vmem:[#allocation2 + $0x18] sm:$0xf]
    %v242 = vld [vmem:[#allocation2 + $0x1c] sm:$0xf]
    %v243 = vld [vmem:[#allocation2 + $0x20] sm:$0xf]
    %v244 = vld [vmem:[#allocation2 + $0x24] sm:$0xf]
    %v245 = vld [vmem:[#allocation2 + $0x28] sm:$0xf]
    %v246 = vld [vmem:[#allocation2 + $0x2c] sm:$0xf]
    %v247 = vld [vmem:[#allocation2 + $0x30] sm:$0xf]
    %v248 = vld [vmem:[#allocation2 + $0x34] sm:$0xf]
    %v249 = vld [vmem:[#allocation2 + $0x38] sm:$0xf]
    %v250 = vld [vmem:[#allocation2 + $0x3c] sm:$0xf]
    %v251 = vld [vmem:[#allocation7] sm:$0xff]
    %v252 = vld [vmem:[#allocation7 + $0x8] sm:$0xf]
    %v253 = vld [vmem:[#allocation7 + $0xc] sm:$0xff]
    %v254 = vld [vmem:[#allocation7 + $0x14] sm:$0xf]
    %v255 = vld [vmem:[#allocation7 + $0x18] sm:$0xff]
    %v256 = vld [vmem:[#allocation7 + $0x20] sm:$0xf]
    %v257 = vld [vmem:[#allocation7 + $0x24] sm:$0xff]
    %v258 = vld [vmem:[#allocation7 + $0x2c] sm:$0xf]
    %v259 = vld [vmem:[#allocation7 + $0x30] sm:$0xff]
    %v260 = vld [vmem:[#allocation7 + $0x38] sm:$0xf]
    %v261 = vld [vmem:[#allocation7 + $0x3c] sm:$0xff]
    %v262 = vld [vmem:[#allocation7 + $0x44] sm:$0xf]
    %v263 = vld [vmem:[#allocation7 + $0x48] sm:$0xff]
    %v264 = vld [vmem:[#allocation7 + $0x50] sm:$0xf]
    %v265 = vld [vmem:[#allocation7 + $0x54] sm:$0xff]
    %v266 = vld [vmem:[#allocation7 + $0x5c] sm:$0xf]
    %v267 = vld [vmem:[#allocation7 + $0x60] sm:$0xff]
    %v268 = vld [vmem:[#allocation7 + $0x68] sm:$0xf]
    %v269 = vld [vmem:[#allocation7 + $0x6c] sm:$0xff]
    %v270 = vld [vmem:[#allocation7 + $0x74] sm:$0xf]
    %v271 = vld [vmem:[#allocation7 + $0x78] sm:$0xff]
    %v272 = vld [vmem:[#allocation7 + $0x80] sm:$0xf]
    %v273 = vld [vmem:[#allocation7 + $0x84] sm:$0xff]
    %v274 = vld [vmem:[#allocation7 + $0x8c] sm:$0xf]
    %v275 = vld [vmem:[#allocation7 + $0x90] sm:$0xff]
    %v276 = vld [vmem:[#allocation7 + $0x98] sm:$0xf]
    %v277 = vld [vmem:[#allocation7 + $0x9c] sm:$0xff]
    %v278 = vld [vmem:[#allocation7 + $0xa4] sm:$0xf]
    %v279 = vld [vmem:[#allocation7 + $0xa8] sm:$0xff]
    %v280 = vld [vmem:[#allocation7 + $0xb0] sm:$0xf]
    %v281 = vld [vmem:[#allocation7 + $0xb4] sm:$0xff]
    %v282 = vld [vmem:[#allocation7 + $0xbc] sm:$0xf]
    %v283 = vld [vmem:[%s6] sm:$0x7]
    %v284 = vld [vmem:[%s7] sm:$0x7]
    %v285 = vpack.c.bf16 %v191, %v188
    %v286 = vpack.c.bf16 %v197, %v194
    %v287 = vpack.c.bf16 %v203, %v200
    %v288 = vpack.c.bf16 %v209, %v206
    %v289 = vpack.c.bf16 %v215, %v212
    %v290 = vpack.c.bf16 %v221, %v218
    %v291 = vpack.c.bf16 %v227, %v224
    %v292 = vpack.c.bf16 %v233, %v230
    %v309 = vunpack.c.l.b16 %v235
    %v310 = vunpack.c.l.b16 %v236
    %v311 = vunpack.c.l.b16 %v237
    %v312 = vunpack.c.l.b16 %v238
    %v313 = vunpack.c.l.b16 %v239
    %v314 = vunpack.c.l.b16 %v240
    %v315 = vunpack.c.l.b16 %v241
    %v316 = vunpack.c.l.b16 %v242
    %v317 = vunpack.c.l.b16 %v243
    %v318 = vunpack.c.l.b16 %v244
    %v319 = vunpack.c.l.b16 %v245
    %v320 = vunpack.c.l.b16 %v246
    %v321 = vunpack.c.l.b16 %v247
    %v322 = vunpack.c.l.b16 %v248
    %v323 = vunpack.c.l.b16 %v249
    %v324 = vunpack.c.l.b16 %v250
    %v325 = vpack.c.b16 %v310, %v309
    %v326 = vpack.c.b16 %v312, %v311
    %v327 = vpack.c.b16 %v314, %v313
    %v328 = vpack.c.b16 %v316, %v315
    %v329 = vpack.c.b16 %v318, %v317
    %v330 = vpack.c.b16 %v320, %v319
    %v331 = vpack.c.b16 %v322, %v321
    %v332 = vpack.c.b16 %v324, %v323
    %341 = vmatpush.bf16.msra.mxu0 %v292
    %342 = vmatpush.bf16.msra.mxu0 %v291
    %343 = vmatpush.bf16.msra.mxu0 %v290
    %344 = vmatpush.bf16.msra.mxu0 %v289
    %345 = vmatpush.bf16.msra.mxu0 %v288
    %346 = vmatpush.bf16.msra.mxu0 %v287
    %347 = vmatpush.bf16.msra.mxu0 %v286
    %348 = vmatpush.bf16.msra.mxu0 %v285
    %349 = vmatmul.bf16.gmra.mxu0 %v325
    %v350 = vpop.f32.mrf.mxu0
    %v351 = vadd.f32 0.0, %v350
    %v352 = vpop.f32.mrf.mxu0
    %v353 = vadd.f32 0.0, %v352
    %354 = vmatmul.bf16.gmra.mxu0 %v326
    %v355 = vpop.f32.mrf.mxu0
    %v356 = vadd.f32 0.0, %v355
    %v357 = vpop.f32.mrf.mxu0
    %v358 = vadd.f32 0.0, %v357
    %359 = vmatmul.bf16.gmra.mxu0 %v327
    %v360 = vpop.f32.mrf.mxu0
    %v361 = vadd.f32 0.0, %v360
    %v362 = vpop.f32.mrf.mxu0
    %v363 = vadd.f32 0.0, %v362
    %364 = vmatmul.bf16.gmra.mxu0 %v328
    %v365 = vpop.f32.mrf.mxu0
    %v366 = vadd.f32 0.0, %v365
    %v367 = vpop.f32.mrf.mxu0
    %v368 = vadd.f32 0.0, %v367
    %369 = vmatmul.bf16.gmra.mxu0 %v329
    %v370 = vpop.f32.mrf.mxu0
    %v371 = vadd.f32 0.0, %v370
    %v372 = vpop.f32.mrf.mxu0
    %v373 = vadd.f32 0.0, %v372
    %374 = vmatmul.bf16.gmra.mxu0 %v330
    %v375 = vpop.f32.mrf.mxu0
    %v376 = vadd.f32 0.0, %v375
    %v377 = vpop.f32.mrf.mxu0
    %v378 = vadd.f32 0.0, %v377
    %379 = vmatmul.bf16.gmra.mxu0 %v331
    %v380 = vpop.f32.mrf.mxu0
    %v381 = vadd.f32 0.0, %v380
    %v382 = vpop.f32.mrf.mxu0
    %v383 = vadd.f32 0.0, %v382
    %384 = vmatmul.bf16.gmra.mxu0 %v332
    %v385 = vpop.f32.mrf.mxu0
    %v386 = vadd.f32 0.0, %v385
    %v387 = vpop.f32.mrf.mxu0
    %v388 = vadd.f32 0.0, %v387
    %389 = vdwg.mxu0
    %v390 = vpack.c.bf16 %v353, %v351
    %v391 = vpack.c.bf16 %v358, %v356
    %v392 = vpack.c.bf16 %v363, %v361
    %v393 = vpack.c.bf16 %v368, %v366
    %v394 = vpack.c.bf16 %v373, %v371
    %v395 = vpack.c.bf16 %v378, %v376
    %v396 = vpack.c.bf16 %v383, %v381
    %v397 = vpack.c.bf16 %v388, %v386
    %v398 = vld [vmem:[#allocation5] sm:$0xff]
    %v399 = vld [vmem:[#allocation5 + $0x8] sm:$0xf]
    %v400 = vld [vmem:[#allocation5 + $0xc] sm:$0xff]
    %v401 = vld [vmem:[#allocation5 + $0x14] sm:$0xf]
    %v402 = vld [vmem:[#allocation5 + $0x18] sm:$0xff]
    %v403 = vld [vmem:[#allocation5 + $0x20] sm:$0xf]
    %v404 = vld [vmem:[#allocation5 + $0x24] sm:$0xff]
    %v405 = vld [vmem:[#allocation5 + $0x2c] sm:$0xf]
    %v406 = vld [vmem:[#allocation5 + $0x30] sm:$0xff]
    %v407 = vld [vmem:[#allocation5 + $0x38] sm:$0xf]
    %v408 = vld [vmem:[#allocation5 + $0x3c] sm:$0xff]
    %v409 = vld [vmem:[#allocation5 + $0x44] sm:$0xf]
    %v410 = vld [vmem:[#allocation5 + $0x48] sm:$0xff]
    %v411 = vld [vmem:[#allocation5 + $0x50] sm:$0xf]
    %v412 = vld [vmem:[#allocation5 + $0x54] sm:$0xff]
    %v413 = vld [vmem:[#allocation5 + $0x5c] sm:$0xf]
    %v414 = vld [vmem:[#allocation5 + $0x60] sm:$0xff]
    %v415 = vld [vmem:[#allocation5 + $0x68] sm:$0xf]
    %v416 = vld [vmem:[#allocation5 + $0x6c] sm:$0xff]
    %v417 = vld [vmem:[#allocation5 + $0x74] sm:$0xf]
    %v418 = vld [vmem:[#allocation5 + $0x78] sm:$0xff]
    %v419 = vld [vmem:[#allocation5 + $0x80] sm:$0xf]
    %v420 = vld [vmem:[#allocation5 + $0x84] sm:$0xff]
    %v421 = vld [vmem:[#allocation5 + $0x8c] sm:$0xf]
    %v422 = vld [vmem:[#allocation5 + $0x90] sm:$0xff]
    %v423 = vld [vmem:[#allocation5 + $0x98] sm:$0xf]
    %v424 = vld [vmem:[#allocation5 + $0x9c] sm:$0xff]
    %v425 = vld [vmem:[#allocation5 + $0xa4] sm:$0xf]
    %v426 = vld [vmem:[#allocation5 + $0xa8] sm:$0xff]
    %v427 = vld [vmem:[#allocation5 + $0xb0] sm:$0xf]
    %v428 = vld [vmem:[#allocation5 + $0xb4] sm:$0xff]
    %v429 = vld [vmem:[#allocation5 + $0xbc] sm:$0xf]
    %v431 = vperm.slane %v283, 0
    %v432 = vperm.slane %v283, 1
    %v433 = vperm.slane %v283, 2
    %v469 = vunpack.c.l.b16 %v398
    %v470 = vunpack.c.h.b16 %v398
    %v471 = vunpack.c.l.b16 %v399
    %v472 = vunpack.c.l.b16 %v400
    %v473 = vunpack.c.h.b16 %v400
    %v474 = vunpack.c.l.b16 %v401
    %v475 = vunpack.c.l.b16 %v402
    %v476 = vunpack.c.h.b16 %v402
    %v477 = vunpack.c.l.b16 %v403
    %v478 = vunpack.c.l.b16 %v404
    %v479 = vunpack.c.h.b16 %v404
    %v480 = vunpack.c.l.b16 %v405
    %v481 = vunpack.c.l.b16 %v406
    %v482 = vunpack.c.h.b16 %v406
    %v483 = vunpack.c.l.b16 %v407
    %v484 = vunpack.c.l.b16 %v408
    %v485 = vunpack.c.h.b16 %v408
    %v486 = vunpack.c.l.b16 %v409
    %v487 = vunpack.c.l.b16 %v410
    %v488 = vunpack.c.h.b16 %v410
    %v489 = vunpack.c.l.b16 %v411
    %v490 = vunpack.c.l.b16 %v412
    %v491 = vunpack.c.h.b16 %v412
    %v492 = vunpack.c.l.b16 %v413
    %v493 = vunpack.c.l.b16 %v414
    %v494 = vunpack.c.h.b16 %v414
    %v495 = vunpack.c.l.b16 %v415
    %v496 = vunpack.c.l.b16 %v416
    %v497 = vunpack.c.h.b16 %v416
    %v498 = vunpack.c.l.b16 %v417
    %v499 = vunpack.c.l.b16 %v418
    %v500 = vunpack.c.h.b16 %v418
    %v501 = vunpack.c.l.b16 %v419
    %v502 = vunpack.c.l.b16 %v420
    %v503 = vunpack.c.h.b16 %v420
    %v504 = vunpack.c.l.b16 %v421
    %v505 = vunpack.c.l.b16 %v422
    %v506 = vunpack.c.h.b16 %v422
    %v507 = vunpack.c.l.b16 %v423
    %v508 = vunpack.c.l.b16 %v424
    %v509 = vunpack.c.h.b16 %v424
    %v510 = vunpack.c.l.b16 %v425
    %v511 = vunpack.c.l.b16 %v426
    %v512 = vunpack.c.h.b16 %v426
    %v513 = vunpack.c.l.b16 %v427
    %v514 = vunpack.c.l.b16 %v428
    %v515 = vunpack.c.h.b16 %v428
    %v516 = vunpack.c.l.b16 %v429
    %v517 = vpack.c.b16 %v472, %v469
    %v518 = vpack.c.b16 %v473, %v470
    %v519 = vpack.c.b16 %v474, %v471
    %v520 = vpack.c.b16 %v478, %v475
    %v521 = vpack.c.b16 %v479, %v476
    %v522 = vpack.c.b16 %v480, %v477
    %v523 = vpack.c.b16 %v484, %v481
    %v524 = vpack.c.b16 %v485, %v482
    %v525 = vpack.c.b16 %v486, %v483
    %v526 = vpack.c.b16 %v490, %v487
    %v527 = vpack.c.b16 %v491, %v488
    %v528 = vpack.c.b16 %v492, %v489
    %v529 = vpack.c.b16 %v496, %v493
    %v530 = vpack.c.b16 %v497, %v494
    %v531 = vpack.c.b16 %v498, %v495
    %v532 = vpack.c.b16 %v502, %v499
    %v533 = vpack.c.b16 %v503, %v500
    %v534 = vpack.c.b16 %v504, %v501
    %v535 = vpack.c.b16 %v508, %v505
    %v536 = vpack.c.b16 %v509, %v506
    %v537 = vpack.c.b16 %v510, %v507
    %v538 = vpack.c.b16 %v514, %v511
    %v539 = vpack.c.b16 %v515, %v512
    %v540 = vpack.c.b16 %v516, %v513
    %565 = vmatpush.bf16.msra.mxu0 %v538
    %566 = vmatpush.bf16.msra.mxu0 %v535
    %567 = vmatpush.bf16.msra.mxu0 %v532
    %568 = vmatpush.bf16.msra.mxu0 %v529
    %569 = vmatpush.bf16.msra.mxu0 %v526
    %570 = vmatpush.bf16.msra.mxu0 %v523
    %571 = vmatpush.bf16.msra.mxu0 %v520
    %572 = vmatpush.bf16.msra.mxu0 %v517
    %573 = vmatmul.bf16.gmra.mxu0 %v390
    %v574 = vpop.f32.mrf.mxu0
    %v575 = vadd.f32 %v431, %v574
    %v576 = vpop.f32.mrf.mxu0
    %v577 = vadd.f32 %v431, %v576
    %578 = vmatmul.bf16.gmra.mxu0 %v391
    %v579 = vpop.f32.mrf.mxu0
    %v580 = vadd.f32 %v431, %v579
    %v581 = vpop.f32.mrf.mxu0
    %v582 = vadd.f32 %v431, %v581
    %583 = vmatmul.bf16.gmra.mxu0 %v392
    %v584 = vpop.f32.mrf.mxu0
    %v585 = vadd.f32 %v431, %v584
    %v586 = vpop.f32.mrf.mxu0
    %v587 = vadd.f32 %v431, %v586
    %588 = vmatmul.bf16.gmra.mxu0 %v393
    %v589 = vpop.f32.mrf.mxu0
    %v590 = vadd.f32 %v431, %v589
    %v591 = vpop.f32.mrf.mxu0
    %v592 = vadd.f32 %v431, %v591
    %593 = vmatmul.bf16.gmra.mxu0 %v394
    %v594 = vpop.f32.mrf.mxu0
    %v595 = vadd.f32 %v431, %v594
    %v596 = vpop.f32.mrf.mxu0
    %v597 = vadd.f32 %v431, %v596
    %598 = vmatmul.bf16.gmra.mxu0 %v395
    %v599 = vpop.f32.mrf.mxu0
    %v600 = vadd.f32 %v431, %v599
    %v601 = vpop.f32.mrf.mxu0
    %v602 = vadd.f32 %v431, %v601
    %603 = vmatmul.bf16.gmra.mxu0 %v396
    %v604 = vpop.f32.mrf.mxu0
    %v605 = vadd.f32 %v431, %v604
    %v606 = vpop.f32.mrf.mxu0
    %v607 = vadd.f32 %v431, %v606
    %608 = vmatmul.bf16.gmra.mxu0 %v397
    %v609 = vpop.f32.mrf.mxu0
    %v610 = vadd.f32 %v431, %v609
    %v611 = vpop.f32.mrf.mxu0
    %v612 = vadd.f32 %v431, %v611
    %613 = vdwg.mxu0
    %614 = vmatpush.bf16.msra.mxu0 %v539
    %615 = vmatpush.bf16.msra.mxu0 %v536
    %616 = vmatpush.bf16.msra.mxu0 %v533
    %617 = vmatpush.bf16.msra.mxu0 %v530
    %618 = vmatpush.bf16.msra.mxu0 %v527
    %619 = vmatpush.bf16.msra.mxu0 %v524
    %620 = vmatpush.bf16.msra.mxu0 %v521
    %621 = vmatpush.bf16.msra.mxu0 %v518
    %622 = vmatmul.bf16.gmra.mxu0 %v390
    %v623 = vpop.f32.mrf.mxu0
    %v624 = vadd.f32 %v432, %v623
    %v625 = vpop.f32.mrf.mxu0
    %v626 = vadd.f32 %v432, %v625
    %627 = vmatmul.bf16.gmra.mxu0 %v391
    %v628 = vpop.f32.mrf.mxu0
    %v629 = vadd.f32 %v432, %v628
    %v630 = vpop.f32.mrf.mxu0
    %v631 = vadd.f32 %v432, %v630
    %632 = vmatmul.bf16.gmra.mxu0 %v392
    %v633 = vpop.f32.mrf.mxu0
    %v634 = vadd.f32 %v432, %v633
    %v635 = vpop.f32.mrf.mxu0
    %v636 = vadd.f32 %v432, %v635
    %637 = vmatmul.bf16.gmra.mxu0 %v393
    %v638 = vpop.f32.mrf.mxu0
    %v639 = vadd.f32 %v432, %v638
    %v640 = vpop.f32.mrf.mxu0
    %v641 = vadd.f32 %v432, %v640
    %642 = vmatmul.bf16.gmra.mxu0 %v394
    %v643 = vpop.f32.mrf.mxu0
    %v644 = vadd.f32 %v432, %v643
    %v645 = vpop.f32.mrf.mxu0
    %v646 = vadd.f32 %v432, %v645
    %647 = vmatmul.bf16.gmra.mxu0 %v395
    %v648 = vpop.f32.mrf.mxu0
    %v649 = vadd.f32 %v432, %v648
    %v650 = vpop.f32.mrf.mxu0
    %v651 = vadd.f32 %v432, %v650
    %652 = vmatmul.bf16.gmra.mxu0 %v396
    %v653 = vpop.f32.mrf.mxu0
    %v654 = vadd.f32 %v432, %v653
    %v655 = vpop.f32.mrf.mxu0
    %v656 = vadd.f32 %v432, %v655
    %657 = vmatmul.bf16.gmra.mxu0 %v397
    %v658 = vpop.f32.mrf.mxu0
    %v659 = vadd.f32 %v432, %v658
    %v660 = vpop.f32.mrf.mxu0
    %v661 = vadd.f32 %v432, %v660
    %662 = vdwg.mxu0
    %663 = vmatpush.bf16.msra.mxu0 %v540
    %664 = vmatpush.bf16.msra.mxu0 %v537
    %665 = vmatpush.bf16.msra.mxu0 %v534
    %666 = vmatpush.bf16.msra.mxu0 %v531
    %667 = vmatpush.bf16.msra.mxu0 %v528
    %668 = vmatpush.bf16.msra.mxu0 %v525
    %669 = vmatpush.bf16.msra.mxu0 %v522
    %670 = vmatpush.bf16.msra.mxu0 %v519
    %671 = vmatmul.bf16.gmra.mxu0 %v390
    %v672 = vpop.f32.mrf.mxu0
    %v673 = vadd.f32 %v433, %v672
    %v674 = vpop.f32.mrf.mxu0
    %v675 = vadd.f32 %v433, %v674
    %676 = vmatmul.bf16.gmra.mxu0 %v391
    %v677 = vpop.f32.mrf.mxu0
    %v678 = vadd.f32 %v433, %v677
    %v679 = vpop.f32.mrf.mxu0
    %v680 = vadd.f32 %v433, %v679
    %681 = vmatmul.bf16.gmra.mxu0 %v392
    %v682 = vpop.f32.mrf.mxu0
    %v683 = vadd.f32 %v433, %v682
    %v684 = vpop.f32.mrf.mxu0
    %v685 = vadd.f32 %v433, %v684
    %686 = vmatmul.bf16.gmra.mxu0 %v393
    %v687 = vpop.f32.mrf.mxu0
    %v688 = vadd.f32 %v433, %v687
    %v689 = vpop.f32.mrf.mxu0
    %v690 = vadd.f32 %v433, %v689
    %691 = vmatmul.bf16.gmra.mxu0 %v394
    %v692 = vpop.f32.mrf.mxu0
    %v693 = vadd.f32 %v433, %v692
    %v694 = vpop.f32.mrf.mxu0
    %v695 = vadd.f32 %v433, %v694
    %696 = vmatmul.bf16.gmra.mxu0 %v395
    %v697 = vpop.f32.mrf.mxu0
    %v698 = vadd.f32 %v433, %v697
    %v699 = vpop.f32.mrf.mxu0
    %v700 = vadd.f32 %v433, %v699
    %701 = vmatmul.bf16.gmra.mxu0 %v396
    %v702 = vpop.f32.mrf.mxu0
    %v703 = vadd.f32 %v433, %v702
    %v704 = vpop.f32.mrf.mxu0
    %v705 = vadd.f32 %v433, %v704
    %706 = vmatmul.bf16.gmra.mxu0 %v397
    %v707 = vpop.f32.mrf.mxu0
    %v708 = vadd.f32 %v433, %v707
    %v709 = vpop.f32.mrf.mxu0
    %v710 = vadd.f32 %v433, %v709
    %711 = vdwg.mxu0
    %v713 = vperm.slane %v284, 0
    %v714 = vperm.slane %v284, 1
    %v715 = vperm.slane %v284, 2
    %v751 = vunpack.c.l.b16 %v251
    %v752 = vunpack.c.h.b16 %v251
    %v753 = vunpack.c.l.b16 %v252
    %v754 = vunpack.c.l.b16 %v253
    %v755 = vunpack.c.h.b16 %v253
    %v756 = vunpack.c.l.b16 %v254
    %v757 = vunpack.c.l.b16 %v255
    %v758 = vunpack.c.h.b16 %v255
    %v759 = vunpack.c.l.b16 %v256
    %v760 = vunpack.c.l.b16 %v257
    %v761 = vunpack.c.h.b16 %v257
    %v762 = vunpack.c.l.b16 %v258
    %v763 = vunpack.c.l.b16 %v259
    %v764 = vunpack.c.h.b16 %v259
    %v765 = vunpack.c.l.b16 %v260
    %v766 = vunpack.c.l.b16 %v261
    %v767 = vunpack.c.h.b16 %v261
    %v768 = vunpack.c.l.b16 %v262
    %v769 = vunpack.c.l.b16 %v263
    %v770 = vunpack.c.h.b16 %v263
    %v771 = vunpack.c.l.b16 %v264
    %v772 = vunpack.c.l.b16 %v265
    %v773 = vunpack.c.h.b16 %v265
    %v774 = vunpack.c.l.b16 %v266
    %v775 = vunpack.c.l.b16 %v267
    %v776 = vunpack.c.h.b16 %v267
    %v777 = vunpack.c.l.b16 %v268
    %v778 = vunpack.c.l.b16 %v269
    %v779 = vunpack.c.h.b16 %v269
    %v780 = vunpack.c.l.b16 %v270
    %v781 = vunpack.c.l.b16 %v271
    %v782 = vunpack.c.h.b16 %v271
    %v783 = vunpack.c.l.b16 %v272
    %v784 = vunpack.c.l.b16 %v273
    %v785 = vunpack.c.h.b16 %v273
    %v786 = vunpack.c.l.b16 %v274
    %v787 = vunpack.c.l.b16 %v275
    %v788 = vunpack.c.h.b16 %v275
    %v789 = vunpack.c.l.b16 %v276
    %v790 = vunpack.c.l.b16 %v277
    %v791 = vunpack.c.h.b16 %v277
    %v792 = vunpack.c.l.b16 %v278
    %v793 = vunpack.c.l.b16 %v279
    %v794 = vunpack.c.h.b16 %v279
    %v795 = vunpack.c.l.b16 %v280
    %v796 = vunpack.c.l.b16 %v281
    %v797 = vunpack.c.h.b16 %v281
    %v798 = vunpack.c.l.b16 %v282
    %v799 = vpack.c.b16 %v754, %v751
    %v800 = vpack.c.b16 %v755, %v752
    %v801 = vpack.c.b16 %v756, %v753
    %v802 = vpack.c.b16 %v760, %v757
    %v803 = vpack.c.b16 %v761, %v758
    %v804 = vpack.c.b16 %v762, %v759
    %v805 = vpack.c.b16 %v766, %v763
    %v806 = vpack.c.b16 %v767, %v764
    %v807 = vpack.c.b16 %v768, %v765
    %v808 = vpack.c.b16 %v772, %v769
    %v809 = vpack.c.b16 %v773, %v770
    %v810 = vpack.c.b16 %v774, %v771
    %v811 = vpack.c.b16 %v778, %v775
    %v812 = vpack.c.b16 %v779, %v776
    %v813 = vpack.c.b16 %v780, %v777
    %v814 = vpack.c.b16 %v784, %v781
    %v815 = vpack.c.b16 %v785, %v782
    %v816 = vpack.c.b16 %v786, %v783
    %v817 = vpack.c.b16 %v790, %v787
    %v818 = vpack.c.b16 %v791, %v788
    %v819 = vpack.c.b16 %v792, %v789
    %v820 = vpack.c.b16 %v796, %v793
    %v821 = vpack.c.b16 %v797, %v794
    %v822 = vpack.c.b16 %v798, %v795
    %847 = vmatpush.bf16.msra.mxu0 %v820
    %848 = vmatpush.bf16.msra.mxu0 %v817
    %849 = vmatpush.bf16.msra.mxu0 %v814
    %850 = vmatpush.bf16.msra.mxu0 %v811
    %851 = vmatpush.bf16.msra.mxu0 %v808
    %852 = vmatpush.bf16.msra.mxu0 %v805
    %853 = vmatpush.bf16.msra.mxu0 %v802
    %854 = vmatpush.bf16.msra.mxu0 %v799
    %855 = vmatmul.bf16.gmra.mxu0 %v285
    %v856 = vpop.f32.mrf.mxu0
    %v857 = vadd.f32 %v713, %v856
    %v858 = vpop.f32.mrf.mxu0
    %v859 = vadd.f32 %v713, %v858
    %860 = vmatmul.bf16.gmra.mxu0 %v286
    %v861 = vpop.f32.mrf.mxu0
    %v862 = vadd.f32 %v713, %v861
    %v863 = vpop.f32.mrf.mxu0
    %v864 = vadd.f32 %v713, %v863
    %865 = vmatmul.bf16.gmra.mxu0 %v287
    %v866 = vpop.f32.mrf.mxu0
    %v867 = vadd.f32 %v713, %v866
    %v868 = vpop.f32.mrf.mxu0
    %v869 = vadd.f32 %v713, %v868
    %870 = vmatmul.bf16.gmra.mxu0 %v288
    %v871 = vpop.f32.mrf.mxu0
    %v872 = vadd.f32 %v713, %v871
    %v873 = vpop.f32.mrf.mxu0
    %v874 = vadd.f32 %v713, %v873
    %875 = vmatmul.bf16.gmra.mxu0 %v289
    %v876 = vpop.f32.mrf.mxu0
    %v877 = vadd.f32 %v713, %v876
    %v878 = vpop.f32.mrf.mxu0
    %v879 = vadd.f32 %v713, %v878
    %880 = vmatmul.bf16.gmra.mxu0 %v290
    %v881 = vpop.f32.mrf.mxu0
    %v882 = vadd.f32 %v713, %v881
    %v883 = vpop.f32.mrf.mxu0
    %v884 = vadd.f32 %v713, %v883
    %885 = vmatmul.bf16.gmra.mxu0 %v291
    %v886 = vpop.f32.mrf.mxu0
    %v887 = vadd.f32 %v713, %v886
    %v888 = vpop.f32.mrf.mxu0
    %v889 = vadd.f32 %v713, %v888
    %890 = vmatmul.bf16.gmra.mxu0 %v292
    %v891 = vpop.f32.mrf.mxu0
    %v892 = vadd.f32 %v713, %v891
    %v893 = vpop.f32.mrf.mxu0
    %v894 = vadd.f32 %v713, %v893
    %895 = vdwg.mxu0
    %896 = vmatpush.bf16.msra.mxu0 %v821
    %897 = vmatpush.bf16.msra.mxu0 %v818
    %898 = vmatpush.bf16.msra.mxu0 %v815
    %899 = vmatpush.bf16.msra.mxu0 %v812
    %900 = vmatpush.bf16.msra.mxu0 %v809
    %901 = vmatpush.bf16.msra.mxu0 %v806
    %902 = vmatpush.bf16.msra.mxu0 %v803
    %903 = vmatpush.bf16.msra.mxu0 %v800
    %904 = vmatmul.bf16.gmra.mxu0 %v285
    %v905 = vpop.f32.mrf.mxu0
    %v906 = vadd.f32 %v714, %v905
    %v907 = vpop.f32.mrf.mxu0
    %v908 = vadd.f32 %v714, %v907
    %909 = vmatmul.bf16.gmra.mxu0 %v286
    %v910 = vpop.f32.mrf.mxu0
    %v911 = vadd.f32 %v714, %v910
    %v912 = vpop.f32.mrf.mxu0
    %v913 = vadd.f32 %v714, %v912
    %914 = vmatmul.bf16.gmra.mxu0 %v287
    %v915 = vpop.f32.mrf.mxu0
    %v916 = vadd.f32 %v714, %v915
    %v917 = vpop.f32.mrf.mxu0
    %v918 = vadd.f32 %v714, %v917
    %919 = vmatmul.bf16.gmra.mxu0 %v288
    %v920 = vpop.f32.mrf.mxu0
    %v921 = vadd.f32 %v714, %v920
    %v922 = vpop.f32.mrf.mxu0
    %v923 = vadd.f32 %v714, %v922
    %924 = vmatmul.bf16.gmra.mxu0 %v289
    %v925 = vpop.f32.mrf.mxu0
    %v926 = vadd.f32 %v714, %v925
    %v927 = vpop.f32.mrf.mxu0
    %v928 = vadd.f32 %v714, %v927
    %929 = vmatmul.bf16.gmra.mxu0 %v290
    %v930 = vpop.f32.mrf.mxu0
    %v931 = vadd.f32 %v714, %v930
    %v932 = vpop.f32.mrf.mxu0
    %v933 = vadd.f32 %v714, %v932
    %934 = vmatmul.bf16.gmra.mxu0 %v291
    %v935 = vpop.f32.mrf.mxu0
    %v936 = vadd.f32 %v714, %v935
    %v937 = vpop.f32.mrf.mxu0
    %v938 = vadd.f32 %v714, %v937
    %939 = vmatmul.bf16.gmra.mxu0 %v292
    %v940 = vpop.f32.mrf.mxu0
    %v941 = vadd.f32 %v714, %v940
    %v942 = vpop.f32.mrf.mxu0
    %v943 = vadd.f32 %v714, %v942
    %944 = vdwg.mxu0
    %945 = vmatpush.bf16.msra.mxu0 %v822
    %946 = vmatpush.bf16.msra.mxu0 %v819
    %947 = vmatpush.bf16.msra.mxu0 %v816
    %948 = vmatpush.bf16.msra.mxu0 %v813
    %949 = vmatpush.bf16.msra.mxu0 %v810
    %950 = vmatpush.bf16.msra.mxu0 %v807
    %951 = vmatpush.bf16.msra.mxu0 %v804
    %952 = vmatpush.bf16.msra.mxu0 %v801
    %953 = vmatmul.bf16.gmra.mxu0 %v285
    %v954 = vpop.f32.mrf.mxu0
    %v955 = vadd.f32 %v715, %v954
    %v956 = vpop.f32.mrf.mxu0
    %v957 = vadd.f32 %v715, %v956
    %958 = vmatmul.bf16.gmra.mxu0 %v286
    %v959 = vpop.f32.mrf.mxu0
    %v960 = vadd.f32 %v715, %v959
    %v961 = vpop.f32.mrf.mxu0
    %v962 = vadd.f32 %v715, %v961
    %963 = vmatmul.bf16.gmra.mxu0 %v287
    %v964 = vpop.f32.mrf.mxu0
    %v965 = vadd.f32 %v715, %v964
    %v966 = vpop.f32.mrf.mxu0
    %v967 = vadd.f32 %v715, %v966
    %968 = vmatmul.bf16.gmra.mxu0 %v288
    %v969 = vpop.f32.mrf.mxu0
    %v970 = vadd.f32 %v715, %v969
    %v971 = vpop.f32.mrf.mxu0
    %v972 = vadd.f32 %v715, %v971
    %973 = vmatmul.bf16.gmra.mxu0 %v289
    %v974 = vpop.f32.mrf.mxu0
    %v975 = vadd.f32 %v715, %v974
    %v976 = vpop.f32.mrf.mxu0
    %v977 = vadd.f32 %v715, %v976
    %978 = vmatmul.bf16.gmra.mxu0 %v290
    %v979 = vpop.f32.mrf.mxu0
    %v980 = vadd.f32 %v715, %v979
    %v981 = vpop.f32.mrf.mxu0
    %v982 = vadd.f32 %v715, %v981
    %983 = vmatmul.bf16.gmra.mxu0 %v291
    %v984 = vpop.f32.mrf.mxu0
    %v985 = vadd.f32 %v715, %v984
    %v986 = vpop.f32.mrf.mxu0
    %v987 = vadd.f32 %v715, %v986
    %988 = vmatmul.bf16.gmra.mxu0 %v292
    %v989 = vpop.f32.mrf.mxu0
    %v990 = vadd.f32 %v715, %v989
    %v991 = vpop.f32.mrf.mxu0
    %v992 = vadd.f32 %v715, %v991
    %993 = vdwg.mxu0
    %v994 = vadd.f32 %v575, %v857
    %v995 = vadd.f32 %v577, %v859
    %v996 = vadd.f32 %v580, %v862
    %v997 = vadd.f32 %v582, %v864
    %v998 = vadd.f32 %v585, %v867
    %v999 = vadd.f32 %v587, %v869
    %v1000 = vadd.f32 %v590, %v872
    %v1001 = vadd.f32 %v592, %v874
    %v1002 = vadd.f32 %v595, %v877
    %v1003 = vadd.f32 %v597, %v879
    %v1004 = vadd.f32 %v600, %v882
    %v1005 = vadd.f32 %v602, %v884
    %v1006 = vadd.f32 %v605, %v887
    %v1007 = vadd.f32 %v607, %v889
    %v1008 = vadd.f32 %v610, %v892
    %v1009 = vadd.f32 %v612, %v894
    %v1010 = vxor.u32 %v994, 2147483648
    %v1011 = vxor.u32 %v995, 2147483648
    %v1012 = vxor.u32 %v996, 2147483648
    %v1013 = vxor.u32 %v997, 2147483648
    %v1014 = vxor.u32 %v998, 2147483648
    %v1015 = vxor.u32 %v999, 2147483648
    %v1016 = vxor.u32 %v1000, 2147483648
    %v1017 = vxor.u32 %v1001, 2147483648
    %v1018 = vxor.u32 %v1002, 2147483648
    %v1019 = vxor.u32 %v1003, 2147483648
    %v1020 = vxor.u32 %v1004, 2147483648
    %v1021 = vxor.u32 %v1005, 2147483648
    %v1022 = vxor.u32 %v1006, 2147483648
    %v1023 = vxor.u32 %v1007, 2147483648
    %v1024 = vxor.u32 %v1008, 2147483648
    %v1025 = vxor.u32 %v1009, 2147483648
    %v1026 = vmul.f32 %v1010, 1.442695
    %v1027 = vpow.pop %v1026
    %v1028 = vmul.f32 %v1011, 1.442695
    %v1029 = vpow.pop %v1028
    %v1030 = vmul.f32 %v1012, 1.442695
    %v1031 = vpow.pop %v1030
    %v1032 = vmul.f32 %v1013, 1.442695
    %v1033 = vpow.pop %v1032
    %v1034 = vmul.f32 %v1014, 1.442695
    %v1035 = vpow.pop %v1034
    %v1036 = vmul.f32 %v1015, 1.442695
    %v1037 = vpow.pop %v1036
    %v1038 = vmul.f32 %v1016, 1.442695
    %v1039 = vpow.pop %v1038
    %v1040 = vmul.f32 %v1017, 1.442695
    %v1041 = vpow.pop %v1040
    %v1042 = vmul.f32 %v1018, 1.442695
    %v1043 = vpow.pop %v1042
    %v1044 = vmul.f32 %v1019, 1.442695
    %v1045 = vpow.pop %v1044
    %v1046 = vmul.f32 %v1020, 1.442695
    %v1047 = vpow.pop %v1046
    %v1048 = vmul.f32 %v1021, 1.442695
    %v1049 = vpow.pop %v1048
    %v1050 = vmul.f32 %v1022, 1.442695
    %v1051 = vpow.pop %v1050
    %v1052 = vmul.f32 %v1023, 1.442695
    %v1053 = vpow.pop %v1052
    %v1054 = vmul.f32 %v1024, 1.442695
    %v1055 = vpow.pop %v1054
    %v1056 = vmul.f32 %v1025, 1.442695
    %v1057 = vpow.pop %v1056
    %v1058 = vadd.f32 %v1027, 1.0
    %v1059 = vadd.f32 %v1029, 1.0
    %v1060 = vadd.f32 %v1031, 1.0
    %v1061 = vadd.f32 %v1033, 1.0
    %v1062 = vadd.f32 %v1035, 1.0
    %v1063 = vadd.f32 %v1037, 1.0
    %v1064 = vadd.f32 %v1039, 1.0
    %v1065 = vadd.f32 %v1041, 1.0
    %v1066 = vadd.f32 %v1043, 1.0
    %v1067 = vadd.f32 %v1045, 1.0
    %v1068 = vadd.f32 %v1047, 1.0
    %v1069 = vadd.f32 %v1049, 1.0
    %v1070 = vadd.f32 %v1051, 1.0
    %v1071 = vadd.f32 %v1053, 1.0
    %v1072 = vadd.f32 %v1055, 1.0
    %v1073 = vadd.f32 %v1057, 1.0
    %v1074 = vrcp.pop %v1058
    %v1075 = vmul.f32 %v1058, %v1074
    %v1076 = vsub.f32 1.0, %v1075
    %v1077 = vmul.f32 %v1074, %v1076
    %v1078 = vadd.f32 %v1074, %v1077
    %vm1079 = vweird.f32 %v1058
    %vm1080 = vweird.f32 %v1074
    %vm1081 = vmor %vm1079, %vm1080
    %v1082 = vsel %vm1081, %v1074, %v1078
    %v1083 = vand.u32 2147483647, %v1058
    %vm1084 = vcmp.eq.f32.partialorder %v1083, 8.507059e+37
    %v1085 = vand.u32 %v1058, 2147483648
    %v1086 = vor.u32 1.1754944e-38, %v1085
    %v1087 = vsel %vm1084, %v1086, %v1082
    %v1088 = vmul.f32 1.0, %v1087
    %v1089 = vrcp.pop %v1059
    %v1090 = vmul.f32 %v1059, %v1089
    %v1091 = vsub.f32 1.0, %v1090
    %v1092 = vmul.f32 %v1089, %v1091
    %v1093 = vadd.f32 %v1089, %v1092
    %vm1094 = vweird.f32 %v1059
    %vm1095 = vweird.f32 %v1089
    %vm1096 = vmor %vm1094, %vm1095
    %v1097 = vsel %vm1096, %v1089, %v1093
    %v1098 = vand.u32 2147483647, %v1059
    %vm1099 = vcmp.eq.f32.partialorder %v1098, 8.507059e+37
    %v1100 = vand.u32 %v1059, 2147483648
    %v1101 = vor.u32 1.1754944e-38, %v1100
    %v1102 = vsel %vm1099, %v1101, %v1097
    %v1103 = vmul.f32 1.0, %v1102
    %v1104 = vrcp.pop %v1060
    %v1105 = vmul.f32 %v1060, %v1104
    %v1106 = vsub.f32 1.0, %v1105
    %v1107 = vmul.f32 %v1104, %v1106
    %v1108 = vadd.f32 %v1104, %v1107
    %vm1109 = vweird.f32 %v1060
    %vm1110 = vweird.f32 %v1104
    %vm1111 = vmor %vm1109, %vm1110
    %v1112 = vsel %vm1111, %v1104, %v1108
    %v1113 = vand.u32 2147483647, %v1060
    %vm1114 = vcmp.eq.f32.partialorder %v1113, 8.507059e+37
    %v1115 = vand.u32 %v1060, 2147483648
    %v1116 = vor.u32 1.1754944e-38, %v1115
    %v1117 = vsel %vm1114, %v1116, %v1112
    %v1118 = vmul.f32 1.0, %v1117
    %v1119 = vrcp.pop %v1061
    %v1120 = vmul.f32 %v1061, %v1119
    %v1121 = vsub.f32 1.0, %v1120
    %v1122 = vmul.f32 %v1119, %v1121
    %v1123 = vadd.f32 %v1119, %v1122
    %vm1124 = vweird.f32 %v1061
    %vm1125 = vweird.f32 %v1119
    %vm1126 = vmor %vm1124, %vm1125
    %v1127 = vsel %vm1126, %v1119, %v1123
    %v1128 = vand.u32 2147483647, %v1061
    %vm1129 = vcmp.eq.f32.partialorder %v1128, 8.507059e+37
    %v1130 = vand.u32 %v1061, 2147483648
    %v1131 = vor.u32 1.1754944e-38, %v1130
    %v1132 = vsel %vm1129, %v1131, %v1127
    %v1133 = vmul.f32 1.0, %v1132
    %v1134 = vrcp.pop %v1062
    %v1135 = vmul.f32 %v1062, %v1134
    %v1136 = vsub.f32 1.0, %v1135
    %v1137 = vmul.f32 %v1134, %v1136
    %v1138 = vadd.f32 %v1134, %v1137
    %vm1139 = vweird.f32 %v1062
    %vm1140 = vweird.f32 %v1134
    %vm1141 = vmor %vm1139, %vm1140
    %v1142 = vsel %vm1141, %v1134, %v1138
    %v1143 = vand.u32 2147483647, %v1062
    %vm1144 = vcmp.eq.f32.partialorder %v1143, 8.507059e+37
    %v1145 = vand.u32 %v1062, 2147483648
    %v1146 = vor.u32 1.1754944e-38, %v1145
    %v1147 = vsel %vm1144, %v1146, %v1142
    %v1148 = vmul.f32 1.0, %v1147
    %v1149 = vrcp.pop %v1063
    %v1150 = vmul.f32 %v1063, %v1149
    %v1151 = vsub.f32 1.0, %v1150
    %v1152 = vmul.f32 %v1149, %v1151
    %v1153 = vadd.f32 %v1149, %v1152
    %vm1154 = vweird.f32 %v1063
    %vm1155 = vweird.f32 %v1149
    %vm1156 = vmor %vm1154, %vm1155
    %v1157 = vsel %vm1156, %v1149, %v1153
    %v1158 = vand.u32 2147483647, %v1063
    %vm1159 = vcmp.eq.f32.partialorder %v1158, 8.507059e+37
    %v1160 = vand.u32 %v1063, 2147483648
    %v1161 = vor.u32 1.1754944e-38, %v1160
    %v1162 = vsel %vm1159, %v1161, %v1157
    %v1163 = vmul.f32 1.0, %v1162
    %v1164 = vrcp.pop %v1064
    %v1165 = vmul.f32 %v1064, %v1164
    %v1166 = vsub.f32 1.0, %v1165
    %v1167 = vmul.f32 %v1164, %v1166
    %v1168 = vadd.f32 %v1164, %v1167
    %vm1169 = vweird.f32 %v1064
    %vm1170 = vweird.f32 %v1164
    %vm1171 = vmor %vm1169, %vm1170
    %v1172 = vsel %vm1171, %v1164, %v1168
    %v1173 = vand.u32 2147483647, %v1064
    %vm1174 = vcmp.eq.f32.partialorder %v1173, 8.507059e+37
    %v1175 = vand.u32 %v1064, 2147483648
    %v1176 = vor.u32 1.1754944e-38, %v1175
    %v1177 = vsel %vm1174, %v1176, %v1172
    %v1178 = vmul.f32 1.0, %v1177
    %v1179 = vrcp.pop %v1065
    %v1180 = vmul.f32 %v1065, %v1179
    %v1181 = vsub.f32 1.0, %v1180
    %v1182 = vmul.f32 %v1179, %v1181
    %v1183 = vadd.f32 %v1179, %v1182
    %vm1184 = vweird.f32 %v1065
    %vm1185 = vweird.f32 %v1179
    %vm1186 = vmor %vm1184, %vm1185
    %v1187 = vsel %vm1186, %v1179, %v1183
    %v1188 = vand.u32 2147483647, %v1065
    %vm1189 = vcmp.eq.f32.partialorder %v1188, 8.507059e+37
    %v1190 = vand.u32 %v1065, 2147483648
    %v1191 = vor.u32 1.1754944e-38, %v1190
    %v1192 = vsel %vm1189, %v1191, %v1187
    %v1193 = vmul.f32 1.0, %v1192
    %v1194 = vrcp.pop %v1066
    %v1195 = vmul.f32 %v1066, %v1194
    %v1196 = vsub.f32 1.0, %v1195
    %v1197 = vmul.f32 %v1194, %v1196
    %v1198 = vadd.f32 %v1194, %v1197
    %vm1199 = vweird.f32 %v1066
    %vm1200 = vweird.f32 %v1194
    %vm1201 = vmor %vm1199, %vm1200
    %v1202 = vsel %vm1201, %v1194, %v1198
    %v1203 = vand.u32 2147483647, %v1066
    %vm1204 = vcmp.eq.f32.partialorder %v1203, 8.507059e+37
    %v1205 = vand.u32 %v1066, 2147483648
    %v1206 = vor.u32 1.1754944e-38, %v1205
    %v1207 = vsel %vm1204, %v1206, %v1202
    %v1208 = vmul.f32 1.0, %v1207
    %v1209 = vrcp.pop %v1067
    %v1210 = vmul.f32 %v1067, %v1209
    %v1211 = vsub.f32 1.0, %v1210
    %v1212 = vmul.f32 %v1209, %v1211
    %v1213 = vadd.f32 %v1209, %v1212
    %vm1214 = vweird.f32 %v1067
    %vm1215 = vweird.f32 %v1209
    %vm1216 = vmor %vm1214, %vm1215
    %v1217 = vsel %vm1216, %v1209, %v1213
    %v1218 = vand.u32 2147483647, %v1067
    %vm1219 = vcmp.eq.f32.partialorder %v1218, 8.507059e+37
    %v1220 = vand.u32 %v1067, 2147483648
    %v1221 = vor.u32 1.1754944e-38, %v1220
    %v1222 = vsel %vm1219, %v1221, %v1217
    %v1223 = vmul.f32 1.0, %v1222
    %v1224 = vrcp.pop %v1068
    %v1225 = vmul.f32 %v1068, %v1224
    %v1226 = vsub.f32 1.0, %v1225
    %v1227 = vmul.f32 %v1224, %v1226
    %v1228 = vadd.f32 %v1224, %v1227
    %vm1229 = vweird.f32 %v1068
    %vm1230 = vweird.f32 %v1224
    %vm1231 = vmor %vm1229, %vm1230
    %v1232 = vsel %vm1231, %v1224, %v1228
    %v1233 = vand.u32 2147483647, %v1068
    %vm1234 = vcmp.eq.f32.partialorder %v1233, 8.507059e+37
    %v1235 = vand.u32 %v1068, 2147483648
    %v1236 = vor.u32 1.1754944e-38, %v1235
    %v1237 = vsel %vm1234, %v1236, %v1232
    %v1238 = vmul.f32 1.0, %v1237
    %v1239 = vrcp.pop %v1069
    %v1240 = vmul.f32 %v1069, %v1239
    %v1241 = vsub.f32 1.0, %v1240
    %v1242 = vmul.f32 %v1239, %v1241
    %v1243 = vadd.f32 %v1239, %v1242
    %vm1244 = vweird.f32 %v1069
    %vm1245 = vweird.f32 %v1239
    %vm1246 = vmor %vm1244, %vm1245
    %v1247 = vsel %vm1246, %v1239, %v1243
    %v1248 = vand.u32 2147483647, %v1069
    %vm1249 = vcmp.eq.f32.partialorder %v1248, 8.507059e+37
    %v1250 = vand.u32 %v1069, 2147483648
    %v1251 = vor.u32 1.1754944e-38, %v1250
    %v1252 = vsel %vm1249, %v1251, %v1247
    %v1253 = vmul.f32 1.0, %v1252
    %v1254 = vrcp.pop %v1070
    %v1255 = vmul.f32 %v1070, %v1254
    %v1256 = vsub.f32 1.0, %v1255
    %v1257 = vmul.f32 %v1254, %v1256
    %v1258 = vadd.f32 %v1254, %v1257
    %vm1259 = vweird.f32 %v1070
    %vm1260 = vweird.f32 %v1254
    %vm1261 = vmor %vm1259, %vm1260
    %v1262 = vsel %vm1261, %v1254, %v1258
    %v1263 = vand.u32 2147483647, %v1070
    %vm1264 = vcmp.eq.f32.partialorder %v1263, 8.507059e+37
    %v1265 = vand.u32 %v1070, 2147483648
    %v1266 = vor.u32 1.1754944e-38, %v1265
    %v1267 = vsel %vm1264, %v1266, %v1262
    %v1268 = vmul.f32 1.0, %v1267
    %v1269 = vrcp.pop %v1071
    %v1270 = vmul.f32 %v1071, %v1269
    %v1271 = vsub.f32 1.0, %v1270
    %v1272 = vmul.f32 %v1269, %v1271
    %v1273 = vadd.f32 %v1269, %v1272
    %vm1274 = vweird.f32 %v1071
    %vm1275 = vweird.f32 %v1269
    %vm1276 = vmor %vm1274, %vm1275
    %v1277 = vsel %vm1276, %v1269, %v1273
    %v1278 = vand.u32 2147483647, %v1071
    %vm1279 = vcmp.eq.f32.partialorder %v1278, 8.507059e+37
    %v1280 = vand.u32 %v1071, 2147483648
    %v1281 = vor.u32 1.1754944e-38, %v1280
    %v1282 = vsel %vm1279, %v1281, %v1277
    %v1283 = vmul.f32 1.0, %v1282
    %v1284 = vrcp.pop %v1072
    %v1285 = vmul.f32 %v1072, %v1284
    %v1286 = vsub.f32 1.0, %v1285
    %v1287 = vmul.f32 %v1284, %v1286
    %v1288 = vadd.f32 %v1284, %v1287
    %vm1289 = vweird.f32 %v1072
    %vm1290 = vweird.f32 %v1284
    %vm1291 = vmor %vm1289, %vm1290
    %v1292 = vsel %vm1291, %v1284, %v1288
    %v1293 = vand.u32 2147483647, %v1072
    %vm1294 = vcmp.eq.f32.partialorder %v1293, 8.507059e+37
    %v1295 = vand.u32 %v1072, 2147483648
    %v1296 = vor.u32 1.1754944e-38, %v1295
    %v1297 = vsel %vm1294, %v1296, %v1292
    %v1298 = vmul.f32 1.0, %v1297
    %v1299 = vrcp.pop %v1073
    %v1300 = vmul.f32 %v1073, %v1299
    %v1301 = vsub.f32 1.0, %v1300
    %v1302 = vmul.f32 %v1299, %v1301
    %v1303 = vadd.f32 %v1299, %v1302
    %vm1304 = vweird.f32 %v1073
    %vm1305 = vweird.f32 %v1299
    %vm1306 = vmor %vm1304, %vm1305
    %v1307 = vsel %vm1306, %v1299, %v1303
    %v1308 = vand.u32 2147483647, %v1073
    %vm1309 = vcmp.eq.f32.partialorder %v1308, 8.507059e+37
    %v1310 = vand.u32 %v1073, 2147483648
    %v1311 = vor.u32 1.1754944e-38, %v1310
    %v1312 = vsel %vm1309, %v1311, %v1307
    %v1313 = vmul.f32 1.0, %v1312
    %v1314 = vadd.f32 %v624, %v906
    %v1315 = vadd.f32 %v626, %v908
    %v1316 = vadd.f32 %v629, %v911
    %v1317 = vadd.f32 %v631, %v913
    %v1318 = vadd.f32 %v634, %v916
    %v1319 = vadd.f32 %v636, %v918
    %v1320 = vadd.f32 %v639, %v921
    %v1321 = vadd.f32 %v641, %v923
    %v1322 = vadd.f32 %v644, %v926
    %v1323 = vadd.f32 %v646, %v928
    %v1324 = vadd.f32 %v649, %v931
    %v1325 = vadd.f32 %v651, %v933
    %v1326 = vadd.f32 %v654, %v936
    %v1327 = vadd.f32 %v656, %v938
    %v1328 = vadd.f32 %v659, %v941
    %v1329 = vadd.f32 %v661, %v943
    %v1330 = vxor.u32 %v1314, 2147483648
    %v1331 = vxor.u32 %v1315, 2147483648
    %v1332 = vxor.u32 %v1316, 2147483648
    %v1333 = vxor.u32 %v1317, 2147483648
    %v1334 = vxor.u32 %v1318, 2147483648
    %v1335 = vxor.u32 %v1319, 2147483648
    %v1336 = vxor.u32 %v1320, 2147483648
    %v1337 = vxor.u32 %v1321, 2147483648
    %v1338 = vxor.u32 %v1322, 2147483648
    %v1339 = vxor.u32 %v1323, 2147483648
    %v1340 = vxor.u32 %v1324, 2147483648
    %v1341 = vxor.u32 %v1325, 2147483648
    %v1342 = vxor.u32 %v1326, 2147483648
    %v1343 = vxor.u32 %v1327, 2147483648
    %v1344 = vxor.u32 %v1328, 2147483648
    %v1345 = vxor.u32 %v1329, 2147483648
    %v1346 = vmul.f32 %v1330, 1.442695
    %v1347 = vpow.pop %v1346
    %v1348 = vmul.f32 %v1331, 1.442695
    %v1349 = vpow.pop %v1348
    %v1350 = vmul.f32 %v1332, 1.442695
    %v1351 = vpow.pop %v1350
    %v1352 = vmul.f32 %v1333, 1.442695
    %v1353 = vpow.pop %v1352
    %v1354 = vmul.f32 %v1334, 1.442695
    %v1355 = vpow.pop %v1354
    %v1356 = vmul.f32 %v1335, 1.442695
    %v1357 = vpow.pop %v1356
    %v1358 = vmul.f32 %v1336, 1.442695
    %v1359 = vpow.pop %v1358
    %v1360 = vmul.f32 %v1337, 1.442695
    %v1361 = vpow.pop %v1360
    %v1362 = vmul.f32 %v1338, 1.442695
    %v1363 = vpow.pop %v1362
    %v1364 = vmul.f32 %v1339, 1.442695
    %v1365 = vpow.pop %v1364
    %v1366 = vmul.f32 %v1340, 1.442695
    %v1367 = vpow.pop %v1366
    %v1368 = vmul.f32 %v1341, 1.442695
    %v1369 = vpow.pop %v1368
    %v1370 = vmul.f32 %v1342, 1.442695
    %v1371 = vpow.pop %v1370
    %v1372 = vmul.f32 %v1343, 1.442695
    %v1373 = vpow.pop %v1372
    %v1374 = vmul.f32 %v1344, 1.442695
    %v1375 = vpow.pop %v1374
    %v1376 = vmul.f32 %v1345, 1.442695
    %v1377 = vpow.pop %v1376
    %v1378 = vadd.f32 %v1347, 1.0
    %v1379 = vadd.f32 %v1349, 1.0
    %v1380 = vadd.f32 %v1351, 1.0
    %v1381 = vadd.f32 %v1353, 1.0
    %v1382 = vadd.f32 %v1355, 1.0
    %v1383 = vadd.f32 %v1357, 1.0
    %v1384 = vadd.f32 %v1359, 1.0
    %v1385 = vadd.f32 %v1361, 1.0
    %v1386 = vadd.f32 %v1363, 1.0
    %v1387 = vadd.f32 %v1365, 1.0
    %v1388 = vadd.f32 %v1367, 1.0
    %v1389 = vadd.f32 %v1369, 1.0
    %v1390 = vadd.f32 %v1371, 1.0
    %v1391 = vadd.f32 %v1373, 1.0
    %v1392 = vadd.f32 %v1375, 1.0
    %v1393 = vadd.f32 %v1377, 1.0
    %v1394 = vrcp.pop %v1378
    %v1395 = vmul.f32 %v1378, %v1394
    %v1396 = vsub.f32 1.0, %v1395
    %v1397 = vmul.f32 %v1394, %v1396
    %v1398 = vadd.f32 %v1394, %v1397
    %vm1399 = vweird.f32 %v1378
    %vm1400 = vweird.f32 %v1394
    %vm1401 = vmor %vm1399, %vm1400
    %v1402 = vsel %vm1401, %v1394, %v1398
    %v1403 = vand.u32 2147483647, %v1378
    %vm1404 = vcmp.eq.f32.partialorder %v1403, 8.507059e+37
    %v1405 = vand.u32 %v1378, 2147483648
    %v1406 = vor.u32 1.1754944e-38, %v1405
    %v1407 = vsel %vm1404, %v1406, %v1402
    %v1408 = vmul.f32 1.0, %v1407
    %v1409 = vrcp.pop %v1379
    %v1410 = vmul.f32 %v1379, %v1409
    %v1411 = vsub.f32 1.0, %v1410
    %v1412 = vmul.f32 %v1409, %v1411
    %v1413 = vadd.f32 %v1409, %v1412
    %vm1414 = vweird.f32 %v1379
    %vm1415 = vweird.f32 %v1409
    %vm1416 = vmor %vm1414, %vm1415
    %v1417 = vsel %vm1416, %v1409, %v1413
    %v1418 = vand.u32 2147483647, %v1379
    %vm1419 = vcmp.eq.f32.partialorder %v1418, 8.507059e+37
    %v1420 = vand.u32 %v1379, 2147483648
    %v1421 = vor.u32 1.1754944e-38, %v1420
    %v1422 = vsel %vm1419, %v1421, %v1417
    %v1423 = vmul.f32 1.0, %v1422
    %v1424 = vrcp.pop %v1380
    %v1425 = vmul.f32 %v1380, %v1424
    %v1426 = vsub.f32 1.0, %v1425
    %v1427 = vmul.f32 %v1424, %v1426
    %v1428 = vadd.f32 %v1424, %v1427
    %vm1429 = vweird.f32 %v1380
    %vm1430 = vweird.f32 %v1424
    %vm1431 = vmor %vm1429, %vm1430
    %v1432 = vsel %vm1431, %v1424, %v1428
    %v1433 = vand.u32 2147483647, %v1380
    %vm1434 = vcmp.eq.f32.partialorder %v1433, 8.507059e+37
    %v1435 = vand.u32 %v1380, 2147483648
    %v1436 = vor.u32 1.1754944e-38, %v1435
    %v1437 = vsel %vm1434, %v1436, %v1432
    %v1438 = vmul.f32 1.0, %v1437
    %v1439 = vrcp.pop %v1381
    %v1440 = vmul.f32 %v1381, %v1439
    %v1441 = vsub.f32 1.0, %v1440
    %v1442 = vmul.f32 %v1439, %v1441
    %v1443 = vadd.f32 %v1439, %v1442
    %vm1444 = vweird.f32 %v1381
    %vm1445 = vweird.f32 %v1439
    %vm1446 = vmor %vm1444, %vm1445
    %v1447 = vsel %vm1446, %v1439, %v1443
    %v1448 = vand.u32 2147483647, %v1381
    %vm1449 = vcmp.eq.f32.partialorder %v1448, 8.507059e+37
    %v1450 = vand.u32 %v1381, 2147483648
    %v1451 = vor.u32 1.1754944e-38, %v1450
    %v1452 = vsel %vm1449, %v1451, %v1447
    %v1453 = vmul.f32 1.0, %v1452
    %v1454 = vrcp.pop %v1382
    %v1455 = vmul.f32 %v1382, %v1454
    %v1456 = vsub.f32 1.0, %v1455
    %v1457 = vmul.f32 %v1454, %v1456
    %v1458 = vadd.f32 %v1454, %v1457
    %vm1459 = vweird.f32 %v1382
    %vm1460 = vweird.f32 %v1454
    %vm1461 = vmor %vm1459, %vm1460
    %v1462 = vsel %vm1461, %v1454, %v1458
    %v1463 = vand.u32 2147483647, %v1382
    %vm1464 = vcmp.eq.f32.partialorder %v1463, 8.507059e+37
    %v1465 = vand.u32 %v1382, 2147483648
    %v1466 = vor.u32 1.1754944e-38, %v1465
    %v1467 = vsel %vm1464, %v1466, %v1462
    %v1468 = vmul.f32 1.0, %v1467
    %v1469 = vrcp.pop %v1383
    %v1470 = vmul.f32 %v1383, %v1469
    %v1471 = vsub.f32 1.0, %v1470
    %v1472 = vmul.f32 %v1469, %v1471
    %v1473 = vadd.f32 %v1469, %v1472
    %vm1474 = vweird.f32 %v1383
    %vm1475 = vweird.f32 %v1469
    %vm1476 = vmor %vm1474, %vm1475
    %v1477 = vsel %vm1476, %v1469, %v1473
    %v1478 = vand.u32 2147483647, %v1383
    %vm1479 = vcmp.eq.f32.partialorder %v1478, 8.507059e+37
    %v1480 = vand.u32 %v1383, 2147483648
    %v1481 = vor.u32 1.1754944e-38, %v1480
    %v1482 = vsel %vm1479, %v1481, %v1477
    %v1483 = vmul.f32 1.0, %v1482
    %v1484 = vrcp.pop %v1384
    %v1485 = vmul.f32 %v1384, %v1484
    %v1486 = vsub.f32 1.0, %v1485
    %v1487 = vmul.f32 %v1484, %v1486
    %v1488 = vadd.f32 %v1484, %v1487
    %vm1489 = vweird.f32 %v1384
    %vm1490 = vweird.f32 %v1484
    %vm1491 = vmor %vm1489, %vm1490
    %v1492 = vsel %vm1491, %v1484, %v1488
    %v1493 = vand.u32 2147483647, %v1384
    %vm1494 = vcmp.eq.f32.partialorder %v1493, 8.507059e+37
    %v1495 = vand.u32 %v1384, 2147483648
    %v1496 = vor.u32 1.1754944e-38, %v1495
    %v1497 = vsel %vm1494, %v1496, %v1492
    %v1498 = vmul.f32 1.0, %v1497
    %v1499 = vrcp.pop %v1385
    %v1500 = vmul.f32 %v1385, %v1499
    %v1501 = vsub.f32 1.0, %v1500
    %v1502 = vmul.f32 %v1499, %v1501
    %v1503 = vadd.f32 %v1499, %v1502
    %vm1504 = vweird.f32 %v1385
    %vm1505 = vweird.f32 %v1499
    %vm1506 = vmor %vm1504, %vm1505
    %v1507 = vsel %vm1506, %v1499, %v1503
    %v1508 = vand.u32 2147483647, %v1385
    %vm1509 = vcmp.eq.f32.partialorder %v1508, 8.507059e+37
    %v1510 = vand.u32 %v1385, 2147483648
    %v1511 = vor.u32 1.1754944e-38, %v1510
    %v1512 = vsel %vm1509, %v1511, %v1507
    %v1513 = vmul.f32 1.0, %v1512
    %v1514 = vrcp.pop %v1386
    %v1515 = vmul.f32 %v1386, %v1514
    %v1516 = vsub.f32 1.0, %v1515
    %v1517 = vmul.f32 %v1514, %v1516
    %v1518 = vadd.f32 %v1514, %v1517
    %vm1519 = vweird.f32 %v1386
    %vm1520 = vweird.f32 %v1514
    %vm1521 = vmor %vm1519, %vm1520
    %v1522 = vsel %vm1521, %v1514, %v1518
    %v1523 = vand.u32 2147483647, %v1386
    %vm1524 = vcmp.eq.f32.partialorder %v1523, 8.507059e+37
    %v1525 = vand.u32 %v1386, 2147483648
    %v1526 = vor.u32 1.1754944e-38, %v1525
    %v1527 = vsel %vm1524, %v1526, %v1522
    %v1528 = vmul.f32 1.0, %v1527
    %v1529 = vrcp.pop %v1387
    %v1530 = vmul.f32 %v1387, %v1529
    %v1531 = vsub.f32 1.0, %v1530
    %v1532 = vmul.f32 %v1529, %v1531
    %v1533 = vadd.f32 %v1529, %v1532
    %vm1534 = vweird.f32 %v1387
    %vm1535 = vweird.f32 %v1529
    %vm1536 = vmor %vm1534, %vm1535
    %v1537 = vsel %vm1536, %v1529, %v1533
    %v1538 = vand.u32 2147483647, %v1387
    %vm1539 = vcmp.eq.f32.partialorder %v1538, 8.507059e+37
    %v1540 = vand.u32 %v1387, 2147483648
    %v1541 = vor.u32 1.1754944e-38, %v1540
    %v1542 = vsel %vm1539, %v1541, %v1537
    %v1543 = vmul.f32 1.0, %v1542
    %v1544 = vrcp.pop %v1388
    %v1545 = vmul.f32 %v1388, %v1544
    %v1546 = vsub.f32 1.0, %v1545
    %v1547 = vmul.f32 %v1544, %v1546
    %v1548 = vadd.f32 %v1544, %v1547
    %vm1549 = vweird.f32 %v1388
    %vm1550 = vweird.f32 %v1544
    %vm1551 = vmor %vm1549, %vm1550
    %v1552 = vsel %vm1551, %v1544, %v1548
    %v1553 = vand.u32 2147483647, %v1388
    %vm1554 = vcmp.eq.f32.partialorder %v1553, 8.507059e+37
    %v1555 = vand.u32 %v1388, 2147483648
    %v1556 = vor.u32 1.1754944e-38, %v1555
    %v1557 = vsel %vm1554, %v1556, %v1552
    %v1558 = vmul.f32 1.0, %v1557
    %v1559 = vrcp.pop %v1389
    %v1560 = vmul.f32 %v1389, %v1559
    %v1561 = vsub.f32 1.0, %v1560
    %v1562 = vmul.f32 %v1559, %v1561
    %v1563 = vadd.f32 %v1559, %v1562
    %vm1564 = vweird.f32 %v1389
    %vm1565 = vweird.f32 %v1559
    %vm1566 = vmor %vm1564, %vm1565
    %v1567 = vsel %vm1566, %v1559, %v1563
    %v1568 = vand.u32 2147483647, %v1389
    %vm1569 = vcmp.eq.f32.partialorder %v1568, 8.507059e+37
    %v1570 = vand.u32 %v1389, 2147483648
    %v1571 = vor.u32 1.1754944e-38, %v1570
    %v1572 = vsel %vm1569, %v1571, %v1567
    %v1573 = vmul.f32 1.0, %v1572
    %v1574 = vrcp.pop %v1390
    %v1575 = vmul.f32 %v1390, %v1574
    %v1576 = vsub.f32 1.0, %v1575
    %v1577 = vmul.f32 %v1574, %v1576
    %v1578 = vadd.f32 %v1574, %v1577
    %vm1579 = vweird.f32 %v1390
    %vm1580 = vweird.f32 %v1574
    %vm1581 = vmor %vm1579, %vm1580
    %v1582 = vsel %vm1581, %v1574, %v1578
    %v1583 = vand.u32 2147483647, %v1390
    %vm1584 = vcmp.eq.f32.partialorder %v1583, 8.507059e+37
    %v1585 = vand.u32 %v1390, 2147483648
    %v1586 = vor.u32 1.1754944e-38, %v1585
    %v1587 = vsel %vm1584, %v1586, %v1582
    %v1588 = vmul.f32 1.0, %v1587
    %v1589 = vrcp.pop %v1391
    %v1590 = vmul.f32 %v1391, %v1589
    %v1591 = vsub.f32 1.0, %v1590
    %v1592 = vmul.f32 %v1589, %v1591
    %v1593 = vadd.f32 %v1589, %v1592
    %vm1594 = vweird.f32 %v1391
    %vm1595 = vweird.f32 %v1589
    %vm1596 = vmor %vm1594, %vm1595
    %v1597 = vsel %vm1596, %v1589, %v1593
    %v1598 = vand.u32 2147483647, %v1391
    %vm1599 = vcmp.eq.f32.partialorder %v1598, 8.507059e+37
    %v1600 = vand.u32 %v1391, 2147483648
    %v1601 = vor.u32 1.1754944e-38, %v1600
    %v1602 = vsel %vm1599, %v1601, %v1597
    %v1603 = vmul.f32 1.0, %v1602
    %v1604 = vrcp.pop %v1392
    %v1605 = vmul.f32 %v1392, %v1604
    %v1606 = vsub.f32 1.0, %v1605
    %v1607 = vmul.f32 %v1604, %v1606
    %v1608 = vadd.f32 %v1604, %v1607
    %vm1609 = vweird.f32 %v1392
    %vm1610 = vweird.f32 %v1604
    %vm1611 = vmor %vm1609, %vm1610
    %v1612 = vsel %vm1611, %v1604, %v1608
    %v1613 = vand.u32 2147483647, %v1392
    %vm1614 = vcmp.eq.f32.partialorder %v1613, 8.507059e+37
    %v1615 = vand.u32 %v1392, 2147483648
    %v1616 = vor.u32 1.1754944e-38, %v1615
    %v1617 = vsel %vm1614, %v1616, %v1612
    %v1618 = vmul.f32 1.0, %v1617
    %v1619 = vrcp.pop %v1393
    %v1620 = vmul.f32 %v1393, %v1619
    %v1621 = vsub.f32 1.0, %v1620
    %v1622 = vmul.f32 %v1619, %v1621
    %v1623 = vadd.f32 %v1619, %v1622
    %vm1624 = vweird.f32 %v1393
    %vm1625 = vweird.f32 %v1619
    %vm1626 = vmor %vm1624, %vm1625
    %v1627 = vsel %vm1626, %v1619, %v1623
    %v1628 = vand.u32 2147483647, %v1393
    %vm1629 = vcmp.eq.f32.partialorder %v1628, 8.507059e+37
    %v1630 = vand.u32 %v1393, 2147483648
    %v1631 = vor.u32 1.1754944e-38, %v1630
    %v1632 = vsel %vm1629, %v1631, %v1627
    %v1633 = vmul.f32 1.0, %v1632
    %v1634 = vmul.f32 %v1088, %v955
    %v1635 = vmul.f32 %v1103, %v957
    %v1636 = vmul.f32 %v1118, %v960
    %v1637 = vmul.f32 %v1133, %v962
    %v1638 = vmul.f32 %v1148, %v965
    %v1639 = vmul.f32 %v1163, %v967
    %v1640 = vmul.f32 %v1178, %v970
    %v1641 = vmul.f32 %v1193, %v972
    %v1642 = vmul.f32 %v1208, %v975
    %v1643 = vmul.f32 %v1223, %v977
    %v1644 = vmul.f32 %v1238, %v980
    %v1645 = vmul.f32 %v1253, %v982
    %v1646 = vmul.f32 %v1268, %v985
    %v1647 = vmul.f32 %v1283, %v987
    %v1648 = vmul.f32 %v1298, %v990
    %v1649 = vmul.f32 %v1313, %v992
    %v1650 = vadd.f32 %v673, %v1634
    %v1651 = vadd.f32 %v675, %v1635
    %v1652 = vadd.f32 %v678, %v1636
    %v1653 = vadd.f32 %v680, %v1637
    %v1654 = vadd.f32 %v683, %v1638
    %v1655 = vadd.f32 %v685, %v1639
    %v1656 = vadd.f32 %v688, %v1640
    %v1657 = vadd.f32 %v690, %v1641
    %v1658 = vadd.f32 %v693, %v1642
    %v1659 = vadd.f32 %v695, %v1643
    %v1660 = vadd.f32 %v698, %v1644
    %v1661 = vadd.f32 %v700, %v1645
    %v1662 = vadd.f32 %v703, %v1646
    %v1663 = vadd.f32 %v705, %v1647
    %v1664 = vadd.f32 %v708, %v1648
    %v1665 = vadd.f32 %v710, %v1649
    %v1666 = vtanh.pop %v1650
    %v1667 = vtanh.pop %v1651
    %v1668 = vtanh.pop %v1652
    %v1669 = vtanh.pop %v1653
    %v1670 = vtanh.pop %v1654
    %v1671 = vtanh.pop %v1655
    %v1672 = vtanh.pop %v1656
    %v1673 = vtanh.pop %v1657
    %v1674 = vtanh.pop %v1658
    %v1675 = vtanh.pop %v1659
    %v1676 = vtanh.pop %v1660
    %v1677 = vtanh.pop %v1661
    %v1678 = vtanh.pop %v1662
    %v1679 = vtanh.pop %v1663
    %v1680 = vtanh.pop %v1664
    %v1681 = vtanh.pop %v1665
    %v1682 = vsub.f32 1.0, %v1408
    %v1683 = vsub.f32 1.0, %v1423
    %v1684 = vsub.f32 1.0, %v1438
    %v1685 = vsub.f32 1.0, %v1453
    %v1686 = vsub.f32 1.0, %v1468
    %v1687 = vsub.f32 1.0, %v1483
    %v1688 = vsub.f32 1.0, %v1498
    %v1689 = vsub.f32 1.0, %v1513
    %v1690 = vsub.f32 1.0, %v1528
    %v1691 = vsub.f32 1.0, %v1543
    %v1692 = vsub.f32 1.0, %v1558
    %v1693 = vsub.f32 1.0, %v1573
    %v1694 = vsub.f32 1.0, %v1588
    %v1695 = vsub.f32 1.0, %v1603
    %v1696 = vsub.f32 1.0, %v1618
    %v1697 = vsub.f32 1.0, %v1633
    %v1698 = vmul.f32 %v1682, %v1666
    %v1699 = vmul.f32 %v1683, %v1667
    %v1700 = vmul.f32 %v1684, %v1668
    %v1701 = vmul.f32 %v1685, %v1669
    %v1702 = vmul.f32 %v1686, %v1670
    %v1703 = vmul.f32 %v1687, %v1671
    %v1704 = vmul.f32 %v1688, %v1672
    %v1705 = vmul.f32 %v1689, %v1673
    %v1706 = vmul.f32 %v1690, %v1674
    %v1707 = vmul.f32 %v1691, %v1675
    %v1708 = vmul.f32 %v1692, %v1676
    %v1709 = vmul.f32 %v1693, %v1677
    %v1710 = vmul.f32 %v1694, %v1678
    %v1711 = vmul.f32 %v1695, %v1679
    %v1712 = vmul.f32 %v1696, %v1680
    %v1713 = vmul.f32 %v1697, %v1681
    %v1714 = vmul.f32 %v1408, %v188
    %v1715 = vmul.f32 %v1423, %v191
    %v1716 = vmul.f32 %v1438, %v194
    %v1717 = vmul.f32 %v1453, %v197
    %v1718 = vmul.f32 %v1468, %v200
    %v1719 = vmul.f32 %v1483, %v203
    %v1720 = vmul.f32 %v1498, %v206
    %v1721 = vmul.f32 %v1513, %v209
    %v1722 = vmul.f32 %v1528, %v212
    %v1723 = vmul.f32 %v1543, %v215
    %v1724 = vmul.f32 %v1558, %v218
    %v1725 = vmul.f32 %v1573, %v221
    %v1726 = vmul.f32 %v1588, %v224
    %v1727 = vmul.f32 %v1603, %v227
    %v1728 = vmul.f32 %v1618, %v230
    %v1729 = vmul.f32 %v1633, %v233
    %v1730 = vadd.f32 %v1698, %v1714
    %v1731 = vadd.f32 %v1699, %v1715
    %v1732 = vadd.f32 %v1700, %v1716
    %v1733 = vadd.f32 %v1701, %v1717
    %v1734 = vadd.f32 %v1702, %v1718
    %v1735 = vadd.f32 %v1703, %v1719
    %v1736 = vadd.f32 %v1704, %v1720
    %v1737 = vadd.f32 %v1705, %v1721
    %v1738 = vadd.f32 %v1706, %v1722
    %v1739 = vadd.f32 %v1707, %v1723
    %v1740 = vadd.f32 %v1708, %v1724
    %v1741 = vadd.f32 %v1709, %v1725
    %v1742 = vadd.f32 %v1710, %v1726
    %v1743 = vadd.f32 %v1711, %v1727
    %v1744 = vadd.f32 %v1712, %v1728
    %v1745 = vadd.f32 %v1713, %v1729
    %v1746 = vpack.c.bf16 %v1731, %v1730
    %v1747 = vpack.c.bf16 %v1733, %v1732
    %v1748 = vpack.c.bf16 %v1735, %v1734
    %v1749 = vpack.c.bf16 %v1737, %v1736
    %v1750 = vpack.c.bf16 %v1739, %v1738
    %v1751 = vpack.c.bf16 %v1741, %v1740
    %v1752 = vpack.c.bf16 %v1743, %v1742
    %v1753 = vpack.c.bf16 %v1745, %v1744
    %1754 = vmatpush.bf16.msra.mxu0 %v1753
    %1755 = vmatpush.bf16.msra.mxu0 %v1752
    %1756 = vmatpush.bf16.msra.mxu0 %v1751
    %1757 = vmatpush.bf16.msra.mxu0 %v1750
    %1758 = vmatpush.bf16.msra.mxu0 %v1749
    %1759 = vmatpush.bf16.msra.mxu0 %v1748
    %1760 = vmatpush.bf16.msra.mxu0 %v1747
    %1761 = vmatpush.bf16.msra.mxu0 %v1746
    %1762 = vmatmul.bf16.gmra.mxu0 %v325
    %v1763 = vpop.f32.mrf.mxu0
    %v1764 = vadd.f32 0.0, %v1763
    %v1765 = vpop.f32.mrf.mxu0
    %v1766 = vadd.f32 0.0, %v1765
    %1767 = vmatmul.bf16.gmra.mxu0 %v326
    %v1768 = vpop.f32.mrf.mxu0
    %v1769 = vadd.f32 0.0, %v1768
    %v1770 = vpop.f32.mrf.mxu0
    %v1771 = vadd.f32 0.0, %v1770
    %1772 = vmatmul.bf16.gmra.mxu0 %v327
    %v1773 = vpop.f32.mrf.mxu0
    %v1774 = vadd.f32 0.0, %v1773
    %v1775 = vpop.f32.mrf.mxu0
    %v1776 = vadd.f32 0.0, %v1775
    %1777 = vmatmul.bf16.gmra.mxu0 %v328
    %v1778 = vpop.f32.mrf.mxu0
    %v1779 = vadd.f32 0.0, %v1778
    %v1780 = vpop.f32.mrf.mxu0
    %v1781 = vadd.f32 0.0, %v1780
    %1782 = vmatmul.bf16.gmra.mxu0 %v329
    %v1783 = vpop.f32.mrf.mxu0
    %v1784 = vadd.f32 0.0, %v1783
    %v1785 = vpop.f32.mrf.mxu0
    %v1786 = vadd.f32 0.0, %v1785
    %1787 = vmatmul.bf16.gmra.mxu0 %v330
    %v1788 = vpop.f32.mrf.mxu0
    %v1789 = vadd.f32 0.0, %v1788
    %v1790 = vpop.f32.mrf.mxu0
    %v1791 = vadd.f32 0.0, %v1790
    %1792 = vmatmul.bf16.gmra.mxu0 %v331
    %v1793 = vpop.f32.mrf.mxu0
    %v1794 = vadd.f32 0.0, %v1793
    %v1795 = vpop.f32.mrf.mxu0
    %v1796 = vadd.f32 0.0, %v1795
    %1797 = vmatmul.bf16.gmra.mxu0 %v332
    %v1798 = vpop.f32.mrf.mxu0
    %v1799 = vadd.f32 0.0, %v1798
    %v1800 = vpop.f32.mrf.mxu0
    %v1801 = vadd.f32 0.0, %v1800
    %1802 = vdwg.mxu0
    %v1803 = vpack.c.bf16 %v1766, %v1764
    %v1804 = vpack.c.bf16 %v1771, %v1769
    %v1805 = vpack.c.bf16 %v1776, %v1774
    %v1806 = vpack.c.bf16 %v1781, %v1779
    %v1807 = vpack.c.bf16 %v1786, %v1784
    %v1808 = vpack.c.bf16 %v1791, %v1789
    %v1809 = vpack.c.bf16 %v1796, %v1794
    %v1810 = vpack.c.bf16 %v1801, %v1799
    %s1811 = scalar_lea.vmem [#allocation5], 192
    %v1812 = vld [vmem:[%s1811] sm:$0xff]
    %v1813 = vld [vmem:[%s1811 + $0x8] sm:$0xf]
    %v1814 = vld [vmem:[%s1811 + $0xc] sm:$0xff]
    %v1815 = vld [vmem:[%s1811 + $0x14] sm:$0xf]
    %v1816 = vld [vmem:[%s1811 + $0x18] sm:$0xff]
    %v1817 = vld [vmem:[%s1811 + $0x20] sm:$0xf]
    %v1818 = vld [vmem:[%s1811 + $0x24] sm:$0xff]
    %v1819 = vld [vmem:[%s1811 + $0x2c] sm:$0xf]
    %v1820 = vld [vmem:[%s1811 + $0x30] sm:$0xff]
    %v1821 = vld [vmem:[%s1811 + $0x38] sm:$0xf]
    %v1822 = vld [vmem:[%s1811 + $0x3c] sm:$0xff]
    %v1823 = vld [vmem:[%s1811 + $0x44] sm:$0xf]
    %v1824 = vld [vmem:[%s1811 + $0x48] sm:$0xff]
    %v1825 = vld [vmem:[%s1811 + $0x50] sm:$0xf]
    %v1826 = vld [vmem:[%s1811 + $0x54] sm:$0xff]
    %v1827 = vld [vmem:[%s1811 + $0x5c] sm:$0xf]
    %v1828 = vld [vmem:[%s1811 + $0x60] sm:$0xff]
    %v1829 = vld [vmem:[%s1811 + $0x68] sm:$0xf]
    %v1830 = vld [vmem:[%s1811 + $0x6c] sm:$0xff]
    %v1831 = vld [vmem:[%s1811 + $0x74] sm:$0xf]
    %v1832 = vld [vmem:[%s1811 + $0x78] sm:$0xff]
    %v1833 = vld [vmem:[%s1811 + $0x80] sm:$0xf]
    %v1834 = vld [vmem:[%s1811 + $0x84] sm:$0xff]
    %v1835 = vld [vmem:[%s1811 + $0x8c] sm:$0xf]
    %v1836 = vld [vmem:[%s1811 + $0x90] sm:$0xff]
    %v1837 = vld [vmem:[%s1811 + $0x98] sm:$0xf]
    %v1838 = vld [vmem:[%s1811 + $0x9c] sm:$0xff]
    %v1839 = vld [vmem:[%s1811 + $0xa4] sm:$0xf]
    %v1840 = vld [vmem:[%s1811 + $0xa8] sm:$0xff]
    %v1841 = vld [vmem:[%s1811 + $0xb0] sm:$0xf]
    %v1842 = vld [vmem:[%s1811 + $0xb4] sm:$0xff]
    %v1843 = vld [vmem:[%s1811 + $0xbc] sm:$0xf]
    %v1876 = vunpack.c.l.b16 %v1812
    %v1877 = vunpack.c.h.b16 %v1812
    %v1878 = vunpack.c.l.b16 %v1813
    %v1879 = vunpack.c.l.b16 %v1814
    %v1880 = vunpack.c.h.b16 %v1814
    %v1881 = vunpack.c.l.b16 %v1815
    %v1882 = vunpack.c.l.b16 %v1816
    %v1883 = vunpack.c.h.b16 %v1816
    %v1884 = vunpack.c.l.b16 %v1817
    %v1885 = vunpack.c.l.b16 %v1818
    %v1886 = vunpack.c.h.b16 %v1818
    %v1887 = vunpack.c.l.b16 %v1819
    %v1888 = vunpack.c.l.b16 %v1820
    %v1889 = vunpack.c.h.b16 %v1820
    %v1890 = vunpack.c.l.b16 %v1821
    %v1891 = vunpack.c.l.b16 %v1822
    %v1892 = vunpack.c.h.b16 %v1822
    %v1893 = vunpack.c.l.b16 %v1823
    %v1894 = vunpack.c.l.b16 %v1824
    %v1895 = vunpack.c.h.b16 %v1824
    %v1896 = vunpack.c.l.b16 %v1825
    %v1897 = vunpack.c.l.b16 %v1826
    %v1898 = vunpack.c.h.b16 %v1826
    %v1899 = vunpack.c.l.b16 %v1827
    %v1900 = vunpack.c.l.b16 %v1828
    %v1901 = vunpack.c.h.b16 %v1828
    %v1902 = vunpack.c.l.b16 %v1829
    %v1903 = vunpack.c.l.b16 %v1830
    %v1904 = vunpack.c.h.b16 %v1830
    %v1905 = vunpack.c.l.b16 %v1831
    %v1906 = vunpack.c.l.b16 %v1832
    %v1907 = vunpack.c.h.b16 %v1832
    %v1908 = vunpack.c.l.b16 %v1833
    %v1909 = vunpack.c.l.b16 %v1834
    %v1910 = vunpack.c.h.b16 %v1834
    %v1911 = vunpack.c.l.b16 %v1835
    %v1912 = vunpack.c.l.b16 %v1836
    %v1913 = vunpack.c.h.b16 %v1836
    %v1914 = vunpack.c.l.b16 %v1837
    %v1915 = vunpack.c.l.b16 %v1838
    %v1916 = vunpack.c.h.b16 %v1838
    %v1917 = vunpack.c.l.b16 %v1839
    %v1918 = vunpack.c.l.b16 %v1840
    %v1919 = vunpack.c.h.b16 %v1840
    %v1920 = vunpack.c.l.b16 %v1841
    %v1921 = vunpack.c.l.b16 %v1842
    %v1922 = vunpack.c.h.b16 %v1842
    %v1923 = vunpack.c.l.b16 %v1843
    %v1924 = vpack.c.b16 %v1879, %v1876
    %v1925 = vpack.c.b16 %v1880, %v1877
    %v1926 = vpack.c.b16 %v1881, %v1878
    %v1927 = vpack.c.b16 %v1885, %v1882
    %v1928 = vpack.c.b16 %v1886, %v1883
    %v1929 = vpack.c.b16 %v1887, %v1884
    %v1930 = vpack.c.b16 %v1891, %v1888
    %v1931 = vpack.c.b16 %v1892, %v1889
    %v1932 = vpack.c.b16 %v1893, %v1890
    %v1933 = vpack.c.b16 %v1897, %v1894
    %v1934 = vpack.c.b16 %v1898, %v1895
    %v1935 = vpack.c.b16 %v1899, %v1896
    %v1936 = vpack.c.b16 %v1903, %v1900
    %v1937 = vpack.c.b16 %v1904, %v1901
    %v1938 = vpack.c.b16 %v1905, %v1902
    %v1939 = vpack.c.b16 %v1909, %v1906
    %v1940 = vpack.c.b16 %v1910, %v1907
    %v1941 = vpack.c.b16 %v1911, %v1908
    %v1942 = vpack.c.b16 %v1915, %v1912
    %v1943 = vpack.c.b16 %v1916, %v1913
    %v1944 = vpack.c.b16 %v1917, %v1914
    %v1945 = vpack.c.b16 %v1921, %v1918
    %v1946 = vpack.c.b16 %v1922, %v1919
    %v1947 = vpack.c.b16 %v1923, %v1920
    %1972 = vmatpush.bf16.msra.mxu0 %v1945
    %1973 = vmatpush.bf16.msra.mxu0 %v1942
    %1974 = vmatpush.bf16.msra.mxu0 %v1939
    %1975 = vmatpush.bf16.msra.mxu0 %v1936
    %1976 = vmatpush.bf16.msra.mxu0 %v1933
    %1977 = vmatpush.bf16.msra.mxu0 %v1930
    %1978 = vmatpush.bf16.msra.mxu0 %v1927
    %1979 = vmatpush.bf16.msra.mxu0 %v1924
    %1980 = vmatmul.bf16.gmra.mxu0 %v1803
    %v1981 = vpop.f32.mrf.mxu0
    %v1982 = vadd.f32 %v431, %v1981
    %v1983 = vpop.f32.mrf.mxu0
    %v1984 = vadd.f32 %v431, %v1983
    %1985 = vmatmul.bf16.gmra.mxu0 %v1804
    %v1986 = vpop.f32.mrf.mxu0
    %v1987 = vadd.f32 %v431, %v1986
    %v1988 = vpop.f32.mrf.mxu0
    %v1989 = vadd.f32 %v431, %v1988
    %1990 = vmatmul.bf16.gmra.mxu0 %v1805
    %v1991 = vpop.f32.mrf.mxu0
    %v1992 = vadd.f32 %v431, %v1991
    %v1993 = vpop.f32.mrf.mxu0
    %v1994 = vadd.f32 %v431, %v1993
    %1995 = vmatmul.bf16.gmra.mxu0 %v1806
    %v1996 = vpop.f32.mrf.mxu0
    %v1997 = vadd.f32 %v431, %v1996
    %v1998 = vpop.f32.mrf.mxu0
    %v1999 = vadd.f32 %v431, %v1998
    %2000 = vmatmul.bf16.gmra.mxu0 %v1807
    %v2001 = vpop.f32.mrf.mxu0
    %v2002 = vadd.f32 %v431, %v2001
    %v2003 = vpop.f32.mrf.mxu0
    %v2004 = vadd.f32 %v431, %v2003
    %2005 = vmatmul.bf16.gmra.mxu0 %v1808
    %v2006 = vpop.f32.mrf.mxu0
    %v2007 = vadd.f32 %v431, %v2006
    %v2008 = vpop.f32.mrf.mxu0
    %v2009 = vadd.f32 %v431, %v2008
    %2010 = vmatmul.bf16.gmra.mxu0 %v1809
    %v2011 = vpop.f32.mrf.mxu0
    %v2012 = vadd.f32 %v431, %v2011
    %v2013 = vpop.f32.mrf.mxu0
    %v2014 = vadd.f32 %v431, %v2013
    %2015 = vmatmul.bf16.gmra.mxu0 %v1810
    %v2016 = vpop.f32.mrf.mxu0
    %v2017 = vadd.f32 %v431, %v2016
    %v2018 = vpop.f32.mrf.mxu0
    %v2019 = vadd.f32 %v431, %v2018
    %2020 = vdwg.mxu0
    %2021 = vmatpush.bf16.msra.mxu0 %v1946
    %2022 = vmatpush.bf16.msra.mxu0 %v1943
    %2023 = vmatpush.bf16.msra.mxu0 %v1940
    %2024 = vmatpush.bf16.msra.mxu0 %v1937
    %2025 = vmatpush.bf16.msra.mxu0 %v1934
    %2026 = vmatpush.bf16.msra.mxu0 %v1931
    %2027 = vmatpush.bf16.msra.mxu0 %v1928
    %2028 = vmatpush.bf16.msra.mxu0 %v1925
    %2029 = vmatmul.bf16.gmra.mxu0 %v1803
    %v2030 = vpop.f32.mrf.mxu0
    %v2031 = vadd.f32 %v432, %v2030
    %v2032 = vpop.f32.mrf.mxu0
    %v2033 = vadd.f32 %v432, %v2032
    %2034 = vmatmul.bf16.gmra.mxu0 %v1804
    %v2035 = vpop.f32.mrf.mxu0
    %v2036 = vadd.f32 %v432, %v2035
    %v2037 = vpop.f32.mrf.mxu0
    %v2038 = vadd.f32 %v432, %v2037
    %2039 = vmatmul.bf16.gmra.mxu0 %v1805
    %v2040 = vpop.f32.mrf.mxu0
    %v2041 = vadd.f32 %v432, %v2040
    %v2042 = vpop.f32.mrf.mxu0
    %v2043 = vadd.f32 %v432, %v2042
    %2044 = vmatmul.bf16.gmra.mxu0 %v1806
    %v2045 = vpop.f32.mrf.mxu0
    %v2046 = vadd.f32 %v432, %v2045
    %v2047 = vpop.f32.mrf.mxu0
    %v2048 = vadd.f32 %v432, %v2047
    %2049 = vmatmul.bf16.gmra.mxu0 %v1807
    %v2050 = vpop.f32.mrf.mxu0
    %v2051 = vadd.f32 %v432, %v2050
    %v2052 = vpop.f32.mrf.mxu0
    %v2053 = vadd.f32 %v432, %v2052
    %2054 = vmatmul.bf16.gmra.mxu0 %v1808
    %v2055 = vpop.f32.mrf.mxu0
    %v2056 = vadd.f32 %v432, %v2055
    %v2057 = vpop.f32.mrf.mxu0
    %v2058 = vadd.f32 %v432, %v2057
    %2059 = vmatmul.bf16.gmra.mxu0 %v1809
    %v2060 = vpop.f32.mrf.mxu0
    %v2061 = vadd.f32 %v432, %v2060
    %v2062 = vpop.f32.mrf.mxu0
    %v2063 = vadd.f32 %v432, %v2062
    %2064 = vmatmul.bf16.gmra.mxu0 %v1810
    %v2065 = vpop.f32.mrf.mxu0
    %v2066 = vadd.f32 %v432, %v2065
    %v2067 = vpop.f32.mrf.mxu0
    %v2068 = vadd.f32 %v432, %v2067
    %2069 = vdwg.mxu0
    %2070 = vmatpush.bf16.msra.mxu0 %v1947
    %2071 = vmatpush.bf16.msra.mxu0 %v1944
    %2072 = vmatpush.bf16.msra.mxu0 %v1941
    %2073 = vmatpush.bf16.msra.mxu0 %v1938
    %2074 = vmatpush.bf16.msra.mxu0 %v1935
    %2075 = vmatpush.bf16.msra.mxu0 %v1932
    %2076 = vmatpush.bf16.msra.mxu0 %v1929
    %2077 = vmatpush.bf16.msra.mxu0 %v1926
    %2078 = vmatmul.bf16.gmra.mxu0 %v1803
    %v2079 = vpop.f32.mrf.mxu0
    %v2080 = vadd.f32 %v433, %v2079
    %v2081 = vpop.f32.mrf.mxu0
    %v2082 = vadd.f32 %v433, %v2081
    %2083 = vmatmul.bf16.gmra.mxu0 %v1804
    %v2084 = vpop.f32.mrf.mxu0
    %v2085 = vadd.f32 %v433, %v2084
    %v2086 = vpop.f32.mrf.mxu0
    %v2087 = vadd.f32 %v433, %v2086
    %2088 = vmatmul.bf16.gmra.mxu0 %v1805
    %v2089 = vpop.f32.mrf.mxu0
    %v2090 = vadd.f32 %v433, %v2089
    %v2091 = vpop.f32.mrf.mxu0
    %v2092 = vadd.f32 %v433, %v2091
    %2093 = vmatmul.bf16.gmra.mxu0 %v1806
    %v2094 = vpop.f32.mrf.mxu0
    %v2095 = vadd.f32 %v433, %v2094
    %v2096 = vpop.f32.mrf.mxu0
    %v2097 = vadd.f32 %v433, %v2096
    %2098 = vmatmul.bf16.gmra.mxu0 %v1807
    %v2099 = vpop.f32.mrf.mxu0
    %v2100 = vadd.f32 %v433, %v2099
    %v2101 = vpop.f32.mrf.mxu0
    %v2102 = vadd.f32 %v433, %v2101
    %2103 = vmatmul.bf16.gmra.mxu0 %v1808
    %v2104 = vpop.f32.mrf.mxu0
    %v2105 = vadd.f32 %v433, %v2104
    %v2106 = vpop.f32.mrf.mxu0
    %v2107 = vadd.f32 %v433, %v2106
    %2108 = vmatmul.bf16.gmra.mxu0 %v1809
    %v2109 = vpop.f32.mrf.mxu0
    %v2110 = vadd.f32 %v433, %v2109
    %v2111 = vpop.f32.mrf.mxu0
    %v2112 = vadd.f32 %v433, %v2111
    %2113 = vmatmul.bf16.gmra.mxu0 %v1810
    %v2114 = vpop.f32.mrf.mxu0
    %v2115 = vadd.f32 %v433, %v2114
    %v2116 = vpop.f32.mrf.mxu0
    %v2117 = vadd.f32 %v433, %v2116
    %2118 = vdwg.mxu0
    %2119 = vmatpush.bf16.msra.mxu0 %v820
    %2120 = vmatpush.bf16.msra.mxu0 %v817
    %2121 = vmatpush.bf16.msra.mxu0 %v814
    %2122 = vmatpush.bf16.msra.mxu0 %v811
    %2123 = vmatpush.bf16.msra.mxu0 %v808
    %2124 = vmatpush.bf16.msra.mxu0 %v805
    %2125 = vmatpush.bf16.msra.mxu0 %v802
    %2126 = vmatpush.bf16.msra.mxu0 %v799
    %2127 = vmatmul.bf16.gmra.mxu0 %v1746
    %v2128 = vpop.f32.mrf.mxu0
    %v2129 = vadd.f32 %v713, %v2128
    %v2130 = vpop.f32.mrf.mxu0
    %v2131 = vadd.f32 %v713, %v2130
    %2132 = vmatmul.bf16.gmra.mxu0 %v1747
    %v2133 = vpop.f32.mrf.mxu0
    %v2134 = vadd.f32 %v713, %v2133
    %v2135 = vpop.f32.mrf.mxu0
    %v2136 = vadd.f32 %v713, %v2135
    %2137 = vmatmul.bf16.gmra.mxu0 %v1748
    %v2138 = vpop.f32.mrf.mxu0
    %v2139 = vadd.f32 %v713, %v2138
    %v2140 = vpop.f32.mrf.mxu0
    %v2141 = vadd.f32 %v713, %v2140
    %2142 = vmatmul.bf16.gmra.mxu0 %v1749
    %v2143 = vpop.f32.mrf.mxu0
    %v2144 = vadd.f32 %v713, %v2143
    %v2145 = vpop.f32.mrf.mxu0
    %v2146 = vadd.f32 %v713, %v2145
    %2147 = vmatmul.bf16.gmra.mxu0 %v1750
    %v2148 = vpop.f32.mrf.mxu0
    %v2149 = vadd.f32 %v713, %v2148
    %v2150 = vpop.f32.mrf.mxu0
    %v2151 = vadd.f32 %v713, %v2150
    %2152 = vmatmul.bf16.gmra.mxu0 %v1751
    %v2153 = vpop.f32.mrf.mxu0
    %v2154 = vadd.f32 %v713, %v2153
    %v2155 = vpop.f32.mrf.mxu0
    %v2156 = vadd.f32 %v713, %v2155
    %2157 = vmatmul.bf16.gmra.mxu0 %v1752
    %v2158 = vpop.f32.mrf.mxu0
    %v2159 = vadd.f32 %v713, %v2158
    %v2160 = vpop.f32.mrf.mxu0
    %v2161 = vadd.f32 %v713, %v2160
    %2162 = vmatmul.bf16.gmra.mxu0 %v1753
    %v2163 = vpop.f32.mrf.mxu0
    %v2164 = vadd.f32 %v713, %v2163
    %v2165 = vpop.f32.mrf.mxu0
    %v2166 = vadd.f32 %v713, %v2165
    %2167 = vdwg.mxu0
    %2168 = vmatpush.bf16.msra.mxu0 %v821
    %2169 = vmatpush.bf16.msra.mxu0 %v818
    %2170 = vmatpush.bf16.msra.mxu0 %v815
    %2171 = vmatpush.bf16.msra.mxu0 %v812
    %2172 = vmatpush.bf16.msra.mxu0 %v809
    %2173 = vmatpush.bf16.msra.mxu0 %v806
    %2174 = vmatpush.bf16.msra.mxu0 %v803
    %2175 = vmatpush.bf16.msra.mxu0 %v800
    %2176 = vmatmul.bf16.gmra.mxu0 %v1746
    %v2177 = vpop.f32.mrf.mxu0
    %v2178 = vadd.f32 %v714, %v2177
    %v2179 = vpop.f32.mrf.mxu0
    %v2180 = vadd.f32 %v714, %v2179
    %2181 = vmatmul.bf16.gmra.mxu0 %v1747
    %v2182 = vpop.f32.mrf.mxu0
    %v2183 = vadd.f32 %v714, %v2182
    %v2184 = vpop.f32.mrf.mxu0
    %v2185 = vadd.f32 %v714, %v2184
    %2186 = vmatmul.bf16.gmra.mxu0 %v1748
    %v2187 = vpop.f32.mrf.mxu0
    %v2188 = vadd.f32 %v714, %v2187
    %v2189 = vpop.f32.mrf.mxu0
    %v2190 = vadd.f32 %v714, %v2189
    %2191 = vmatmul.bf16.gmra.mxu0 %v1749
    %v2192 = vpop.f32.mrf.mxu0
    %v2193 = vadd.f32 %v714, %v2192
    %v2194 = vpop.f32.mrf.mxu0
    %v2195 = vadd.f32 %v714, %v2194
    %2196 = vmatmul.bf16.gmra.mxu0 %v1750
    %v2197 = vpop.f32.mrf.mxu0
    %v2198 = vadd.f32 %v714, %v2197
    %v2199 = vpop.f32.mrf.mxu0
    %v2200 = vadd.f32 %v714, %v2199
    %2201 = vmatmul.bf16.gmra.mxu0 %v1751
    %v2202 = vpop.f32.mrf.mxu0
    %v2203 = vadd.f32 %v714, %v2202
    %v2204 = vpop.f32.mrf.mxu0
    %v2205 = vadd.f32 %v714, %v2204
    %2206 = vmatmul.bf16.gmra.mxu0 %v1752
    %v2207 = vpop.f32.mrf.mxu0
    %v2208 = vadd.f32 %v714, %v2207
    %v2209 = vpop.f32.mrf.mxu0
    %v2210 = vadd.f32 %v714, %v2209
    %2211 = vmatmul.bf16.gmra.mxu0 %v1753
    %v2212 = vpop.f32.mrf.mxu0
    %v2213 = vadd.f32 %v714, %v2212
    %v2214 = vpop.f32.mrf.mxu0
    %v2215 = vadd.f32 %v714, %v2214
    %2216 = vdwg.mxu0
    %2217 = vmatpush.bf16.msra.mxu0 %v822
    %2218 = vmatpush.bf16.msra.mxu0 %v819
    %2219 = vmatpush.bf16.msra.mxu0 %v816
    %2220 = vmatpush.bf16.msra.mxu0 %v813
    %2221 = vmatpush.bf16.msra.mxu0 %v810
    %2222 = vmatpush.bf16.msra.mxu0 %v807
    %2223 = vmatpush.bf16.msra.mxu0 %v804
    %2224 = vmatpush.bf16.msra.mxu0 %v801
    %2225 = vmatmul.bf16.gmra.mxu0 %v1746
    %v2226 = vpop.f32.mrf.mxu0
    %v2227 = vadd.f32 %v715, %v2226
    %v2228 = vpop.f32.mrf.mxu0
    %v2229 = vadd.f32 %v715, %v2228
    %2230 = vmatmul.bf16.gmra.mxu0 %v1747
    %v2231 = vpop.f32.mrf.mxu0
    %v2232 = vadd.f32 %v715, %v2231
    %v2233 = vpop.f32.mrf.mxu0
    %v2234 = vadd.f32 %v715, %v2233
    %2235 = vmatmul.bf16.gmra.mxu0 %v1748
    %v2236 = vpop.f32.mrf.mxu0
    %v2237 = vadd.f32 %v715, %v2236
    %v2238 = vpop.f32.mrf.mxu0
    %v2239 = vadd.f32 %v715, %v2238
    %2240 = vmatmul.bf16.gmra.mxu0 %v1749
    %v2241 = vpop.f32.mrf.mxu0
    %v2242 = vadd.f32 %v715, %v2241
    %v2243 = vpop.f32.mrf.mxu0
    %v2244 = vadd.f32 %v715, %v2243
    %2245 = vmatmul.bf16.gmra.mxu0 %v1750
    %v2246 = vpop.f32.mrf.mxu0
    %v2247 = vadd.f32 %v715, %v2246
    %v2248 = vpop.f32.mrf.mxu0
    %v2249 = vadd.f32 %v715, %v2248
    %2250 = vmatmul.bf16.gmra.mxu0 %v1751
    %v2251 = vpop.f32.mrf.mxu0
    %v2252 = vadd.f32 %v715, %v2251
    %v2253 = vpop.f32.mrf.mxu0
    %v2254 = vadd.f32 %v715, %v2253
    %2255 = vmatmul.bf16.gmra.mxu0 %v1752
    %v2256 = vpop.f32.mrf.mxu0
    %v2257 = vadd.f32 %v715, %v2256
    %v2258 = vpop.f32.mrf.mxu0
    %v2259 = vadd.f32 %v715, %v2258
    %2260 = vmatmul.bf16.gmra.mxu0 %v1753
    %v2261 = vpop.f32.mrf.mxu0
    %v2262 = vadd.f32 %v715, %v2261
    %v2263 = vpop.f32.mrf.mxu0
    %v2264 = vadd.f32 %v715, %v2263
    %2265 = vdwg.mxu0
    %v2266 = vadd.f32 %v1982, %v2129
    %v2267 = vadd.f32 %v1984, %v2131
    %v2268 = vadd.f32 %v1987, %v2134
    %v2269 = vadd.f32 %v1989, %v2136
    %v2270 = vadd.f32 %v1992, %v2139
    %v2271 = vadd.f32 %v1994, %v2141
    %v2272 = vadd.f32 %v1997, %v2144
    %v2273 = vadd.f32 %v1999, %v2146
    %v2274 = vadd.f32 %v2002, %v2149
    %v2275 = vadd.f32 %v2004, %v2151
    %v2276 = vadd.f32 %v2007, %v2154
    %v2277 = vadd.f32 %v2009, %v2156
    %v2278 = vadd.f32 %v2012, %v2159
    %v2279 = vadd.f32 %v2014, %v2161
    %v2280 = vadd.f32 %v2017, %v2164
    %v2281 = vadd.f32 %v2019, %v2166
    %v2282 = vxor.u32 %v2266, 2147483648
    %v2283 = vxor.u32 %v2267, 2147483648
    %v2284 = vxor.u32 %v2268, 2147483648
    %v2285 = vxor.u32 %v2269, 2147483648
    %v2286 = vxor.u32 %v2270, 2147483648
    %v2287 = vxor.u32 %v2271, 2147483648
    %v2288 = vxor.u32 %v2272, 2147483648
    %v2289 = vxor.u32 %v2273, 2147483648
    %v2290 = vxor.u32 %v2274, 2147483648
    %v2291 = vxor.u32 %v2275, 2147483648
    %v2292 = vxor.u32 %v2276, 2147483648
    %v2293 = vxor.u32 %v2277, 2147483648
    %v2294 = vxor.u32 %v2278, 2147483648
    %v2295 = vxor.u32 %v2279, 2147483648
    %v2296 = vxor.u32 %v2280, 2147483648
    %v2297 = vxor.u32 %v2281, 2147483648
    %v2298 = vmul.f32 %v2282, 1.442695
    %v2299 = vpow.pop %v2298
    %v2300 = vmul.f32 %v2283, 1.442695
    %v2301 = vpow.pop %v2300
    %v2302 = vmul.f32 %v2284, 1.442695
    %v2303 = vpow.pop %v2302
    %v2304 = vmul.f32 %v2285, 1.442695
    %v2305 = vpow.pop %v2304
    %v2306 = vmul.f32 %v2286, 1.442695
    %v2307 = vpow.pop %v2306
    %v2308 = vmul.f32 %v2287, 1.442695
    %v2309 = vpow.pop %v2308
    %v2310 = vmul.f32 %v2288, 1.442695
    %v2311 = vpow.pop %v2310
    %v2312 = vmul.f32 %v2289, 1.442695
    %v2313 = vpow.pop %v2312
    %v2314 = vmul.f32 %v2290, 1.442695
    %v2315 = vpow.pop %v2314
    %v2316 = vmul.f32 %v2291, 1.442695
    %v2317 = vpow.pop %v2316
    %v2318 = vmul.f32 %v2292, 1.442695
    %v2319 = vpow.pop %v2318
    %v2320 = vmul.f32 %v2293, 1.442695
    %v2321 = vpow.pop %v2320
    %v2322 = vmul.f32 %v2294, 1.442695
    %v2323 = vpow.pop %v2322
    %v2324 = vmul.f32 %v2295, 1.442695
    %v2325 = vpow.pop %v2324
    %v2326 = vmul.f32 %v2296, 1.442695
    %v2327 = vpow.pop %v2326
    %v2328 = vmul.f32 %v2297, 1.442695
    %v2329 = vpow.pop %v2328
    %v2330 = vadd.f32 %v2299, 1.0
    %v2331 = vadd.f32 %v2301, 1.0
    %v2332 = vadd.f32 %v2303, 1.0
    %v2333 = vadd.f32 %v2305, 1.0
    %v2334 = vadd.f32 %v2307, 1.0
    %v2335 = vadd.f32 %v2309, 1.0
    %v2336 = vadd.f32 %v2311, 1.0
    %v2337 = vadd.f32 %v2313, 1.0
    %v2338 = vadd.f32 %v2315, 1.0
    %v2339 = vadd.f32 %v2317, 1.0
    %v2340 = vadd.f32 %v2319, 1.0
    %v2341 = vadd.f32 %v2321, 1.0
    %v2342 = vadd.f32 %v2323, 1.0
    %v2343 = vadd.f32 %v2325, 1.0
    %v2344 = vadd.f32 %v2327, 1.0
    %v2345 = vadd.f32 %v2329, 1.0
    %v2346 = vrcp.pop %v2330
    %v2347 = vmul.f32 %v2330, %v2346
    %v2348 = vsub.f32 1.0, %v2347
    %v2349 = vmul.f32 %v2346, %v2348
    %v2350 = vadd.f32 %v2346, %v2349
    %vm2351 = vweird.f32 %v2330
    %vm2352 = vweird.f32 %v2346
    %vm2353 = vmor %vm2351, %vm2352
    %v2354 = vsel %vm2353, %v2346, %v2350
    %v2355 = vand.u32 2147483647, %v2330
    %vm2356 = vcmp.eq.f32.partialorder %v2355, 8.507059e+37
    %v2357 = vand.u32 %v2330, 2147483648
    %v2358 = vor.u32 1.1754944e-38, %v2357
    %v2359 = vsel %vm2356, %v2358, %v2354
    %v2360 = vmul.f32 1.0, %v2359
    %v2361 = vrcp.pop %v2331
    %v2362 = vmul.f32 %v2331, %v2361
    %v2363 = vsub.f32 1.0, %v2362
    %v2364 = vmul.f32 %v2361, %v2363
    %v2365 = vadd.f32 %v2361, %v2364
    %vm2366 = vweird.f32 %v2331
    %vm2367 = vweird.f32 %v2361
    %vm2368 = vmor %vm2366, %vm2367
    %v2369 = vsel %vm2368, %v2361, %v2365
    %v2370 = vand.u32 2147483647, %v2331
    %vm2371 = vcmp.eq.f32.partialorder %v2370, 8.507059e+37
    %v2372 = vand.u32 %v2331, 2147483648
    %v2373 = vor.u32 1.1754944e-38, %v2372
    %v2374 = vsel %vm2371, %v2373, %v2369
    %v2375 = vmul.f32 1.0, %v2374
    %v2376 = vrcp.pop %v2332
    %v2377 = vmul.f32 %v2332, %v2376
    %v2378 = vsub.f32 1.0, %v2377
    %v2379 = vmul.f32 %v2376, %v2378
    %v2380 = vadd.f32 %v2376, %v2379
    %vm2381 = vweird.f32 %v2332
    %vm2382 = vweird.f32 %v2376
    %vm2383 = vmor %vm2381, %vm2382
    %v2384 = vsel %vm2383, %v2376, %v2380
    %v2385 = vand.u32 2147483647, %v2332
    %vm2386 = vcmp.eq.f32.partialorder %v2385, 8.507059e+37
    %v2387 = vand.u32 %v2332, 2147483648
    %v2388 = vor.u32 1.1754944e-38, %v2387
    %v2389 = vsel %vm2386, %v2388, %v2384
    %v2390 = vmul.f32 1.0, %v2389
    %v2391 = vrcp.pop %v2333
    %v2392 = vmul.f32 %v2333, %v2391
    %v2393 = vsub.f32 1.0, %v2392
    %v2394 = vmul.f32 %v2391, %v2393
    %v2395 = vadd.f32 %v2391, %v2394
    %vm2396 = vweird.f32 %v2333
    %vm2397 = vweird.f32 %v2391
    %vm2398 = vmor %vm2396, %vm2397
    %v2399 = vsel %vm2398, %v2391, %v2395
    %v2400 = vand.u32 2147483647, %v2333
    %vm2401 = vcmp.eq.f32.partialorder %v2400, 8.507059e+37
    %v2402 = vand.u32 %v2333, 2147483648
    %v2403 = vor.u32 1.1754944e-38, %v2402
    %v2404 = vsel %vm2401, %v2403, %v2399
    %v2405 = vmul.f32 1.0, %v2404
    %v2406 = vrcp.pop %v2334
    %v2407 = vmul.f32 %v2334, %v2406
    %v2408 = vsub.f32 1.0, %v2407
    %v2409 = vmul.f32 %v2406, %v2408
    %v2410 = vadd.f32 %v2406, %v2409
    %vm2411 = vweird.f32 %v2334
    %vm2412 = vweird.f32 %v2406
    %vm2413 = vmor %vm2411, %vm2412
    %v2414 = vsel %vm2413, %v2406, %v2410
    %v2415 = vand.u32 2147483647, %v2334
    %vm2416 = vcmp.eq.f32.partialorder %v2415, 8.507059e+37
    %v2417 = vand.u32 %v2334, 2147483648
    %v2418 = vor.u32 1.1754944e-38, %v2417
    %v2419 = vsel %vm2416, %v2418, %v2414
    %v2420 = vmul.f32 1.0, %v2419
    %v2421 = vrcp.pop %v2335
    %v2422 = vmul.f32 %v2335, %v2421
    %v2423 = vsub.f32 1.0, %v2422
    %v2424 = vmul.f32 %v2421, %v2423
    %v2425 = vadd.f32 %v2421, %v2424
    %vm2426 = vweird.f32 %v2335
    %vm2427 = vweird.f32 %v2421
    %vm2428 = vmor %vm2426, %vm2427
    %v2429 = vsel %vm2428, %v2421, %v2425
    %v2430 = vand.u32 2147483647, %v2335
    %vm2431 = vcmp.eq.f32.partialorder %v2430, 8.507059e+37
    %v2432 = vand.u32 %v2335, 2147483648
    %v2433 = vor.u32 1.1754944e-38, %v2432
    %v2434 = vsel %vm2431, %v2433, %v2429
    %v2435 = vmul.f32 1.0, %v2434
    %v2436 = vrcp.pop %v2336
    %v2437 = vmul.f32 %v2336, %v2436
    %v2438 = vsub.f32 1.0, %v2437
    %v2439 = vmul.f32 %v2436, %v2438
    %v2440 = vadd.f32 %v2436, %v2439
    %vm2441 = vweird.f32 %v2336
    %vm2442 = vweird.f32 %v2436
    %vm2443 = vmor %vm2441, %vm2442
    %v2444 = vsel %vm2443, %v2436, %v2440
    %v2445 = vand.u32 2147483647, %v2336
    %vm2446 = vcmp.eq.f32.partialorder %v2445, 8.507059e+37
    %v2447 = vand.u32 %v2336, 2147483648
    %v2448 = vor.u32 1.1754944e-38, %v2447
    %v2449 = vsel %vm2446, %v2448, %v2444
    %v2450 = vmul.f32 1.0, %v2449
    %v2451 = vrcp.pop %v2337
    %v2452 = vmul.f32 %v2337, %v2451
    %v2453 = vsub.f32 1.0, %v2452
    %v2454 = vmul.f32 %v2451, %v2453
    %v2455 = vadd.f32 %v2451, %v2454
    %vm2456 = vweird.f32 %v2337
    %vm2457 = vweird.f32 %v2451
    %vm2458 = vmor %vm2456, %vm2457
    %v2459 = vsel %vm2458, %v2451, %v2455
    %v2460 = vand.u32 2147483647, %v2337
    %vm2461 = vcmp.eq.f32.partialorder %v2460, 8.507059e+37
    %v2462 = vand.u32 %v2337, 2147483648
    %v2463 = vor.u32 1.1754944e-38, %v2462
    %v2464 = vsel %vm2461, %v2463, %v2459
    %v2465 = vmul.f32 1.0, %v2464
    %v2466 = vrcp.pop %v2338
    %v2467 = vmul.f32 %v2338, %v2466
    %v2468 = vsub.f32 1.0, %v2467
    %v2469 = vmul.f32 %v2466, %v2468
    %v2470 = vadd.f32 %v2466, %v2469
    %vm2471 = vweird.f32 %v2338
    %vm2472 = vweird.f32 %v2466
    %vm2473 = vmor %vm2471, %vm2472
    %v2474 = vsel %vm2473, %v2466, %v2470
    %v2475 = vand.u32 2147483647, %v2338
    %vm2476 = vcmp.eq.f32.partialorder %v2475, 8.507059e+37
    %v2477 = vand.u32 %v2338, 2147483648
    %v2478 = vor.u32 1.1754944e-38, %v2477
    %v2479 = vsel %vm2476, %v2478, %v2474
    %v2480 = vmul.f32 1.0, %v2479
    %v2481 = vrcp.pop %v2339
    %v2482 = vmul.f32 %v2339, %v2481
    %v2483 = vsub.f32 1.0, %v2482
    %v2484 = vmul.f32 %v2481, %v2483
    %v2485 = vadd.f32 %v2481, %v2484
    %vm2486 = vweird.f32 %v2339
    %vm2487 = vweird.f32 %v2481
    %vm2488 = vmor %vm2486, %vm2487
    %v2489 = vsel %vm2488, %v2481, %v2485
    %v2490 = vand.u32 2147483647, %v2339
    %vm2491 = vcmp.eq.f32.partialorder %v2490, 8.507059e+37
    %v2492 = vand.u32 %v2339, 2147483648
    %v2493 = vor.u32 1.1754944e-38, %v2492
    %v2494 = vsel %vm2491, %v2493, %v2489
    %v2495 = vmul.f32 1.0, %v2494
    %v2496 = vrcp.pop %v2340
    %v2497 = vmul.f32 %v2340, %v2496
    %v2498 = vsub.f32 1.0, %v2497
    %v2499 = vmul.f32 %v2496, %v2498
    %v2500 = vadd.f32 %v2496, %v2499
    %vm2501 = vweird.f32 %v2340
    %vm2502 = vweird.f32 %v2496
    %vm2503 = vmor %vm2501, %vm2502
    %v2504 = vsel %vm2503, %v2496, %v2500
    %v2505 = vand.u32 2147483647, %v2340
    %vm2506 = vcmp.eq.f32.partialorder %v2505, 8.507059e+37
    %v2507 = vand.u32 %v2340, 2147483648
    %v2508 = vor.u32 1.1754944e-38, %v2507
    %v2509 = vsel %vm2506, %v2508, %v2504
    %v2510 = vmul.f32 1.0, %v2509
    %v2511 = vrcp.pop %v2341
    %v2512 = vmul.f32 %v2341, %v2511
    %v2513 = vsub.f32 1.0, %v2512
    %v2514 = vmul.f32 %v2511, %v2513
    %v2515 = vadd.f32 %v2511, %v2514
    %vm2516 = vweird.f32 %v2341
    %vm2517 = vweird.f32 %v2511
    %vm2518 = vmor %vm2516, %vm2517
    %v2519 = vsel %vm2518, %v2511, %v2515
    %v2520 = vand.u32 2147483647, %v2341
    %vm2521 = vcmp.eq.f32.partialorder %v2520, 8.507059e+37
    %v2522 = vand.u32 %v2341, 2147483648
    %v2523 = vor.u32 1.1754944e-38, %v2522
    %v2524 = vsel %vm2521, %v2523, %v2519
    %v2525 = vmul.f32 1.0, %v2524
    %v2526 = vrcp.pop %v2342
    %v2527 = vmul.f32 %v2342, %v2526
    %v2528 = vsub.f32 1.0, %v2527
    %v2529 = vmul.f32 %v2526, %v2528
    %v2530 = vadd.f32 %v2526, %v2529
    %vm2531 = vweird.f32 %v2342
    %vm2532 = vweird.f32 %v2526
    %vm2533 = vmor %vm2531, %vm2532
    %v2534 = vsel %vm2533, %v2526, %v2530
    %v2535 = vand.u32 2147483647, %v2342
    %vm2536 = vcmp.eq.f32.partialorder %v2535, 8.507059e+37
    %v2537 = vand.u32 %v2342, 2147483648
    %v2538 = vor.u32 1.1754944e-38, %v2537
    %v2539 = vsel %vm2536, %v2538, %v2534
    %v2540 = vmul.f32 1.0, %v2539
    %v2541 = vrcp.pop %v2343
    %v2542 = vmul.f32 %v2343, %v2541
    %v2543 = vsub.f32 1.0, %v2542
    %v2544 = vmul.f32 %v2541, %v2543
    %v2545 = vadd.f32 %v2541, %v2544
    %vm2546 = vweird.f32 %v2343
    %vm2547 = vweird.f32 %v2541
    %vm2548 = vmor %vm2546, %vm2547
    %v2549 = vsel %vm2548, %v2541, %v2545
    %v2550 = vand.u32 2147483647, %v2343
    %vm2551 = vcmp.eq.f32.partialorder %v2550, 8.507059e+37
    %v2552 = vand.u32 %v2343, 2147483648
    %v2553 = vor.u32 1.1754944e-38, %v2552
    %v2554 = vsel %vm2551, %v2553, %v2549
    %v2555 = vmul.f32 1.0, %v2554
    %v2556 = vrcp.pop %v2344
    %v2557 = vmul.f32 %v2344, %v2556
    %v2558 = vsub.f32 1.0, %v2557
    %v2559 = vmul.f32 %v2556, %v2558
    %v2560 = vadd.f32 %v2556, %v2559
    %vm2561 = vweird.f32 %v2344
    %vm2562 = vweird.f32 %v2556
    %vm2563 = vmor %vm2561, %vm2562
    %v2564 = vsel %vm2563, %v2556, %v2560
    %v2565 = vand.u32 2147483647, %v2344
    %vm2566 = vcmp.eq.f32.partialorder %v2565, 8.507059e+37
    %v2567 = vand.u32 %v2344, 2147483648
    %v2568 = vor.u32 1.1754944e-38, %v2567
    %v2569 = vsel %vm2566, %v2568, %v2564
    %v2570 = vmul.f32 1.0, %v2569
    %v2571 = vrcp.pop %v2345
    %v2572 = vmul.f32 %v2345, %v2571
    %v2573 = vsub.f32 1.0, %v2572
    %v2574 = vmul.f32 %v2571, %v2573
    %v2575 = vadd.f32 %v2571, %v2574
    %vm2576 = vweird.f32 %v2345
    %vm2577 = vweird.f32 %v2571
    %vm2578 = vmor %vm2576, %vm2577
    %v2579 = vsel %vm2578, %v2571, %v2575
    %v2580 = vand.u32 2147483647, %v2345
    %vm2581 = vcmp.eq.f32.partialorder %v2580, 8.507059e+37
    %v2582 = vand.u32 %v2345, 2147483648
    %v2583 = vor.u32 1.1754944e-38, %v2582
    %v2584 = vsel %vm2581, %v2583, %v2579
    %v2585 = vmul.f32 1.0, %v2584
    %v2586 = vadd.f32 %v2031, %v2178
    %v2587 = vadd.f32 %v2033, %v2180
    %v2588 = vadd.f32 %v2036, %v2183
    %v2589 = vadd.f32 %v2038, %v2185
    %v2590 = vadd.f32 %v2041, %v2188
    %v2591 = vadd.f32 %v2043, %v2190
    %v2592 = vadd.f32 %v2046, %v2193
    %v2593 = vadd.f32 %v2048, %v2195
    %v2594 = vadd.f32 %v2051, %v2198
    %v2595 = vadd.f32 %v2053, %v2200
    %v2596 = vadd.f32 %v2056, %v2203
    %v2597 = vadd.f32 %v2058, %v2205
    %v2598 = vadd.f32 %v2061, %v2208
    %v2599 = vadd.f32 %v2063, %v2210
    %v2600 = vadd.f32 %v2066, %v2213
    %v2601 = vadd.f32 %v2068, %v2215
    %v2602 = vxor.u32 %v2586, 2147483648
    %v2603 = vxor.u32 %v2587, 2147483648
    %v2604 = vxor.u32 %v2588, 2147483648
    %v2605 = vxor.u32 %v2589, 2147483648
    %v2606 = vxor.u32 %v2590, 2147483648
    %v2607 = vxor.u32 %v2591, 2147483648
    %v2608 = vxor.u32 %v2592, 2147483648
    %v2609 = vxor.u32 %v2593, 2147483648
    %v2610 = vxor.u32 %v2594, 2147483648
    %v2611 = vxor.u32 %v2595, 2147483648
    %v2612 = vxor.u32 %v2596, 2147483648
    %v2613 = vxor.u32 %v2597, 2147483648
    %v2614 = vxor.u32 %v2598, 2147483648
    %v2615 = vxor.u32 %v2599, 2147483648
    %v2616 = vxor.u32 %v2600, 2147483648
    %v2617 = vxor.u32 %v2601, 2147483648
    %v2618 = vmul.f32 %v2602, 1.442695
    %v2619 = vpow.pop %v2618
    %v2620 = vmul.f32 %v2603, 1.442695
    %v2621 = vpow.pop %v2620
    %v2622 = vmul.f32 %v2604, 1.442695
    %v2623 = vpow.pop %v2622
    %v2624 = vmul.f32 %v2605, 1.442695
    %v2625 = vpow.pop %v2624
    %v2626 = vmul.f32 %v2606, 1.442695
    %v2627 = vpow.pop %v2626
    %v2628 = vmul.f32 %v2607, 1.442695
    %v2629 = vpow.pop %v2628
    %v2630 = vmul.f32 %v2608, 1.442695
    %v2631 = vpow.pop %v2630
    %v2632 = vmul.f32 %v2609, 1.442695
    %v2633 = vpow.pop %v2632
    %v2634 = vmul.f32 %v2610, 1.442695
    %v2635 = vpow.pop %v2634
    %v2636 = vmul.f32 %v2611, 1.442695
    %v2637 = vpow.pop %v2636
    %v2638 = vmul.f32 %v2612, 1.442695
    %v2639 = vpow.pop %v2638
    %v2640 = vmul.f32 %v2613, 1.442695
    %v2641 = vpow.pop %v2640
    %v2642 = vmul.f32 %v2614, 1.442695
    %v2643 = vpow.pop %v2642
    %v2644 = vmul.f32 %v2615, 1.442695
    %v2645 = vpow.pop %v2644
    %v2646 = vmul.f32 %v2616, 1.442695
    %v2647 = vpow.pop %v2646
    %v2648 = vmul.f32 %v2617, 1.442695
    %v2649 = vpow.pop %v2648
    %v2650 = vadd.f32 %v2619, 1.0
    %v2651 = vadd.f32 %v2621, 1.0
    %v2652 = vadd.f32 %v2623, 1.0
    %v2653 = vadd.f32 %v2625, 1.0
    %v2654 = vadd.f32 %v2627, 1.0
    %v2655 = vadd.f32 %v2629, 1.0
    %v2656 = vadd.f32 %v2631, 1.0
    %v2657 = vadd.f32 %v2633, 1.0
    %v2658 = vadd.f32 %v2635, 1.0
    %v2659 = vadd.f32 %v2637, 1.0
    %v2660 = vadd.f32 %v2639, 1.0
    %v2661 = vadd.f32 %v2641, 1.0
    %v2662 = vadd.f32 %v2643, 1.0
    %v2663 = vadd.f32 %v2645, 1.0
    %v2664 = vadd.f32 %v2647, 1.0
    %v2665 = vadd.f32 %v2649, 1.0
    %v2666 = vrcp.pop %v2650
    %v2667 = vmul.f32 %v2650, %v2666
    %v2668 = vsub.f32 1.0, %v2667
    %v2669 = vmul.f32 %v2666, %v2668
    %v2670 = vadd.f32 %v2666, %v2669
    %vm2671 = vweird.f32 %v2650
    %vm2672 = vweird.f32 %v2666
    %vm2673 = vmor %vm2671, %vm2672
    %v2674 = vsel %vm2673, %v2666, %v2670
    %v2675 = vand.u32 2147483647, %v2650
    %vm2676 = vcmp.eq.f32.partialorder %v2675, 8.507059e+37
    %v2677 = vand.u32 %v2650, 2147483648
    %v2678 = vor.u32 1.1754944e-38, %v2677
    %v2679 = vsel %vm2676, %v2678, %v2674
    %v2680 = vmul.f32 1.0, %v2679
    %v2681 = vrcp.pop %v2651
    %v2682 = vmul.f32 %v2651, %v2681
    %v2683 = vsub.f32 1.0, %v2682
    %v2684 = vmul.f32 %v2681, %v2683
    %v2685 = vadd.f32 %v2681, %v2684
    %vm2686 = vweird.f32 %v2651
    %vm2687 = vweird.f32 %v2681
    %vm2688 = vmor %vm2686, %vm2687
    %v2689 = vsel %vm2688, %v2681, %v2685
    %v2690 = vand.u32 2147483647, %v2651
    %vm2691 = vcmp.eq.f32.partialorder %v2690, 8.507059e+37
    %v2692 = vand.u32 %v2651, 2147483648
    %v2693 = vor.u32 1.1754944e-38, %v2692
    %v2694 = vsel %vm2691, %v2693, %v2689
    %v2695 = vmul.f32 1.0, %v2694
    %v2696 = vrcp.pop %v2652
    %v2697 = vmul.f32 %v2652, %v2696
    %v2698 = vsub.f32 1.0, %v2697
    %v2699 = vmul.f32 %v2696, %v2698
    %v2700 = vadd.f32 %v2696, %v2699
    %vm2701 = vweird.f32 %v2652
    %vm2702 = vweird.f32 %v2696
    %vm2703 = vmor %vm2701, %vm2702
    %v2704 = vsel %vm2703, %v2696, %v2700
    %v2705 = vand.u32 2147483647, %v2652
    %vm2706 = vcmp.eq.f32.partialorder %v2705, 8.507059e+37
    %v2707 = vand.u32 %v2652, 2147483648
    %v2708 = vor.u32 1.1754944e-38, %v2707
    %v2709 = vsel %vm2706, %v2708, %v2704
    %v2710 = vmul.f32 1.0, %v2709
    %v2711 = vrcp.pop %v2653
    %v2712 = vmul.f32 %v2653, %v2711
    %v2713 = vsub.f32 1.0, %v2712
    %v2714 = vmul.f32 %v2711, %v2713
    %v2715 = vadd.f32 %v2711, %v2714
    %vm2716 = vweird.f32 %v2653
    %vm2717 = vweird.f32 %v2711
    %vm2718 = vmor %vm2716, %vm2717
    %v2719 = vsel %vm2718, %v2711, %v2715
    %v2720 = vand.u32 2147483647, %v2653
    %vm2721 = vcmp.eq.f32.partialorder %v2720, 8.507059e+37
    %v2722 = vand.u32 %v2653, 2147483648
    %v2723 = vor.u32 1.1754944e-38, %v2722
    %v2724 = vsel %vm2721, %v2723, %v2719
    %v2725 = vmul.f32 1.0, %v2724
    %v2726 = vrcp.pop %v2654
    %v2727 = vmul.f32 %v2654, %v2726
    %v2728 = vsub.f32 1.0, %v2727
    %v2729 = vmul.f32 %v2726, %v2728
    %v2730 = vadd.f32 %v2726, %v2729
    %vm2731 = vweird.f32 %v2654
    %vm2732 = vweird.f32 %v2726
    %vm2733 = vmor %vm2731, %vm2732
    %v2734 = vsel %vm2733, %v2726, %v2730
    %v2735 = vand.u32 2147483647, %v2654
    %vm2736 = vcmp.eq.f32.partialorder %v2735, 8.507059e+37
    %v2737 = vand.u32 %v2654, 2147483648
    %v2738 = vor.u32 1.1754944e-38, %v2737
    %v2739 = vsel %vm2736, %v2738, %v2734
    %v2740 = vmul.f32 1.0, %v2739
    %v2741 = vrcp.pop %v2655
    %v2742 = vmul.f32 %v2655, %v2741
    %v2743 = vsub.f32 1.0, %v2742
    %v2744 = vmul.f32 %v2741, %v2743
    %v2745 = vadd.f32 %v2741, %v2744
    %vm2746 = vweird.f32 %v2655
    %vm2747 = vweird.f32 %v2741
    %vm2748 = vmor %vm2746, %vm2747
    %v2749 = vsel %vm2748, %v2741, %v2745
    %v2750 = vand.u32 2147483647, %v2655
    %vm2751 = vcmp.eq.f32.partialorder %v2750, 8.507059e+37
    %v2752 = vand.u32 %v2655, 2147483648
    %v2753 = vor.u32 1.1754944e-38, %v2752
    %v2754 = vsel %vm2751, %v2753, %v2749
    %v2755 = vmul.f32 1.0, %v2754
    %v2756 = vrcp.pop %v2656
    %v2757 = vmul.f32 %v2656, %v2756
    %v2758 = vsub.f32 1.0, %v2757
    %v2759 = vmul.f32 %v2756, %v2758
    %v2760 = vadd.f32 %v2756, %v2759
    %vm2761 = vweird.f32 %v2656
    %vm2762 = vweird.f32 %v2756
    %vm2763 = vmor %vm2761, %vm2762
    %v2764 = vsel %vm2763, %v2756, %v2760
    %v2765 = vand.u32 2147483647, %v2656
    %vm2766 = vcmp.eq.f32.partialorder %v2765, 8.507059e+37
    %v2767 = vand.u32 %v2656, 2147483648
    %v2768 = vor.u32 1.1754944e-38, %v2767
    %v2769 = vsel %vm2766, %v2768, %v2764
    %v2770 = vmul.f32 1.0, %v2769
    %v2771 = vrcp.pop %v2657
    %v2772 = vmul.f32 %v2657, %v2771
    %v2773 = vsub.f32 1.0, %v2772
    %v2774 = vmul.f32 %v2771, %v2773
    %v2775 = vadd.f32 %v2771, %v2774
    %vm2776 = vweird.f32 %v2657
    %vm2777 = vweird.f32 %v2771
    %vm2778 = vmor %vm2776, %vm2777
    %v2779 = vsel %vm2778, %v2771, %v2775
    %v2780 = vand.u32 2147483647, %v2657
    %vm2781 = vcmp.eq.f32.partialorder %v2780, 8.507059e+37
    %v2782 = vand.u32 %v2657, 2147483648
    %v2783 = vor.u32 1.1754944e-38, %v2782
    %v2784 = vsel %vm2781, %v2783, %v2779
    %v2785 = vmul.f32 1.0, %v2784
    %v2786 = vrcp.pop %v2658
    %v2787 = vmul.f32 %v2658, %v2786
    %v2788 = vsub.f32 1.0, %v2787
    %v2789 = vmul.f32 %v2786, %v2788
    %v2790 = vadd.f32 %v2786, %v2789
    %vm2791 = vweird.f32 %v2658
    %vm2792 = vweird.f32 %v2786
    %vm2793 = vmor %vm2791, %vm2792
    %v2794 = vsel %vm2793, %v2786, %v2790
    %v2795 = vand.u32 2147483647, %v2658
    %vm2796 = vcmp.eq.f32.partialorder %v2795, 8.507059e+37
    %v2797 = vand.u32 %v2658, 2147483648
    %v2798 = vor.u32 1.1754944e-38, %v2797
    %v2799 = vsel %vm2796, %v2798, %v2794
    %v2800 = vmul.f32 1.0, %v2799
    %v2801 = vrcp.pop %v2659
    %v2802 = vmul.f32 %v2659, %v2801
    %v2803 = vsub.f32 1.0, %v2802
    %v2804 = vmul.f32 %v2801, %v2803
    %v2805 = vadd.f32 %v2801, %v2804
    %vm2806 = vweird.f32 %v2659
    %vm2807 = vweird.f32 %v2801
    %vm2808 = vmor %vm2806, %vm2807
    %v2809 = vsel %vm2808, %v2801, %v2805
    %v2810 = vand.u32 2147483647, %v2659
    %vm2811 = vcmp.eq.f32.partialorder %v2810, 8.507059e+37
    %v2812 = vand.u32 %v2659, 2147483648
    %v2813 = vor.u32 1.1754944e-38, %v2812
    %v2814 = vsel %vm2811, %v2813, %v2809
    %v2815 = vmul.f32 1.0, %v2814
    %v2816 = vrcp.pop %v2660
    %v2817 = vmul.f32 %v2660, %v2816
    %v2818 = vsub.f32 1.0, %v2817
    %v2819 = vmul.f32 %v2816, %v2818
    %v2820 = vadd.f32 %v2816, %v2819
    %vm2821 = vweird.f32 %v2660
    %vm2822 = vweird.f32 %v2816
    %vm2823 = vmor %vm2821, %vm2822
    %v2824 = vsel %vm2823, %v2816, %v2820
    %v2825 = vand.u32 2147483647, %v2660
    %vm2826 = vcmp.eq.f32.partialorder %v2825, 8.507059e+37
    %v2827 = vand.u32 %v2660, 2147483648
    %v2828 = vor.u32 1.1754944e-38, %v2827
    %v2829 = vsel %vm2826, %v2828, %v2824
    %v2830 = vmul.f32 1.0, %v2829
    %v2831 = vrcp.pop %v2661
    %v2832 = vmul.f32 %v2661, %v2831
    %v2833 = vsub.f32 1.0, %v2832
    %v2834 = vmul.f32 %v2831, %v2833
    %v2835 = vadd.f32 %v2831, %v2834
    %vm2836 = vweird.f32 %v2661
    %vm2837 = vweird.f32 %v2831
    %vm2838 = vmor %vm2836, %vm2837
    %v2839 = vsel %vm2838, %v2831, %v2835
    %v2840 = vand.u32 2147483647, %v2661
    %vm2841 = vcmp.eq.f32.partialorder %v2840, 8.507059e+37
    %v2842 = vand.u32 %v2661, 2147483648
    %v2843 = vor.u32 1.1754944e-38, %v2842
    %v2844 = vsel %vm2841, %v2843, %v2839
    %v2845 = vmul.f32 1.0, %v2844
    %v2846 = vrcp.pop %v2662
    %v2847 = vmul.f32 %v2662, %v2846
    %v2848 = vsub.f32 1.0, %v2847
    %v2849 = vmul.f32 %v2846, %v2848
    %v2850 = vadd.f32 %v2846, %v2849
    %vm2851 = vweird.f32 %v2662
    %vm2852 = vweird.f32 %v2846
    %vm2853 = vmor %vm2851, %vm2852
    %v2854 = vsel %vm2853, %v2846, %v2850
    %v2855 = vand.u32 2147483647, %v2662
    %vm2856 = vcmp.eq.f32.partialorder %v2855, 8.507059e+37
    %v2857 = vand.u32 %v2662, 2147483648
    %v2858 = vor.u32 1.1754944e-38, %v2857
    %v2859 = vsel %vm2856, %v2858, %v2854
    %v2860 = vmul.f32 1.0, %v2859
    %v2861 = vrcp.pop %v2663
    %v2862 = vmul.f32 %v2663, %v2861
    %v2863 = vsub.f32 1.0, %v2862
    %v2864 = vmul.f32 %v2861, %v2863
    %v2865 = vadd.f32 %v2861, %v2864
    %vm2866 = vweird.f32 %v2663
    %vm2867 = vweird.f32 %v2861
    %vm2868 = vmor %vm2866, %vm2867
    %v2869 = vsel %vm2868, %v2861, %v2865
    %v2870 = vand.u32 2147483647, %v2663
    %vm2871 = vcmp.eq.f32.partialorder %v2870, 8.507059e+37
    %v2872 = vand.u32 %v2663, 2147483648
    %v2873 = vor.u32 1.1754944e-38, %v2872
    %v2874 = vsel %vm2871, %v2873, %v2869
    %v2875 = vmul.f32 1.0, %v2874
    %v2876 = vrcp.pop %v2664
    %v2877 = vmul.f32 %v2664, %v2876
    %v2878 = vsub.f32 1.0, %v2877
    %v2879 = vmul.f32 %v2876, %v2878
    %v2880 = vadd.f32 %v2876, %v2879
    %vm2881 = vweird.f32 %v2664
    %vm2882 = vweird.f32 %v2876
    %vm2883 = vmor %vm2881, %vm2882
    %v2884 = vsel %vm2883, %v2876, %v2880
    %v2885 = vand.u32 2147483647, %v2664
    %vm2886 = vcmp.eq.f32.partialorder %v2885, 8.507059e+37
    %v2887 = vand.u32 %v2664, 2147483648
    %v2888 = vor.u32 1.1754944e-38, %v2887
    %v2889 = vsel %vm2886, %v2888, %v2884
    %v2890 = vmul.f32 1.0, %v2889
    %v2891 = vrcp.pop %v2665
    %v2892 = vmul.f32 %v2665, %v2891
    %v2893 = vsub.f32 1.0, %v2892
    %v2894 = vmul.f32 %v2891, %v2893
    %v2895 = vadd.f32 %v2891, %v2894
    %vm2896 = vweird.f32 %v2665
    %vm2897 = vweird.f32 %v2891
    %vm2898 = vmor %vm2896, %vm2897
    %v2899 = vsel %vm2898, %v2891, %v2895
    %v2900 = vand.u32 2147483647, %v2665
    %vm2901 = vcmp.eq.f32.partialorder %v2900, 8.507059e+37
    %v2902 = vand.u32 %v2665, 2147483648
    %v2903 = vor.u32 1.1754944e-38, %v2902
    %v2904 = vsel %vm2901, %v2903, %v2899
    %v2905 = vmul.f32 1.0, %v2904
    %v2906 = vmul.f32 %v2360, %v2227
    %v2907 = vmul.f32 %v2375, %v2229
    %v2908 = vmul.f32 %v2390, %v2232
    %v2909 = vmul.f32 %v2405, %v2234
    %v2910 = vmul.f32 %v2420, %v2237
    %v2911 = vmul.f32 %v2435, %v2239
    %v2912 = vmul.f32 %v2450, %v2242
    %v2913 = vmul.f32 %v2465, %v2244
    %v2914 = vmul.f32 %v2480, %v2247
    %v2915 = vmul.f32 %v2495, %v2249
    %v2916 = vmul.f32 %v2510, %v2252
    %v2917 = vmul.f32 %v2525, %v2254
    %v2918 = vmul.f32 %v2540, %v2257
    %v2919 = vmul.f32 %v2555, %v2259
    %v2920 = vmul.f32 %v2570, %v2262
    %v2921 = vmul.f32 %v2585, %v2264
    %v2922 = vadd.f32 %v2080, %v2906
    %v2923 = vadd.f32 %v2082, %v2907
    %v2924 = vadd.f32 %v2085, %v2908
    %v2925 = vadd.f32 %v2087, %v2909
    %v2926 = vadd.f32 %v2090, %v2910
    %v2927 = vadd.f32 %v2092, %v2911
    %v2928 = vadd.f32 %v2095, %v2912
    %v2929 = vadd.f32 %v2097, %v2913
    %v2930 = vadd.f32 %v2100, %v2914
    %v2931 = vadd.f32 %v2102, %v2915
    %v2932 = vadd.f32 %v2105, %v2916
    %v2933 = vadd.f32 %v2107, %v2917
    %v2934 = vadd.f32 %v2110, %v2918
    %v2935 = vadd.f32 %v2112, %v2919
    %v2936 = vadd.f32 %v2115, %v2920
    %v2937 = vadd.f32 %v2117, %v2921
    %v2938 = vtanh.pop %v2922
    %v2939 = vtanh.pop %v2923
    %v2940 = vtanh.pop %v2924
    %v2941 = vtanh.pop %v2925
    %v2942 = vtanh.pop %v2926
    %v2943 = vtanh.pop %v2927
    %v2944 = vtanh.pop %v2928
    %v2945 = vtanh.pop %v2929
    %v2946 = vtanh.pop %v2930
    %v2947 = vtanh.pop %v2931
    %v2948 = vtanh.pop %v2932
    %v2949 = vtanh.pop %v2933
    %v2950 = vtanh.pop %v2934
    %v2951 = vtanh.pop %v2935
    %v2952 = vtanh.pop %v2936
    %v2953 = vtanh.pop %v2937
    %v2954 = vsub.f32 1.0, %v2680
    %v2955 = vsub.f32 1.0, %v2695
    %v2956 = vsub.f32 1.0, %v2710
    %v2957 = vsub.f32 1.0, %v2725
    %v2958 = vsub.f32 1.0, %v2740
    %v2959 = vsub.f32 1.0, %v2755
    %v2960 = vsub.f32 1.0, %v2770
    %v2961 = vsub.f32 1.0, %v2785
    %v2962 = vsub.f32 1.0, %v2800
    %v2963 = vsub.f32 1.0, %v2815
    %v2964 = vsub.f32 1.0, %v2830
    %v2965 = vsub.f32 1.0, %v2845
    %v2966 = vsub.f32 1.0, %v2860
    %v2967 = vsub.f32 1.0, %v2875
    %v2968 = vsub.f32 1.0, %v2890
    %v2969 = vsub.f32 1.0, %v2905
    %v2970 = vmul.f32 %v2954, %v2938
    %v2971 = vmul.f32 %v2955, %v2939
    %v2972 = vmul.f32 %v2956, %v2940
    %v2973 = vmul.f32 %v2957, %v2941
    %v2974 = vmul.f32 %v2958, %v2942
    %v2975 = vmul.f32 %v2959, %v2943
    %v2976 = vmul.f32 %v2960, %v2944
    %v2977 = vmul.f32 %v2961, %v2945
    %v2978 = vmul.f32 %v2962, %v2946
    %v2979 = vmul.f32 %v2963, %v2947
    %v2980 = vmul.f32 %v2964, %v2948
    %v2981 = vmul.f32 %v2965, %v2949
    %v2982 = vmul.f32 %v2966, %v2950
    %v2983 = vmul.f32 %v2967, %v2951
    %v2984 = vmul.f32 %v2968, %v2952
    %v2985 = vmul.f32 %v2969, %v2953
    %v2986 = vmul.f32 %v2680, %v1730
    %v2987 = vmul.f32 %v2695, %v1731
    %v2988 = vmul.f32 %v2710, %v1732
    %v2989 = vmul.f32 %v2725, %v1733
    %v2990 = vmul.f32 %v2740, %v1734
    %v2991 = vmul.f32 %v2755, %v1735
    %v2992 = vmul.f32 %v2770, %v1736
    %v2993 = vmul.f32 %v2785, %v1737
    %v2994 = vmul.f32 %v2800, %v1738
    %v2995 = vmul.f32 %v2815, %v1739
    %v2996 = vmul.f32 %v2830, %v1740
    %v2997 = vmul.f32 %v2845, %v1741
    %v2998 = vmul.f32 %v2860, %v1742
    %v2999 = vmul.f32 %v2875, %v1743
    %v3000 = vmul.f32 %v2890, %v1744
    %v3001 = vmul.f32 %v2905, %v1745
    %v3002 = vadd.f32 %v2970, %v2986
    %v3003 = vadd.f32 %v2971, %v2987
    %v3004 = vadd.f32 %v2972, %v2988
    %v3005 = vadd.f32 %v2973, %v2989
    %v3006 = vadd.f32 %v2974, %v2990
    %v3007 = vadd.f32 %v2975, %v2991
    %v3008 = vadd.f32 %v2976, %v2992
    %v3009 = vadd.f32 %v2977, %v2993
    %v3010 = vadd.f32 %v2978, %v2994
    %v3011 = vadd.f32 %v2979, %v2995
    %v3012 = vadd.f32 %v2980, %v2996
    %v3013 = vadd.f32 %v2981, %v2997
    %v3014 = vadd.f32 %v2982, %v2998
    %v3015 = vadd.f32 %v2983, %v2999
    %v3016 = vadd.f32 %v2984, %v3000
    %v3017 = vadd.f32 %v2985, %v3001
    %v3018 = vmax.f32 %v3002, 0.0
    %v3019 = vmax.f32 %v3003, 0.0
    %v3020 = vmax.f32 %v3004, 0.0
    %v3021 = vmax.f32 %v3005, 0.0
    %v3022 = vmax.f32 %v3006, 0.0
    %v3023 = vmax.f32 %v3007, 0.0
    %v3024 = vmax.f32 %v3008, 0.0
    %v3025 = vmax.f32 %v3009, 0.0
    %v3026 = vmax.f32 %v3010, 0.0
    %v3027 = vmax.f32 %v3011, 0.0
    %v3028 = vmax.f32 %v3012, 0.0
    %v3029 = vmax.f32 %v3013, 0.0
    %v3030 = vmax.f32 %v3014, 0.0
    %v3031 = vmax.f32 %v3015, 0.0
    %v3032 = vmax.f32 %v3016, 0.0
    %v3033 = vmax.f32 %v3017, 0.0
    %v3034 = vld [vmem:[%s8] sm:$0xff]
    %v3035 = vld [vmem:[%s8 + $0x8] sm:$0xff]
    %v3036 = vld [vmem:[%s8 + $0x10] sm:$0xff]
    %v3037 = vld [vmem:[%s8 + $0x18] sm:$0xff]
    %v3038 = vld [vmem:[%s8 + $0x20] sm:$0xff]
    %v3039 = vld [vmem:[%s8 + $0x28] sm:$0xff]
    %v3040 = vld [vmem:[%s8 + $0x30] sm:$0xff]
    %v3041 = vld [vmem:[%s8 + $0x38] sm:$0xff]
    %v3042 = vld [vmem:[%s8 + $0x40] sm:$0xff]
    %v3043 = vld [vmem:[%s8 + $0x48] sm:$0xff]
    %v3044 = vld [vmem:[%s8 + $0x50] sm:$0xff]
    %v3045 = vld [vmem:[%s8 + $0x58] sm:$0xff]
    %v3046 = vld [vmem:[%s8 + $0x60] sm:$0xff]
    %v3047 = vld [vmem:[%s8 + $0x68] sm:$0xff]
    %v3048 = vld [vmem:[%s8 + $0x70] sm:$0xff]
    %v3049 = vld [vmem:[%s8 + $0x78] sm:$0xff]
    %v3050 = vld [vmem:[#allocation8] sm:$0x1]
    %v3052 = vperm.slane %v3050, 0
    %3054 = vmatpush.msra.mxu0 %v3049
    %3055 = vmatpush.msra.mxu0 %v3048
    %3056 = vmatpush.msra.mxu0 %v3047
    %3057 = vmatpush.msra.mxu0 %v3046
    %3058 = vmatpush.msra.mxu0 %v3045
    %3059 = vmatpush.msra.mxu0 %v3044
    %3060 = vmatpush.msra.mxu0 %v3043
    %3061 = vmatpush.msra.mxu0 %v3042
    %3062 = vmatpush.msra.mxu0 %v3041
    %3063 = vmatpush.msra.mxu0 %v3040
    %3064 = vmatpush.msra.mxu0 %v3039
    %3065 = vmatpush.msra.mxu0 %v3038
    %3066 = vmatpush.msra.mxu0 %v3037
    %3067 = vmatpush.msra.mxu0 %v3036
    %3068 = vmatpush.msra.mxu0 %v3035
    %3069 = vmatpush.msra.mxu0 %v3034
    %3070 = vmatmul.f32.gmra.mxu0 %v3018
    %v3071 = vpop.f32.mrf.mxu0
    %v3072 = vadd.f32 %v3052, %v3071
    %3073 = vmatmul.f32.gmra.mxu0 %v3019
    %v3074 = vpop.f32.mrf.mxu0
    %v3075 = vadd.f32 %v3052, %v3074
    %3076 = vmatmul.f32.gmra.mxu0 %v3020
    %v3077 = vpop.f32.mrf.mxu0
    %v3078 = vadd.f32 %v3052, %v3077
    %3079 = vmatmul.f32.gmra.mxu0 %v3021
    %v3080 = vpop.f32.mrf.mxu0
    %v3081 = vadd.f32 %v3052, %v3080
    %3082 = vmatmul.f32.gmra.mxu0 %v3022
    %v3083 = vpop.f32.mrf.mxu0
    %v3084 = vadd.f32 %v3052, %v3083
    %3085 = vmatmul.f32.gmra.mxu0 %v3023
    %v3086 = vpop.f32.mrf.mxu0
    %v3087 = vadd.f32 %v3052, %v3086
    %3088 = vmatmul.f32.gmra.mxu0 %v3024
    %v3089 = vpop.f32.mrf.mxu0
    %v3090 = vadd.f32 %v3052, %v3089
    %3091 = vmatmul.f32.gmra.mxu0 %v3025
    %v3092 = vpop.f32.mrf.mxu0
    %v3093 = vadd.f32 %v3052, %v3092
    %3094 = vmatmul.f32.gmra.mxu0 %v3026
    %v3095 = vpop.f32.mrf.mxu0
    %v3096 = vadd.f32 %v3052, %v3095
    %3097 = vmatmul.f32.gmra.mxu0 %v3027
    %v3098 = vpop.f32.mrf.mxu0
    %v3099 = vadd.f32 %v3052, %v3098
    %3100 = vmatmul.f32.gmra.mxu0 %v3028
    %v3101 = vpop.f32.mrf.mxu0
    %v3102 = vadd.f32 %v3052, %v3101
    %3103 = vmatmul.f32.gmra.mxu0 %v3029
    %v3104 = vpop.f32.mrf.mxu0
    %v3105 = vadd.f32 %v3052, %v3104
    %3106 = vmatmul.f32.gmra.mxu0 %v3030
    %v3107 = vpop.f32.mrf.mxu0
    %v3108 = vadd.f32 %v3052, %v3107
    %3109 = vmatmul.f32.gmra.mxu0 %v3031
    %v3110 = vpop.f32.mrf.mxu0
    %v3111 = vadd.f32 %v3052, %v3110
    %3112 = vmatmul.f32.gmra.mxu0 %v3032
    %v3113 = vpop.f32.mrf.mxu0
    %v3114 = vadd.f32 %v3052, %v3113
    %3115 = vmatmul.f32.gmra.mxu0 %v3033
    %v3116 = vpop.f32.mrf.mxu0
    %v3117 = vadd.f32 %v3052, %v3116
    %3118 = vdwg.mxu0
    %3119 = vst [vmem:[#allocation10] sm:$0xff] %v3072
    %3120 = vst [vmem:[#allocation10 + $0x8] sm:$0xff] %v3075
    %3121 = vst [vmem:[#allocation10 + $0x10] sm:$0xff] %v3078
    %3122 = vst [vmem:[#allocation10 + $0x18] sm:$0xff] %v3081
    %3123 = vst [vmem:[#allocation10 + $0x20] sm:$0xff] %v3084
    %3124 = vst [vmem:[#allocation10 + $0x28] sm:$0xff] %v3087
    %3125 = vst [vmem:[#allocation10 + $0x30] sm:$0xff] %v3090
    %3126 = vst [vmem:[#allocation10 + $0x38] sm:$0xff] %v3093
    %3127 = vst [vmem:[#allocation10 + $0x40] sm:$0xff] %v3096
    %3128 = vst [vmem:[#allocation10 + $0x48] sm:$0xff] %v3099
    %3129 = vst [vmem:[#allocation10 + $0x50] sm:$0xff] %v3102
    %3130 = vst [vmem:[#allocation10 + $0x58] sm:$0xff] %v3105
    %3131 = vst [vmem:[#allocation10 + $0x60] sm:$0xff] %v3108
    %3132 = vst [vmem:[#allocation10 + $0x68] sm:$0xff] %v3111
    %3133 = vst [vmem:[#allocation10 + $0x70] sm:$0xff] %v3114
    %3134 = vst [vmem:[#allocation10 + $0x78] sm:$0xff] %v3117
    // Predicated region
    $region58: #{tpu_custom_call.1} parent=1 // pred_check
      _
    $region59: #{tpu_custom_call.1} parent=1 // pred_check_branch
      %3136 = sbr.rel (0) target = $region61
    $region60: #{tpu_custom_call.1} parent=1 // pred_region
      %3138 = vsyncadd [#allocation4], 0
      %s3139 = sshll.u32 [#allocation10], 4
      %s3140 = int_to_ptr.vmem [resolvable:$true] %s3139
      %s3141 = sshll.u32 %s10, 4
      %s3142 = int_to_ptr.hbm [resolvable:$true] %s3141
      %3147 = dma.vmem_to_hbm [thread:$0]  %s3140, 2048, %s3142, [#allocation4], 128, 128, 8
    $region61: #{tpu_custom_call.1} parent=1 // pred_fallthru
      _
    // Predicated region
    $region62: #{tpu_custom_call.1} parent=1 // pred_check
      _
    $region63: #{tpu_custom_call.1} parent=1 // pred_check_branch
      %3149 = sbr.rel (0) target = $region65
    $region64: #{tpu_custom_call.1} parent=1 // pred_region
      %3151 = dma.done [#allocation4], 2048
    $region65: #{tpu_custom_call.1} parent=1 // pred_fallthru
      _
    %3152 = vsyncpa [#allocation3], 1
    %3153 = vsyncpa [#allocation6], 1
    %3154 = vsyncpa [#allocation9], 1
    %3155 = vsyncpa [#allocation4], 1

</llo_original>
